<compile_context>
chip_gen: v5e
topology: v5e:2x2
jax: 0.10.0
libtpu: 0.0.40
codegen_flags: <defaults>
</compile_context>

<pallas_src>
import jax
import jax.numpy as jnp
from jax.experimental import pallas as pl
from jax.experimental.pallas import tpu as pltpu


def _make_kernel(residual_mode, NB, Cin, Cout, T, V, S, R):
    """residual_mode: 'conv' (Cin != Cout), 'identity' (Cin == Cout), or 'none'."""
    M = T * V

    def kernel(x_ref, A_ref, wA_ref, bA_ref, wB_ref, bB_ref,
               w4_ref, b4_ref, bn_ref, o_ref):
        x = x_ref[...].astype(jnp.float32)               # (NB, Cin, M) lane-dense

        # temporal mean over T via static lane-slice sum (no relayout of x)
        xm = x[:, :, 0:V]
        for t in range(1, T):
            xm = xm + x[:, :, t * V:(t + 1) * V]
        xm = xm * (1.0 / T)                              # (NB, Cin, V)

        def contract_small_k(w, b, xin):
            # w: (O, K), b: (O, 1), xin: (NB, K, m) -> (NB, O, m)
            # K = Cin is tiny, so use unrolled VPU broadcast-multiply-add instead
            # of a K=3 MXU matmul (MXU push/pop latency >> FLOPs here).
            out = b[None, :, :]
            for k in range(w.shape[1]):
                out = out + w[:, k:k + 1][None, :, :] * xin[:, k:k + 1, :]
            return out

        # conv1/conv2 for all S subsets fused into one stacked contraction
        rA = contract_small_k(wA_ref[...], bA_ref[...], xm)   # (NB, 2*S*R, V)
        # conv3 for all S subsets (+ down-conv in 'conv' mode) fused likewise
        rB = contract_small_k(wB_ref[...], bB_ref[...], x)    # (NB, S*Cout[+Cout], M)

        x3_all = rB[:, :S * Cout, :].reshape(NB, S * Cout, T, V)

        y = jnp.zeros((NB * Cout, T, V), jnp.float32)
        for s in range(S):                               # static, small num_subset loop
            x1 = rA[:, s * R:(s + 1) * R, :]                         # (NB, R, V)
            x2 = rA[:, S * R + s * R:S * R + (s + 1) * R, :]         # (NB, R, V)
            # d[n, r, u, v] = tanh(x1[n, r, u] - x2[n, r, v])
            d = jnp.tanh(x1[:, :, :, None] - x2[:, :, None, :])      # (NB, R, V, V)

            # conv4 (R -> Cout, alpha pre-folded) as unrolled VPU contraction
            w4s = w4_ref[s]                                          # (Cout, R)
            b4s = b4_ref[s]                                          # (Cout,)
            a4 = b4s[None, :, None, None]
            for r in range(R):
                a4 = a4 + w4s[:, r:r + 1][None, :, :, None] * d[:, r:r + 1, :, :]
            adj = a4 + A_ref[s][None, None, :, :]                    # (NB, Cout, V, V)

            # einsum('ncuv,nctv->nctu') with (n, c) merged into one batch dim
            x3_s = x3_all[:, s * Cout:(s + 1) * Cout].reshape(NB * Cout, T, V)
            adj_m = adj.reshape(NB * Cout, V, V)
            y = y + jnp.einsum('btv,buv->btu', x3_s, adj_m,
                               preferred_element_type=jnp.float32)

        # flatten once to the lane-dense output layout, then BN / residual / ReLU
        y = y.reshape(NB, Cout, M)
        bn = bn_ref[...]                                             # (4, Cout)
        y = y * bn[0][None, :, None] + bn[1][None, :, None]

        if residual_mode == "conv":
            res = rB[:, S * Cout:, :]                                # (NB, Cout, M)
            res = res * bn[2][None, :, None] + bn[3][None, :, None]
        elif residual_mode == "identity":
            res = x
        else:
            res = jnp.float32(0.0)

        o_ref[...] = jnp.maximum(y + res, 0.0).astype(o_ref.dtype)

    return kernel


def unit_gcn_forward(x, params, residual_mode="conv", batch_block=2):
    N, Cin, T, V = x.shape
    M = T * V
    A = params["A"].astype(jnp.float32)
    S = A.shape[0]
    R = params["w1"].shape[1]
    Cout = params["w3"].shape[1]

    if residual_mode == "identity":
        assert Cin == Cout, "identity residual requires in_channels == out_channels"

    NB = min(batch_block, N)
    assert N % NB == 0, "batch must be divisible by the per-step batch block"

    x_flat = x.reshape(N, Cin, M).astype(jnp.float32)
    alpha = jnp.asarray(params["alpha"], jnp.float32).reshape(())

    # Stack the per-subset 1x1-conv weights so the kernel does one contraction per group.
    wA = jnp.concatenate([params["w1"].reshape(S * R, Cin),
                          params["w2"].reshape(S * R, Cin)], axis=0)       # (2*S*R, Cin)
    bA = jnp.concatenate([params["b1"].reshape(S * R, 1),
                          params["b2"].reshape(S * R, 1)], axis=0)
    w3 = params["w3"].reshape(S * Cout, Cin)
    b3 = params["b3"].reshape(S * Cout, 1)
    if residual_mode == "conv":
        wB = jnp.concatenate([w3, params["wd"].reshape(Cout, Cin)], axis=0)
        bB = jnp.concatenate([b3, params["bd"].reshape(Cout, 1)], axis=0)
    else:
        wB, bB = w3, b3

    # Fold the scalar alpha parameter into conv4 weight/bias (forward-equivalent).
    w4 = params["w4"].astype(jnp.float32) * alpha                          # (S, Cout, R)
    b4 = params["b4"].reshape(S, Cout).astype(jnp.float32) * alpha         # (S, Cout)

    # Eval-mode BatchNorms pre-folded to per-channel scale/shift, packed into one array.
    bnd_scale = params.get("bnd_scale", jnp.ones((Cout, 1), jnp.float32))
    bnd_shift = params.get("bnd_shift", jnp.zeros((Cout, 1), jnp.float32))
    bn = jnp.stack([params["bn_scale"].reshape(Cout),
                    params["bn_shift"].reshape(Cout),
                    bnd_scale.reshape(Cout),
                    bnd_shift.reshape(Cout)], axis=0)                      # (4, Cout)

    def full(shape):
        nd = len(shape)
        return pl.BlockSpec(shape, lambda n, _nd=nd: (0,) * _nd)

    out_flat = pl.pallas_call(
        _make_kernel(residual_mode, NB, Cin, Cout, T, V, S, R),
        out_shape=jax.ShapeDtypeStruct((N, Cout, M), jnp.float32),
        grid_spec=pltpu.PrefetchScalarGridSpec(
            num_scalar_prefetch=0,
            grid=(N // NB,),
            in_specs=[
                pl.BlockSpec((NB, Cin, M), lambda n: (n, 0, 0)),   # x (lane-dense)
                full((S, V, V)),                                   # A
                full(tuple(wA.shape)), full(tuple(bA.shape)),      # stacked conv1+conv2
                full(tuple(wB.shape)), full(tuple(bB.shape)),      # stacked conv3 (+down)
                full((S, Cout, R)), full((S, Cout)),               # conv4 (alpha folded)
                full((4, Cout)),                                   # packed BN scale/shift
            ],
            out_specs=pl.BlockSpec((NB, Cout, M), lambda n: (n, 0, 0)),
        ),
        compiler_params=pltpu.CompilerParams(
            dimension_semantics=("parallel",)),
    )(x_flat, A, wA, bA, wB, bB, w4, b4, bn)

    return out_flat.reshape(N, Cout, T, V)


def _kaiming(key, shape, fan_out):
    # kaiming_normal_(mode='fan_out') for a 1x1 conv: std = sqrt(2 / out_channels)
    std = (2.0 / float(fan_out)) ** 0.5
    return std * jax.random.normal(key, shape, jnp.float32)


if __name__ == "__main__":
    # Small shapes consistent with the module: in_channels=3 (-> rel_channels=8),
    # out_channels=8, T=8 frames, V=16 joints (T*V=128 lanes), num_subset=3, N=4
    # so that 2 samples per grid step still leaves a 2-step "parallel" grid.
    N, Cin, Cout, T, V, S = 4, 3, 8, 8, 16, 3
    R = 8  # rel_channels (in_channels == 3 branch of CTRGC.__init__)
    eps = 1e-5

    key = jax.random.PRNGKey(0)
    keys = jax.random.split(key, 8)

    params = {
        "A": jax.random.uniform(keys[0], (S, V, V), jnp.float32),
        # PyTorch inits alpha to 0; use a small nonzero value so the conv4 branch is exercised.
        "alpha": jnp.full((1,), 0.1, jnp.float32),
        "w1": _kaiming(keys[1], (S, R, Cin), R),
        "b1": jnp.zeros((S, R, 1), jnp.float32),
        "w2": _kaiming(keys[2], (S, R, Cin), R),
        "b2": jnp.zeros((S, R, 1), jnp.float32),
        "w3": _kaiming(keys[3], (S, Cout, Cin), Cout),
        "b3": jnp.zeros((S, Cout, 1), jnp.float32),
        "w4": _kaiming(keys[4], (S, Cout, R), Cout),
        "b4": jnp.zeros((S, Cout, 1), jnp.float32),
        # down branch (in_channels != out_channels): Conv2d(1x1) + BatchNorm2d(gamma=1)
        "wd": _kaiming(keys[5], (Cout, Cin), Cout),
        "bd": jnp.zeros((Cout, 1), jnp.float32),
    }

    # main BN: bn_init(self.bn, 1e-6) -> gamma=1e-6, beta=0; eval stats mean=0, var=1.
    gamma = jnp.full((Cout,), 1e-6, jnp.float32)
    beta = jnp.zeros((Cout,), jnp.float32)
    run_mean = jnp.zeros((Cout,), jnp.float32)
    run_var = jnp.ones((Cout,), jnp.float32)
    scale = gamma / jnp.sqrt(run_var + eps)
    params["bn_scale"] = scale.reshape(Cout, 1)
    params["bn_shift"] = (beta - run_mean * scale).reshape(Cout, 1)

    # down BN: bn_init(bn, 1) -> gamma=1, beta=0; eval stats mean=0, var=1.
    gd = jnp.ones((Cout,), jnp.float32)
    scale_d = gd / jnp.sqrt(run_var + eps)
    params["bnd_scale"] = scale_d.reshape(Cout, 1)
    params["bnd_shift"] = jnp.zeros((Cout, 1), jnp.float32)

    x = jax.random.normal(keys[6], (N, Cin, T, V), jnp.float32)

    out = unit_gcn_forward(x, params, residual_mode="conv", batch_block=2)
    jax.block_until_ready(out)
    assert out.shape == (N, Cout, T, V)
    # TODO(synk): BatchNorm is implemented with eval-mode (running-stat) semantics;
    # PyTorch training-mode batch statistics are not reproduced.
    print("KERNEL_OK")
</pallas_src>

<mosaic_0001>
module attributes {stable_mosaic.version = 11 : i64} {
  func.func @kernel(%arg0: i32, %arg1: memref<2x3x128xf32, #tpu.memory_space<vmem>>, %arg2: memref<3x16x16xf32, #tpu.memory_space<vmem>>, %arg3: memref<48x3xf32, #tpu.memory_space<vmem>>, %arg4: memref<48x1xf32, #tpu.memory_space<vmem>>, %arg5: memref<32x3xf32, #tpu.memory_space<vmem>>, %arg6: memref<32x1xf32, #tpu.memory_space<vmem>>, %arg7: memref<3x8x8xf32, #tpu.memory_space<vmem>>, %arg8: memref<3x8xf32, #tpu.memory_space<vmem>>, %arg9: memref<4x8xf32, #tpu.memory_space<vmem>>, %arg10: memref<2x8x128xf32, #tpu.memory_space<vmem>>) attributes {dimension_semantics = [#tpu.dimension_semantics<parallel>], iteration_bounds = array<i64: 2>, scalar_prefetch = 0 : i64, scratch_operands = 0 : i64, tpu.core_type = #tpu.core_type<tc>, window_params = [{transform_indices = @transform_0, window_bounds = array<i64: 2, 3, 128>}, {pipeline_mode = #tpu.pipeline_mode<synchronous>, transform_indices = @transform_1, window_bounds = array<i64: 3, 16, 16>}, {pipeline_mode = #tpu.pipeline_mode<synchronous>, transform_indices = @transform_2, window_bounds = array<i64: 48, 3>}, {pipeline_mode = #tpu.pipeline_mode<synchronous>, transform_indices = @transform_3, window_bounds = array<i64: 48, 1>}, {pipeline_mode = #tpu.pipeline_mode<synchronous>, transform_indices = @transform_4, window_bounds = array<i64: 32, 3>}, {pipeline_mode = #tpu.pipeline_mode<synchronous>, transform_indices = @transform_5, window_bounds = array<i64: 32, 1>}, {pipeline_mode = #tpu.pipeline_mode<synchronous>, transform_indices = @transform_6, window_bounds = array<i64: 3, 8, 8>}, {pipeline_mode = #tpu.pipeline_mode<synchronous>, transform_indices = @transform_7, window_bounds = array<i64: 3, 8>}, {pipeline_mode = #tpu.pipeline_mode<synchronous>, transform_indices = @transform_8, window_bounds = array<i64: 4, 8>}, {transform_indices = @transform_9, window_bounds = array<i64: 2, 8, 128>}]} {
    %c0 = arith.constant 0 : index
    %c0_0 = arith.constant 0 : index
    %c0_1 = arith.constant 0 : index
    %0 = vector.load %arg1[%c0, %c0_0, %c0_1] : memref<2x3x128xf32, #tpu.memory_space<vmem>>, vector<2x3x128xf32>
    %1 = vector.extract_strided_slice %0 {offsets = [0, 0, 0], sizes = [2, 3, 16], strides = [1, 1, 1]} : vector<2x3x128xf32> to vector<2x3x16xf32>
    %2 = vector.extract_strided_slice %0 {offsets = [0, 0, 16], sizes = [2, 3, 16], strides = [1, 1, 1]} : vector<2x3x128xf32> to vector<2x3x16xf32>
    %3 = arith.addf %1, %2 : vector<2x3x16xf32>
    %4 = vector.extract_strided_slice %0 {offsets = [0, 0, 32], sizes = [2, 3, 16], strides = [1, 1, 1]} : vector<2x3x128xf32> to vector<2x3x16xf32>
    %5 = arith.addf %3, %4 : vector<2x3x16xf32>
    %6 = vector.extract_strided_slice %0 {offsets = [0, 0, 48], sizes = [2, 3, 16], strides = [1, 1, 1]} : vector<2x3x128xf32> to vector<2x3x16xf32>
    %7 = arith.addf %5, %6 : vector<2x3x16xf32>
    %8 = vector.extract_strided_slice %0 {offsets = [0, 0, 64], sizes = [2, 3, 16], strides = [1, 1, 1]} : vector<2x3x128xf32> to vector<2x3x16xf32>
    %9 = arith.addf %7, %8 : vector<2x3x16xf32>
    %10 = vector.extract_strided_slice %0 {offsets = [0, 0, 80], sizes = [2, 3, 16], strides = [1, 1, 1]} : vector<2x3x128xf32> to vector<2x3x16xf32>
    %11 = arith.addf %9, %10 : vector<2x3x16xf32>
    %12 = vector.extract_strided_slice %0 {offsets = [0, 0, 96], sizes = [2, 3, 16], strides = [1, 1, 1]} : vector<2x3x128xf32> to vector<2x3x16xf32>
    %13 = arith.addf %11, %12 : vector<2x3x16xf32>
    %14 = vector.extract_strided_slice %0 {offsets = [0, 0, 112], sizes = [2, 3, 16], strides = [1, 1, 1]} : vector<2x3x128xf32> to vector<2x3x16xf32>
    %15 = arith.addf %13, %14 : vector<2x3x16xf32>
    %cst = arith.constant 1.250000e-01 : f32
    %16 = vector.broadcast %cst : f32 to vector<2x3x16xf32>
    %17 = arith.mulf %15, %16 : vector<2x3x16xf32>
    %c0_2 = arith.constant 0 : index
    %c0_3 = arith.constant 0 : index
    %18 = vector.load %arg3[%c0_2, %c0_3] : memref<48x3xf32, #tpu.memory_space<vmem>>, vector<48x3xf32>
    %c0_4 = arith.constant 0 : index
    %c0_5 = arith.constant 0 : index
    %19 = vector.load %arg4[%c0_4, %c0_5] : memref<48x1xf32, #tpu.memory_space<vmem>>, vector<48x1xf32>
    %20 = vector.shape_cast %19 : vector<48x1xf32> to vector<1x48x1xf32>
    %21 = vector.extract_strided_slice %18 {offsets = [0, 0], sizes = [48, 1], strides = [1, 1]} : vector<48x3xf32> to vector<48x1xf32>
    %22 = vector.shape_cast %21 : vector<48x1xf32> to vector<1x48x1xf32>
    %23 = vector.extract_strided_slice %17 {offsets = [0, 0, 0], sizes = [2, 1, 16], strides = [1, 1, 1]} : vector<2x3x16xf32> to vector<2x1x16xf32>
    %24 = vector.broadcast %22 : vector<1x48x1xf32> to vector<2x48x16xf32>
    %25 = vector.broadcast %23 : vector<2x1x16xf32> to vector<2x48x16xf32>
    %26 = arith.mulf %24, %25 : vector<2x48x16xf32>
    %27 = vector.broadcast %20 : vector<1x48x1xf32> to vector<2x48x16xf32>
    %28 = arith.addf %27, %26 : vector<2x48x16xf32>
    %29 = vector.extract_strided_slice %18 {offsets = [0, 1], sizes = [48, 1], strides = [1, 1]} : vector<48x3xf32> to vector<48x1xf32>
    %30 = vector.shape_cast %29 : vector<48x1xf32> to vector<1x48x1xf32>
    %31 = vector.extract_strided_slice %17 {offsets = [0, 1, 0], sizes = [2, 1, 16], strides = [1, 1, 1]} : vector<2x3x16xf32> to vector<2x1x16xf32>
    %32 = vector.broadcast %30 : vector<1x48x1xf32> to vector<2x48x16xf32>
    %33 = vector.broadcast %31 : vector<2x1x16xf32> to vector<2x48x16xf32>
    %34 = arith.mulf %32, %33 : vector<2x48x16xf32>
    %35 = arith.addf %28, %34 : vector<2x48x16xf32>
    %36 = vector.extract_strided_slice %18 {offsets = [0, 2], sizes = [48, 1], strides = [1, 1]} : vector<48x3xf32> to vector<48x1xf32>
    %37 = vector.shape_cast %36 : vector<48x1xf32> to vector<1x48x1xf32>
    %38 = vector.extract_strided_slice %17 {offsets = [0, 2, 0], sizes = [2, 1, 16], strides = [1, 1, 1]} : vector<2x3x16xf32> to vector<2x1x16xf32>
    %39 = vector.broadcast %37 : vector<1x48x1xf32> to vector<2x48x16xf32>
    %40 = vector.broadcast %38 : vector<2x1x16xf32> to vector<2x48x16xf32>
    %41 = arith.mulf %39, %40 : vector<2x48x16xf32>
    %42 = arith.addf %35, %41 : vector<2x48x16xf32>
    %c0_6 = arith.constant 0 : index
    %c0_7 = arith.constant 0 : index
    %43 = vector.load %arg5[%c0_6, %c0_7] : memref<32x3xf32, #tpu.memory_space<vmem>>, vector<32x3xf32>
    %c0_8 = arith.constant 0 : index
    %c0_9 = arith.constant 0 : index
    %44 = vector.load %arg6[%c0_8, %c0_9] : memref<32x1xf32, #tpu.memory_space<vmem>>, vector<32x1xf32>
    %45 = vector.shape_cast %44 : vector<32x1xf32> to vector<1x32x1xf32>
    %46 = vector.extract_strided_slice %43 {offsets = [0, 0], sizes = [32, 1], strides = [1, 1]} : vector<32x3xf32> to vector<32x1xf32>
    %47 = vector.shape_cast %46 : vector<32x1xf32> to vector<1x32x1xf32>
    %48 = vector.extract_strided_slice %0 {offsets = [0, 0, 0], sizes = [2, 1, 128], strides = [1, 1, 1]} : vector<2x3x128xf32> to vector<2x1x128xf32>
    %49 = vector.broadcast %47 : vector<1x32x1xf32> to vector<2x32x128xf32>
    %50 = vector.broadcast %48 : vector<2x1x128xf32> to vector<2x32x128xf32>
    %51 = arith.mulf %49, %50 : vector<2x32x128xf32>
    %52 = vector.broadcast %45 : vector<1x32x1xf32> to vector<2x32x128xf32>
    %53 = arith.addf %52, %51 : vector<2x32x128xf32>
    %54 = vector.extract_strided_slice %43 {offsets = [0, 1], sizes = [32, 1], strides = [1, 1]} : vector<32x3xf32> to vector<32x1xf32>
    %55 = vector.shape_cast %54 : vector<32x1xf32> to vector<1x32x1xf32>
    %56 = vector.extract_strided_slice %0 {offsets = [0, 1, 0], sizes = [2, 1, 128], strides = [1, 1, 1]} : vector<2x3x128xf32> to vector<2x1x128xf32>
    %57 = vector.broadcast %55 : vector<1x32x1xf32> to vector<2x32x128xf32>
    %58 = vector.broadcast %56 : vector<2x1x128xf32> to vector<2x32x128xf32>
    %59 = arith.mulf %57, %58 : vector<2x32x128xf32>
    %60 = arith.addf %53, %59 : vector<2x32x128xf32>
    %61 = vector.extract_strided_slice %43 {offsets = [0, 2], sizes = [32, 1], strides = [1, 1]} : vector<32x3xf32> to vector<32x1xf32>
    %62 = vector.shape_cast %61 : vector<32x1xf32> to vector<1x32x1xf32>
    %63 = vector.extract_strided_slice %0 {offsets = [0, 2, 0], sizes = [2, 1, 128], strides = [1, 1, 1]} : vector<2x3x128xf32> to vector<2x1x128xf32>
    %64 = vector.broadcast %62 : vector<1x32x1xf32> to vector<2x32x128xf32>
    %65 = vector.broadcast %63 : vector<2x1x128xf32> to vector<2x32x128xf32>
    %66 = arith.mulf %64, %65 : vector<2x32x128xf32>
    %67 = arith.addf %60, %66 : vector<2x32x128xf32>
    %68 = vector.extract_strided_slice %67 {offsets = [0, 0, 0], sizes = [2, 24, 128], strides = [1, 1, 1]} : vector<2x32x128xf32> to vector<2x24x128xf32>
    %69 = vector.shape_cast %68 : vector<2x24x128xf32> to vector<2x24x8x16xf32>
    %cst_10 = arith.constant 0.000000e+00 : f32
    %70 = vector.broadcast %cst_10 : f32 to vector<16x8x16xf32>
    %71 = vector.extract_strided_slice %42 {offsets = [0, 0, 0], sizes = [2, 8, 16], strides = [1, 1, 1]} : vector<2x48x16xf32> to vector<2x8x16xf32>
    %72 = vector.extract_strided_slice %42 {offsets = [0, 24, 0], sizes = [2, 8, 16], strides = [1, 1, 1]} : vector<2x48x16xf32> to vector<2x8x16xf32>
    %73 = vector.shape_cast %71 : vector<2x8x16xf32> to vector<2x8x16x1xf32>
    %74 = vector.shape_cast %72 : vector<2x8x16xf32> to vector<2x8x1x16xf32>
    %75 = vector.broadcast %73 : vector<2x8x16x1xf32> to vector<2x8x16x16xf32>
    %76 = vector.broadcast %74 : vector<2x8x1x16xf32> to vector<2x8x16x16xf32>
    %77 = arith.subf %75, %76 : vector<2x8x16x16xf32>
    %78 = math.tanh %77 : vector<2x8x16x16xf32>
    %c0_11 = arith.constant 0 : index
    %c0_12 = arith.constant 0 : index
    %c0_13 = arith.constant 0 : index
    %79 = vector.load %arg7[%c0_11, %c0_12, %c0_13] : memref<3x8x8xf32, #tpu.memory_space<vmem>>, vector<1x8x8xf32>
    %80 = vector.shape_cast %79 : vector<1x8x8xf32> to vector<8x8xf32>
    %c0_14 = arith.constant 0 : index
    %c0_15 = arith.constant 0 : index
    %81 = vector.load %arg8[%c0_14, %c0_15] : memref<3x8xf32, #tpu.memory_space<vmem>>, vector<1x8xf32>
    %82 = vector.shape_cast %81 : vector<1x8xf32> to vector<8xf32>
    %83 = vector.shape_cast %82 : vector<8xf32> to vector<1x8x1x1xf32>
    %84 = vector.extract_strided_slice %80 {offsets = [0, 0], sizes = [8, 1], strides = [1, 1]} : vector<8x8xf32> to vector<8x1xf32>
    %85 = vector.shape_cast %84 : vector<8x1xf32> to vector<1x8x1x1xf32>
    %86 = vector.extract_strided_slice %78 {offsets = [0, 0, 0, 0], sizes = [2, 1, 16, 16], strides = [1, 1, 1, 1]} : vector<2x8x16x16xf32> to vector<2x1x16x16xf32>
    %87 = vector.broadcast %85 : vector<1x8x1x1xf32> to vector<2x8x16x16xf32>
    %88 = vector.broadcast %86 : vector<2x1x16x16xf32> to vector<2x8x16x16xf32>
    %89 = arith.mulf %87, %88 : vector<2x8x16x16xf32>
    %90 = vector.broadcast %83 : vector<1x8x1x1xf32> to vector<2x8x16x16xf32>
    %91 = arith.addf %90, %89 : vector<2x8x16x16xf32>
    %92 = vector.extract_strided_slice %80 {offsets = [0, 1], sizes = [8, 1], strides = [1, 1]} : vector<8x8xf32> to vector<8x1xf32>
    %93 = vector.shape_cast %92 : vector<8x1xf32> to vector<1x8x1x1xf32>
    %94 = vector.extract_strided_slice %78 {offsets = [0, 1, 0, 0], sizes = [2, 1, 16, 16], strides = [1, 1, 1, 1]} : vector<2x8x16x16xf32> to vector<2x1x16x16xf32>
    %95 = vector.broadcast %93 : vector<1x8x1x1xf32> to vector<2x8x16x16xf32>
    %96 = vector.broadcast %94 : vector<2x1x16x16xf32> to vector<2x8x16x16xf32>
    %97 = arith.mulf %95, %96 : vector<2x8x16x16xf32>
    %98 = arith.addf %91, %97 : vector<2x8x16x16xf32>
    %99 = vector.extract_strided_slice %80 {offsets = [0, 2], sizes = [8, 1], strides = [1, 1]} : vector<8x8xf32> to vector<8x1xf32>
    %100 = vector.shape_cast %99 : vector<8x1xf32> to vector<1x8x1x1xf32>
    %101 = vector.extract_strided_slice %78 {offsets = [0, 2, 0, 0], sizes = [2, 1, 16, 16], strides = [1, 1, 1, 1]} : vector<2x8x16x16xf32> to vector<2x1x16x16xf32>
    %102 = vector.broadcast %100 : vector<1x8x1x1xf32> to vector<2x8x16x16xf32>
    %103 = vector.broadcast %101 : vector<2x1x16x16xf32> to vector<2x8x16x16xf32>
    %104 = arith.mulf %102, %103 : vector<2x8x16x16xf32>
    %105 = arith.addf %98, %104 : vector<2x8x16x16xf32>
    %106 = vector.extract_strided_slice %80 {offsets = [0, 3], sizes = [8, 1], strides = [1, 1]} : vector<8x8xf32> to vector<8x1xf32>
    %107 = vector.shape_cast %106 : vector<8x1xf32> to vector<1x8x1x1xf32>
    %108 = vector.extract_strided_slice %78 {offsets = [0, 3, 0, 0], sizes = [2, 1, 16, 16], strides = [1, 1, 1, 1]} : vector<2x8x16x16xf32> to vector<2x1x16x16xf32>
    %109 = vector.broadcast %107 : vector<1x8x1x1xf32> to vector<2x8x16x16xf32>
    %110 = vector.broadcast %108 : vector<2x1x16x16xf32> to vector<2x8x16x16xf32>
    %111 = arith.mulf %109, %110 : vector<2x8x16x16xf32>
    %112 = arith.addf %105, %111 : vector<2x8x16x16xf32>
    %113 = vector.extract_strided_slice %80 {offsets = [0, 4], sizes = [8, 1], strides = [1, 1]} : vector<8x8xf32> to vector<8x1xf32>
    %114 = vector.shape_cast %113 : vector<8x1xf32> to vector<1x8x1x1xf32>
    %115 = vector.extract_strided_slice %78 {offsets = [0, 4, 0, 0], sizes = [2, 1, 16, 16], strides = [1, 1, 1, 1]} : vector<2x8x16x16xf32> to vector<2x1x16x16xf32>
    %116 = vector.broadcast %114 : vector<1x8x1x1xf32> to vector<2x8x16x16xf32>
    %117 = vector.broadcast %115 : vector<2x1x16x16xf32> to vector<2x8x16x16xf32>
    %118 = arith.mulf %116, %117 : vector<2x8x16x16xf32>
    %119 = arith.addf %112, %118 : vector<2x8x16x16xf32>
    %120 = vector.extract_strided_slice %80 {offsets = [0, 5], sizes = [8, 1], strides = [1, 1]} : vector<8x8xf32> to vector<8x1xf32>
    %121 = vector.shape_cast %120 : vector<8x1xf32> to vector<1x8x1x1xf32>
    %122 = vector.extract_strided_slice %78 {offsets = [0, 5, 0, 0], sizes = [2, 1, 16, 16], strides = [1, 1, 1, 1]} : vector<2x8x16x16xf32> to vector<2x1x16x16xf32>
    %123 = vector.broadcast %121 : vector<1x8x1x1xf32> to vector<2x8x16x16xf32>
    %124 = vector.broadcast %122 : vector<2x1x16x16xf32> to vector<2x8x16x16xf32>
    %125 = arith.mulf %123, %124 : vector<2x8x16x16xf32>
    %126 = arith.addf %119, %125 : vector<2x8x16x16xf32>
    %127 = vector.extract_strided_slice %80 {offsets = [0, 6], sizes = [8, 1], strides = [1, 1]} : vector<8x8xf32> to vector<8x1xf32>
    %128 = vector.shape_cast %127 : vector<8x1xf32> to vector<1x8x1x1xf32>
    %129 = vector.extract_strided_slice %78 {offsets = [0, 6, 0, 0], sizes = [2, 1, 16, 16], strides = [1, 1, 1, 1]} : vector<2x8x16x16xf32> to vector<2x1x16x16xf32>
    %130 = vector.broadcast %128 : vector<1x8x1x1xf32> to vector<2x8x16x16xf32>
    %131 = vector.broadcast %129 : vector<2x1x16x16xf32> to vector<2x8x16x16xf32>
    %132 = arith.mulf %130, %131 : vector<2x8x16x16xf32>
    %133 = arith.addf %126, %132 : vector<2x8x16x16xf32>
    %134 = vector.extract_strided_slice %80 {offsets = [0, 7], sizes = [8, 1], strides = [1, 1]} : vector<8x8xf32> to vector<8x1xf32>
    %135 = vector.shape_cast %134 : vector<8x1xf32> to vector<1x8x1x1xf32>
    %136 = vector.extract_strided_slice %78 {offsets = [0, 7, 0, 0], sizes = [2, 1, 16, 16], strides = [1, 1, 1, 1]} : vector<2x8x16x16xf32> to vector<2x1x16x16xf32>
    %137 = vector.broadcast %135 : vector<1x8x1x1xf32> to vector<2x8x16x16xf32>
    %138 = vector.broadcast %136 : vector<2x1x16x16xf32> to vector<2x8x16x16xf32>
    %139 = arith.mulf %137, %138 : vector<2x8x16x16xf32>
    %140 = arith.addf %133, %139 : vector<2x8x16x16xf32>
    %c0_16 = arith.constant 0 : index
    %c0_17 = arith.constant 0 : index
    %c0_18 = arith.constant 0 : index
    %141 = vector.load %arg2[%c0_16, %c0_17, %c0_18] : memref<3x16x16xf32, #tpu.memory_space<vmem>>, vector<1x16x16xf32>
    %142 = vector.shape_cast %141 : vector<1x16x16xf32> to vector<16x16xf32>
    %143 = vector.shape_cast %142 : vector<16x16xf32> to vector<1x1x16x16xf32>
    %144 = vector.broadcast %143 : vector<1x1x16x16xf32> to vector<2x8x16x16xf32>
    %145 = arith.addf %140, %144 : vector<2x8x16x16xf32>
    %146 = vector.extract_strided_slice %69 {offsets = [0, 0, 0, 0], sizes = [2, 8, 8, 16], strides = [1, 1, 1, 1]} : vector<2x24x8x16xf32> to vector<2x8x8x16xf32>
    %147 = vector.shape_cast %146 : vector<2x8x8x16xf32> to vector<16x8x16xf32>
    %148 = vector.shape_cast %145 : vector<2x8x16x16xf32> to vector<16x16x16xf32>
    "tpu.trace_start"() <{level = 10 : i32, message = "btv,buv->btu"}> : () -> ()
    %cst_19 = arith.constant dense<0.000000e+00> : vector<16x8x16xf32>
    %149 = tpu.matmul %147, %148, %cst_19 {dimension_numbers = #tpu.dot_dimension_numbers<[2], [2], [1], [1], [0, 0, 0, 1, 1, 1], [0], [0]>} : vector<16x8x16xf32>, vector<16x16x16xf32>, vector<16x8x16xf32> -> vector<16x8x16xf32>
    "tpu.trace_stop"() : () -> ()
    %150 = arith.addf %70, %149 : vector<16x8x16xf32>
    %151 = vector.extract_strided_slice %42 {offsets = [0, 8, 0], sizes = [2, 8, 16], strides = [1, 1, 1]} : vector<2x48x16xf32> to vector<2x8x16xf32>
    %152 = vector.extract_strided_slice %42 {offsets = [0, 32, 0], sizes = [2, 8, 16], strides = [1, 1, 1]} : vector<2x48x16xf32> to vector<2x8x16xf32>
    %153 = vector.shape_cast %151 : vector<2x8x16xf32> to vector<2x8x16x1xf32>
    %154 = vector.shape_cast %152 : vector<2x8x16xf32> to vector<2x8x1x16xf32>
    %155 = vector.broadcast %153 : vector<2x8x16x1xf32> to vector<2x8x16x16xf32>
    %156 = vector.broadcast %154 : vector<2x8x1x16xf32> to vector<2x8x16x16xf32>
    %157 = arith.subf %155, %156 : vector<2x8x16x16xf32>
    %158 = math.tanh %157 : vector<2x8x16x16xf32>
    %c1 = arith.constant 1 : index
    %c0_20 = arith.constant 0 : index
    %c0_21 = arith.constant 0 : index
    %159 = vector.load %arg7[%c1, %c0_20, %c0_21] : memref<3x8x8xf32, #tpu.memory_space<vmem>>, vector<1x8x8xf32>
    %160 = vector.shape_cast %159 : vector<1x8x8xf32> to vector<8x8xf32>
    %c1_22 = arith.constant 1 : index
    %c0_23 = arith.constant 0 : index
    %161 = vector.load %arg8[%c1_22, %c0_23] : memref<3x8xf32, #tpu.memory_space<vmem>>, vector<1x8xf32>
    %162 = vector.shape_cast %161 : vector<1x8xf32> to vector<8xf32>
    %163 = vector.shape_cast %162 : vector<8xf32> to vector<1x8x1x1xf32>
    %164 = vector.extract_strided_slice %160 {offsets = [0, 0], sizes = [8, 1], strides = [1, 1]} : vector<8x8xf32> to vector<8x1xf32>
    %165 = vector.shape_cast %164 : vector<8x1xf32> to vector<1x8x1x1xf32>
    %166 = vector.extract_strided_slice %158 {offsets = [0, 0, 0, 0], sizes = [2, 1, 16, 16], strides = [1, 1, 1, 1]} : vector<2x8x16x16xf32> to vector<2x1x16x16xf32>
    %167 = vector.broadcast %165 : vector<1x8x1x1xf32> to vector<2x8x16x16xf32>
    %168 = vector.broadcast %166 : vector<2x1x16x16xf32> to vector<2x8x16x16xf32>
    %169 = arith.mulf %167, %168 : vector<2x8x16x16xf32>
    %170 = vector.broadcast %163 : vector<1x8x1x1xf32> to vector<2x8x16x16xf32>
    %171 = arith.addf %170, %169 : vector<2x8x16x16xf32>
    %172 = vector.extract_strided_slice %160 {offsets = [0, 1], sizes = [8, 1], strides = [1, 1]} : vector<8x8xf32> to vector<8x1xf32>
    %173 = vector.shape_cast %172 : vector<8x1xf32> to vector<1x8x1x1xf32>
    %174 = vector.extract_strided_slice %158 {offsets = [0, 1, 0, 0], sizes = [2, 1, 16, 16], strides = [1, 1, 1, 1]} : vector<2x8x16x16xf32> to vector<2x1x16x16xf32>
    %175 = vector.broadcast %173 : vector<1x8x1x1xf32> to vector<2x8x16x16xf32>
    %176 = vector.broadcast %174 : vector<2x1x16x16xf32> to vector<2x8x16x16xf32>
    %177 = arith.mulf %175, %176 : vector<2x8x16x16xf32>
    %178 = arith.addf %171, %177 : vector<2x8x16x16xf32>
    %179 = vector.extract_strided_slice %160 {offsets = [0, 2], sizes = [8, 1], strides = [1, 1]} : vector<8x8xf32> to vector<8x1xf32>
    %180 = vector.shape_cast %179 : vector<8x1xf32> to vector<1x8x1x1xf32>
    %181 = vector.extract_strided_slice %158 {offsets = [0, 2, 0, 0], sizes = [2, 1, 16, 16], strides = [1, 1, 1, 1]} : vector<2x8x16x16xf32> to vector<2x1x16x16xf32>
    %182 = vector.broadcast %180 : vector<1x8x1x1xf32> to vector<2x8x16x16xf32>
    %183 = vector.broadcast %181 : vector<2x1x16x16xf32> to vector<2x8x16x16xf32>
    %184 = arith.mulf %182, %183 : vector<2x8x16x16xf32>
    %185 = arith.addf %178, %184 : vector<2x8x16x16xf32>
    %186 = vector.extract_strided_slice %160 {offsets = [0, 3], sizes = [8, 1], strides = [1, 1]} : vector<8x8xf32> to vector<8x1xf32>
    %187 = vector.shape_cast %186 : vector<8x1xf32> to vector<1x8x1x1xf32>
    %188 = vector.extract_strided_slice %158 {offsets = [0, 3, 0, 0], sizes = [2, 1, 16, 16], strides = [1, 1, 1, 1]} : vector<2x8x16x16xf32> to vector<2x1x16x16xf32>
    %189 = vector.broadcast %187 : vector<1x8x1x1xf32> to vector<2x8x16x16xf32>
    %190 = vector.broadcast %188 : vector<2x1x16x16xf32> to vector<2x8x16x16xf32>
    %191 = arith.mulf %189, %190 : vector<2x8x16x16xf32>
    %192 = arith.addf %185, %191 : vector<2x8x16x16xf32>
    %193 = vector.extract_strided_slice %160 {offsets = [0, 4], sizes = [8, 1], strides = [1, 1]} : vector<8x8xf32> to vector<8x1xf32>
    %194 = vector.shape_cast %193 : vector<8x1xf32> to vector<1x8x1x1xf32>
    %195 = vector.extract_strided_slice %158 {offsets = [0, 4, 0, 0], sizes = [2, 1, 16, 16], strides = [1, 1, 1, 1]} : vector<2x8x16x16xf32> to vector<2x1x16x16xf32>
    %196 = vector.broadcast %194 : vector<1x8x1x1xf32> to vector<2x8x16x16xf32>
    %197 = vector.broadcast %195 : vector<2x1x16x16xf32> to vector<2x8x16x16xf32>
    %198 = arith.mulf %196, %197 : vector<2x8x16x16xf32>
    %199 = arith.addf %192, %198 : vector<2x8x16x16xf32>
    %200 = vector.extract_strided_slice %160 {offsets = [0, 5], sizes = [8, 1], strides = [1, 1]} : vector<8x8xf32> to vector<8x1xf32>
    %201 = vector.shape_cast %200 : vector<8x1xf32> to vector<1x8x1x1xf32>
    %202 = vector.extract_strided_slice %158 {offsets = [0, 5, 0, 0], sizes = [2, 1, 16, 16], strides = [1, 1, 1, 1]} : vector<2x8x16x16xf32> to vector<2x1x16x16xf32>
    %203 = vector.broadcast %201 : vector<1x8x1x1xf32> to vector<2x8x16x16xf32>
    %204 = vector.broadcast %202 : vector<2x1x16x16xf32> to vector<2x8x16x16xf32>
    %205 = arith.mulf %203, %204 : vector<2x8x16x16xf32>
    %206 = arith.addf %199, %205 : vector<2x8x16x16xf32>
    %207 = vector.extract_strided_slice %160 {offsets = [0, 6], sizes = [8, 1], strides = [1, 1]} : vector<8x8xf32> to vector<8x1xf32>
    %208 = vector.shape_cast %207 : vector<8x1xf32> to vector<1x8x1x1xf32>
    %209 = vector.extract_strided_slice %158 {offsets = [0, 6, 0, 0], sizes = [2, 1, 16, 16], strides = [1, 1, 1, 1]} : vector<2x8x16x16xf32> to vector<2x1x16x16xf32>
    %210 = vector.broadcast %208 : vector<1x8x1x1xf32> to vector<2x8x16x16xf32>
    %211 = vector.broadcast %209 : vector<2x1x16x16xf32> to vector<2x8x16x16xf32>
    %212 = arith.mulf %210, %211 : vector<2x8x16x16xf32>
    %213 = arith.addf %206, %212 : vector<2x8x16x16xf32>
    %214 = vector.extract_strided_slice %160 {offsets = [0, 7], sizes = [8, 1], strides = [1, 1]} : vector<8x8xf32> to vector<8x1xf32>
    %215 = vector.shape_cast %214 : vector<8x1xf32> to vector<1x8x1x1xf32>
    %216 = vector.extract_strided_slice %158 {offsets = [0, 7, 0, 0], sizes = [2, 1, 16, 16], strides = [1, 1, 1, 1]} : vector<2x8x16x16xf32> to vector<2x1x16x16xf32>
    %217 = vector.broadcast %215 : vector<1x8x1x1xf32> to vector<2x8x16x16xf32>
    %218 = vector.broadcast %216 : vector<2x1x16x16xf32> to vector<2x8x16x16xf32>
    %219 = arith.mulf %217, %218 : vector<2x8x16x16xf32>
    %220 = arith.addf %213, %219 : vector<2x8x16x16xf32>
    %c1_24 = arith.constant 1 : index
    %c0_25 = arith.constant 0 : index
    %c0_26 = arith.constant 0 : index
    %221 = vector.load %arg2[%c1_24, %c0_25, %c0_26] : memref<3x16x16xf32, #tpu.memory_space<vmem>>, vector<1x16x16xf32>
    %222 = vector.shape_cast %221 : vector<1x16x16xf32> to vector<16x16xf32>
    %223 = vector.shape_cast %222 : vector<16x16xf32> to vector<1x1x16x16xf32>
    %224 = vector.broadcast %223 : vector<1x1x16x16xf32> to vector<2x8x16x16xf32>
    %225 = arith.addf %220, %224 : vector<2x8x16x16xf32>
    %226 = vector.extract_strided_slice %69 {offsets = [0, 8, 0, 0], sizes = [2, 8, 8, 16], strides = [1, 1, 1, 1]} : vector<2x24x8x16xf32> to vector<2x8x8x16xf32>
    %227 = vector.shape_cast %226 : vector<2x8x8x16xf32> to vector<16x8x16xf32>
    %228 = vector.shape_cast %225 : vector<2x8x16x16xf32> to vector<16x16x16xf32>
    "tpu.trace_start"() <{level = 10 : i32, message = "btv,buv->btu"}> : () -> ()
    %cst_27 = arith.constant dense<0.000000e+00> : vector<16x8x16xf32>
    %229 = tpu.matmul %227, %228, %cst_27 {dimension_numbers = #tpu.dot_dimension_numbers<[2], [2], [1], [1], [0, 0, 0, 1, 1, 1], [0], [0]>} : vector<16x8x16xf32>, vector<16x16x16xf32>, vector<16x8x16xf32> -> vector<16x8x16xf32>
    "tpu.trace_stop"() : () -> ()
    %230 = arith.addf %150, %229 : vector<16x8x16xf32>
    %231 = vector.extract_strided_slice %42 {offsets = [0, 16, 0], sizes = [2, 8, 16], strides = [1, 1, 1]} : vector<2x48x16xf32> to vector<2x8x16xf32>
    %232 = vector.extract_strided_slice %42 {offsets = [0, 40, 0], sizes = [2, 8, 16], strides = [1, 1, 1]} : vector<2x48x16xf32> to vector<2x8x16xf32>
    %233 = vector.shape_cast %231 : vector<2x8x16xf32> to vector<2x8x16x1xf32>
    %234 = vector.shape_cast %232 : vector<2x8x16xf32> to vector<2x8x1x16xf32>
    %235 = vector.broadcast %233 : vector<2x8x16x1xf32> to vector<2x8x16x16xf32>
    %236 = vector.broadcast %234 : vector<2x8x1x16xf32> to vector<2x8x16x16xf32>
    %237 = arith.subf %235, %236 : vector<2x8x16x16xf32>
    %238 = math.tanh %237 : vector<2x8x16x16xf32>
    %c2 = arith.constant 2 : index
    %c0_28 = arith.constant 0 : index
    %c0_29 = arith.constant 0 : index
    %239 = vector.load %arg7[%c2, %c0_28, %c0_29] : memref<3x8x8xf32, #tpu.memory_space<vmem>>, vector<1x8x8xf32>
    %240 = vector.shape_cast %239 : vector<1x8x8xf32> to vector<8x8xf32>
    %c2_30 = arith.constant 2 : index
    %c0_31 = arith.constant 0 : index
    %241 = vector.load %arg8[%c2_30, %c0_31] : memref<3x8xf32, #tpu.memory_space<vmem>>, vector<1x8xf32>
    %242 = vector.shape_cast %241 : vector<1x8xf32> to vector<8xf32>
    %243 = vector.shape_cast %242 : vector<8xf32> to vector<1x8x1x1xf32>
    %244 = vector.extract_strided_slice %240 {offsets = [0, 0], sizes = [8, 1], strides = [1, 1]} : vector<8x8xf32> to vector<8x1xf32>
    %245 = vector.shape_cast %244 : vector<8x1xf32> to vector<1x8x1x1xf32>
    %246 = vector.extract_strided_slice %238 {offsets = [0, 0, 0, 0], sizes = [2, 1, 16, 16], strides = [1, 1, 1, 1]} : vector<2x8x16x16xf32> to vector<2x1x16x16xf32>
    %247 = vector.broadcast %245 : vector<1x8x1x1xf32> to vector<2x8x16x16xf32>
    %248 = vector.broadcast %246 : vector<2x1x16x16xf32> to vector<2x8x16x16xf32>
    %249 = arith.mulf %247, %248 : vector<2x8x16x16xf32>
    %250 = vector.broadcast %243 : vector<1x8x1x1xf32> to vector<2x8x16x16xf32>
    %251 = arith.addf %250, %249 : vector<2x8x16x16xf32>
    %252 = vector.extract_strided_slice %240 {offsets = [0, 1], sizes = [8, 1], strides = [1, 1]} : vector<8x8xf32> to vector<8x1xf32>
    %253 = vector.shape_cast %252 : vector<8x1xf32> to vector<1x8x1x1xf32>
    %254 = vector.extract_strided_slice %238 {offsets = [0, 1, 0, 0], sizes = [2, 1, 16, 16], strides = [1, 1, 1, 1]} : vector<2x8x16x16xf32> to vector<2x1x16x16xf32>
    %255 = vector.broadcast %253 : vector<1x8x1x1xf32> to vector<2x8x16x16xf32>
    %256 = vector.broadcast %254 : vector<2x1x16x16xf32> to vector<2x8x16x16xf32>
    %257 = arith.mulf %255, %256 : vector<2x8x16x16xf32>
    %258 = arith.addf %251, %257 : vector<2x8x16x16xf32>
    %259 = vector.extract_strided_slice %240 {offsets = [0, 2], sizes = [8, 1], strides = [1, 1]} : vector<8x8xf32> to vector<8x1xf32>
    %260 = vector.shape_cast %259 : vector<8x1xf32> to vector<1x8x1x1xf32>
    %261 = vector.extract_strided_slice %238 {offsets = [0, 2, 0, 0], sizes = [2, 1, 16, 16], strides = [1, 1, 1, 1]} : vector<2x8x16x16xf32> to vector<2x1x16x16xf32>
    %262 = vector.broadcast %260 : vector<1x8x1x1xf32> to vector<2x8x16x16xf32>
    %263 = vector.broadcast %261 : vector<2x1x16x16xf32> to vector<2x8x16x16xf32>
    %264 = arith.mulf %262, %263 : vector<2x8x16x16xf32>
    %265 = arith.addf %258, %264 : vector<2x8x16x16xf32>
    %266 = vector.extract_strided_slice %240 {offsets = [0, 3], sizes = [8, 1], strides = [1, 1]} : vector<8x8xf32> to vector<8x1xf32>
    %267 = vector.shape_cast %266 : vector<8x1xf32> to vector<1x8x1x1xf32>
    %268 = vector.extract_strided_slice %238 {offsets = [0, 3, 0, 0], sizes = [2, 1, 16, 16], strides = [1, 1, 1, 1]} : vector<2x8x16x16xf32> to vector<2x1x16x16xf32>
    %269 = vector.broadcast %267 : vector<1x8x1x1xf32> to vector<2x8x16x16xf32>
    %270 = vector.broadcast %268 : vector<2x1x16x16xf32> to vector<2x8x16x16xf32>
    %271 = arith.mulf %269, %270 : vector<2x8x16x16xf32>
    %272 = arith.addf %265, %271 : vector<2x8x16x16xf32>
    %273 = vector.extract_strided_slice %240 {offsets = [0, 4], sizes = [8, 1], strides = [1, 1]} : vector<8x8xf32> to vector<8x1xf32>
    %274 = vector.shape_cast %273 : vector<8x1xf32> to vector<1x8x1x1xf32>
    %275 = vector.extract_strided_slice %238 {offsets = [0, 4, 0, 0], sizes = [2, 1, 16, 16], strides = [1, 1, 1, 1]} : vector<2x8x16x16xf32> to vector<2x1x16x16xf32>
    %276 = vector.broadcast %274 : vector<1x8x1x1xf32> to vector<2x8x16x16xf32>
    %277 = vector.broadcast %275 : vector<2x1x16x16xf32> to vector<2x8x16x16xf32>
    %278 = arith.mulf %276, %277 : vector<2x8x16x16xf32>
    %279 = arith.addf %272, %278 : vector<2x8x16x16xf32>
    %280 = vector.extract_strided_slice %240 {offsets = [0, 5], sizes = [8, 1], strides = [1, 1]} : vector<8x8xf32> to vector<8x1xf32>
    %281 = vector.shape_cast %280 : vector<8x1xf32> to vector<1x8x1x1xf32>
    %282 = vector.extract_strided_slice %238 {offsets = [0, 5, 0, 0], sizes = [2, 1, 16, 16], strides = [1, 1, 1, 1]} : vector<2x8x16x16xf32> to vector<2x1x16x16xf32>
    %283 = vector.broadcast %281 : vector<1x8x1x1xf32> to vector<2x8x16x16xf32>
    %284 = vector.broadcast %282 : vector<2x1x16x16xf32> to vector<2x8x16x16xf32>
    %285 = arith.mulf %283, %284 : vector<2x8x16x16xf32>
    %286 = arith.addf %279, %285 : vector<2x8x16x16xf32>
    %287 = vector.extract_strided_slice %240 {offsets = [0, 6], sizes = [8, 1], strides = [1, 1]} : vector<8x8xf32> to vector<8x1xf32>
    %288 = vector.shape_cast %287 : vector<8x1xf32> to vector<1x8x1x1xf32>
    %289 = vector.extract_strided_slice %238 {offsets = [0, 6, 0, 0], sizes = [2, 1, 16, 16], strides = [1, 1, 1, 1]} : vector<2x8x16x16xf32> to vector<2x1x16x16xf32>
    %290 = vector.broadcast %288 : vector<1x8x1x1xf32> to vector<2x8x16x16xf32>
    %291 = vector.broadcast %289 : vector<2x1x16x16xf32> to vector<2x8x16x16xf32>
    %292 = arith.mulf %290, %291 : vector<2x8x16x16xf32>
    %293 = arith.addf %286, %292 : vector<2x8x16x16xf32>
    %294 = vector.extract_strided_slice %240 {offsets = [0, 7], sizes = [8, 1], strides = [1, 1]} : vector<8x8xf32> to vector<8x1xf32>
    %295 = vector.shape_cast %294 : vector<8x1xf32> to vector<1x8x1x1xf32>
    %296 = vector.extract_strided_slice %238 {offsets = [0, 7, 0, 0], sizes = [2, 1, 16, 16], strides = [1, 1, 1, 1]} : vector<2x8x16x16xf32> to vector<2x1x16x16xf32>
    %297 = vector.broadcast %295 : vector<1x8x1x1xf32> to vector<2x8x16x16xf32>
    %298 = vector.broadcast %296 : vector<2x1x16x16xf32> to vector<2x8x16x16xf32>
    %299 = arith.mulf %297, %298 : vector<2x8x16x16xf32>
    %300 = arith.addf %293, %299 : vector<2x8x16x16xf32>
    %c2_32 = arith.constant 2 : index
    %c0_33 = arith.constant 0 : index
    %c0_34 = arith.constant 0 : index
    %301 = vector.load %arg2[%c2_32, %c0_33, %c0_34] : memref<3x16x16xf32, #tpu.memory_space<vmem>>, vector<1x16x16xf32>
    %302 = vector.shape_cast %301 : vector<1x16x16xf32> to vector<16x16xf32>
    %303 = vector.shape_cast %302 : vector<16x16xf32> to vector<1x1x16x16xf32>
    %304 = vector.broadcast %303 : vector<1x1x16x16xf32> to vector<2x8x16x16xf32>
    %305 = arith.addf %300, %304 : vector<2x8x16x16xf32>
    %306 = vector.extract_strided_slice %69 {offsets = [0, 16, 0, 0], sizes = [2, 8, 8, 16], strides = [1, 1, 1, 1]} : vector<2x24x8x16xf32> to vector<2x8x8x16xf32>
    %307 = vector.shape_cast %306 : vector<2x8x8x16xf32> to vector<16x8x16xf32>
    %308 = vector.shape_cast %305 : vector<2x8x16x16xf32> to vector<16x16x16xf32>
    "tpu.trace_start"() <{level = 10 : i32, message = "btv,buv->btu"}> : () -> ()
    %cst_35 = arith.constant dense<0.000000e+00> : vector<16x8x16xf32>
    %309 = tpu.matmul %307, %308, %cst_35 {dimension_numbers = #tpu.dot_dimension_numbers<[2], [2], [1], [1], [0, 0, 0, 1, 1, 1], [0], [0]>} : vector<16x8x16xf32>, vector<16x16x16xf32>, vector<16x8x16xf32> -> vector<16x8x16xf32>
    "tpu.trace_stop"() : () -> ()
    %310 = arith.addf %230, %309 : vector<16x8x16xf32>
    %311 = vector.shape_cast %310 : vector<16x8x16xf32> to vector<2x8x128xf32>
    %c0_36 = arith.constant 0 : index
    %c0_37 = arith.constant 0 : index
    %312 = vector.load %arg9[%c0_36, %c0_37] : memref<4x8xf32, #tpu.memory_space<vmem>>, vector<4x8xf32>
    %313 = vector.extract_strided_slice %312 {offsets = [0, 0], sizes = [1, 8], strides = [1, 1]} : vector<4x8xf32> to vector<1x8xf32>
    %314 = vector.shape_cast %313 : vector<1x8xf32> to vector<8xf32>
    %315 = vector.shape_cast %314 : vector<8xf32> to vector<1x8x1xf32>
    %316 = vector.broadcast %315 : vector<1x8x1xf32> to vector<2x8x128xf32>
    %317 = arith.mulf %311, %316 : vector<2x8x128xf32>
    %318 = vector.extract_strided_slice %312 {offsets = [1, 0], sizes = [1, 8], strides = [1, 1]} : vector<4x8xf32> to vector<1x8xf32>
    %319 = vector.shape_cast %318 : vector<1x8xf32> to vector<8xf32>
    %320 = vector.shape_cast %319 : vector<8xf32> to vector<1x8x1xf32>
    %321 = vector.broadcast %320 : vector<1x8x1xf32> to vector<2x8x128xf32>
    %322 = arith.addf %317, %321 : vector<2x8x128xf32>
    %323 = vector.extract_strided_slice %67 {offsets = [0, 24, 0], sizes = [2, 8, 128], strides = [1, 1, 1]} : vector<2x32x128xf32> to vector<2x8x128xf32>
    %324 = vector.extract_strided_slice %312 {offsets = [2, 0], sizes = [1, 8], strides = [1, 1]} : vector<4x8xf32> to vector<1x8xf32>
    %325 = vector.shape_cast %324 : vector<1x8xf32> to vector<8xf32>
    %326 = vector.shape_cast %325 : vector<8xf32> to vector<1x8x1xf32>
    %327 = vector.broadcast %326 : vector<1x8x1xf32> to vector<2x8x128xf32>
    %328 = arith.mulf %323, %327 : vector<2x8x128xf32>
    %329 = vector.extract_strided_slice %312 {offsets = [3, 0], sizes = [1, 8], strides = [1, 1]} : vector<4x8xf32> to vector<1x8xf32>
    %330 = vector.shape_cast %329 : vector<1x8xf32> to vector<8xf32>
    %331 = vector.shape_cast %330 : vector<8xf32> to vector<1x8x1xf32>
    %332 = vector.broadcast %331 : vector<1x8x1xf32> to vector<2x8x128xf32>
    %333 = arith.addf %328, %332 : vector<2x8x128xf32>
    %334 = arith.addf %322, %333 : vector<2x8x128xf32>
    %cst_38 = arith.constant 0.000000e+00 : f32
    %335 = vector.broadcast %cst_38 : f32 to vector<2x8x128xf32>
    %336 = arith.maximumf %334, %335 : vector<2x8x128xf32>
    %c0_39 = arith.constant 0 : index
    %c0_40 = arith.constant 0 : index
    %c0_41 = arith.constant 0 : index
    %337 = vector.load %arg10[%c0_39, %c0_40, %c0_41] : memref<2x8x128xf32, #tpu.memory_space<vmem>>, vector<2x8x128xf32>
    tpu.vector_store %arg10[%c0_39, %c0_40, %c0_41], %336 {strides = array<i32>} : memref<2x8x128xf32, #tpu.memory_space<vmem>>, vector<2x8x128xf32>,
    return
  }
  func.func @transform_0(%arg0: i32) -> (i32, i32, i32) {
    %c0_i32 = arith.constant 0 : i32
    %c0_i32_0 = arith.constant 0 : i32
    %c0_i32_1 = arith.constant 0 : i32
    return %arg0, %c0_i32, %c0_i32_0 : i32, i32, i32
  }
  func.func @transform_1(%arg0: i32) -> (i32, i32, i32) {
    %c0_i32 = arith.constant 0 : i32
    %c0_i32_0 = arith.constant 0 : i32
    %c0_i32_1 = arith.constant 0 : i32
    %c0_i32_2 = arith.constant 0 : i32
    return %c0_i32, %c0_i32_0, %c0_i32_1 : i32, i32, i32
  }
  func.func @transform_2(%arg0: i32) -> (i32, i32) {
    %c0_i32 = arith.constant 0 : i32
    %c0_i32_0 = arith.constant 0 : i32
    %c0_i32_1 = arith.constant 0 : i32
    return %c0_i32, %c0_i32_0 : i32, i32
  }
  func.func @transform_3(%arg0: i32) -> (i32, i32) {
    %c0_i32 = arith.constant 0 : i32
    %c0_i32_0 = arith.constant 0 : i32
    %c0_i32_1 = arith.constant 0 : i32
    return %c0_i32, %c0_i32_0 : i32, i32
  }
  func.func @transform_4(%arg0: i32) -> (i32, i32) {
    %c0_i32 = arith.constant 0 : i32
    %c0_i32_0 = arith.constant 0 : i32
    %c0_i32_1 = arith.constant 0 : i32
    return %c0_i32, %c0_i32_0 : i32, i32
  }
  func.func @transform_5(%arg0: i32) -> (i32, i32) {
    %c0_i32 = arith.constant 0 : i32
    %c0_i32_0 = arith.constant 0 : i32
    %c0_i32_1 = arith.constant 0 : i32
    return %c0_i32, %c0_i32_0 : i32, i32
  }
  func.func @transform_6(%arg0: i32) -> (i32, i32, i32) {
    %c0_i32 = arith.constant 0 : i32
    %c0_i32_0 = arith.constant 0 : i32
    %c0_i32_1 = arith.constant 0 : i32
    %c0_i32_2 = arith.constant 0 : i32
    return %c0_i32, %c0_i32_0, %c0_i32_1 : i32, i32, i32
  }
  func.func @transform_7(%arg0: i32) -> (i32, i32) {
    %c0_i32 = arith.constant 0 : i32
    %c0_i32_0 = arith.constant 0 : i32
    %c0_i32_1 = arith.constant 0 : i32
    return %c0_i32, %c0_i32_0 : i32, i32
  }
  func.func @transform_8(%arg0: i32) -> (i32, i32) {
    %c0_i32 = arith.constant 0 : i32
    %c0_i32_0 = arith.constant 0 : i32
    %c0_i32_1 = arith.constant 0 : i32
    return %c0_i32, %c0_i32_0 : i32, i32
  }
  func.func @transform_9(%arg0: i32) -> (i32, i32, i32) {
    %c0_i32 = arith.constant 0 : i32
    %c0_i32_0 = arith.constant 0 : i32
    %c0_i32_1 = arith.constant 0 : i32
    return %arg0, %c0_i32, %c0_i32_0 : i32, i32, i32
  }
}

</mosaic_0001>

<llo_original>
// kernel: tpu_custom_call.1
$region0: #{tpu_custom_call.1}
  #allocation0 [shape = 'u32[]', space=smem, size = 0x4, offset = 0x4, fixed_abs, tag = 'smem constant byte address 0x4 - core index']
  #allocation1 [shape = 'u32[72,128]{1,0:T(1,128)}', space=vmem, size = 0x9000, scoped, tag = 'internal scratch']
  %s0 = inlined_call_operand.vmem [shape: f32[4,3,128], index: 0, kind: input, shape index: {}]
  %s1 = inlined_call_operand.vmem [shape: f32[3,16,16], index: 1, kind: input, shape index: {}]
  %s2 = inlined_call_operand.vmem [shape: f32[48,3], index: 2, kind: input, shape index: {}]
  %s3 = inlined_call_operand.vmem [shape: f32[48,1], index: 3, kind: input, shape index: {}]
  %s4 = inlined_call_operand.vmem [shape: f32[32,3], index: 4, kind: input, shape index: {}]
  %s5 = inlined_call_operand.vmem [shape: f32[32,1], index: 5, kind: input, shape index: {}]
  %s6 = inlined_call_operand.vmem [shape: f32[3,8,8], index: 6, kind: input, shape index: {}]
  %s7 = inlined_call_operand.vmem [shape: f32[3,8], index: 7, kind: input, shape index: {}]
  %s8 = inlined_call_operand.vmem [shape: f32[4,8], index: 8, kind: input, shape index: {}]
  %s9 = inlined_call_operand.hbm [shape: f32[4,8,128], index: 9, kind: output, shape index: {}]
  %s10 = sld [smem:[#allocation0]]
  $region69: #{tpu_custom_call.1} parent=0
    _
  %s12 = ssub.s32 1, %s10
  %s13 = scalar_select 0, %s12, %s10
  $region1: #{tpu_custom_call.1} parent=0
    #allocation2 [shape = 'u8[16384]{0}', space=vmem, size = 0x4000, scoped, tag = 'output window, operand 0']
    #allocation3 [shape = 's32[2]{0}', space=sflag, size = 0x8, scoped, tag = 'scoped memory for tpu_custom_call.1']
    %14 = vsyncpa [#allocation3], 0
    %s15 = scalar_lea.sflag [#allocation3], 1
    %16 = vsyncpa %s15, 0
    loop: start=0, step=1, limit=4
    $region2: #{tpu_custom_call.1} parent=1 // loop_pre_header
      _
    $region3: #{tpu_custom_call.1} parent=1 // loop_header
      %s18 = sphi 0, %s22
      %p19 = scmp.ge.s32.totalorder %s18, 4
      %s28 = sphi 0, %s30
      %s31 = sphi 0, %s28
      %s32 = sphi 0, %s31
      %s48 = sphi 0, %s32
      %s52 = sphi 0, %s52
      %s54 = sphi 0, %s52
      %s55 = sphi 0, %s54
      %s69 = sphi 0, %s55
      %s73 = sphi 0, %s73
      %s75 = sphi 0, %s73
      %s76 = sphi 0, %s75
      %s90 = sphi 0, %s76
      %s94 = sphi 0, %s94
      %s96 = sphi 0, %s94
      %s97 = sphi 0, %s96
      %s111 = sphi 0, %s97
      %s115 = sphi 0, %s115
      %s117 = sphi 0, %s115
      %s118 = sphi 0, %s117
      %s132 = sphi 0, %s118
      %s136 = sphi 0, %s136
      %s138 = sphi 0, %s136
      %s139 = sphi 0, %s138
      %s153 = sphi 0, %s139
      %s157 = sphi 0, %s157
      %s159 = sphi 0, %s157
      %s160 = sphi 0, %s159
      %s174 = sphi 0, %s160
      %s178 = sphi 0, %s178
      %s180 = sphi 0, %s178
      %s181 = sphi 0, %s180
      %s195 = sphi 0, %s181
      %s199 = sphi 0, %s199
      %s201 = sphi 0, %s199
      %s202 = sphi 0, %s201
      %s216 = sphi 0, %s202
      %s222 = sphi 0, %s224
      %s225 = sphi 0, %s222
      %s226 = sphi 0, %s225
      %s242 = sphi 0, %s226
    $region4: #{tpu_custom_call.1} parent=1 // loop_header_branch
      %21 = sbr.rel (%p19) target = $region8
    $region5: #{tpu_custom_call.1} parent=1 // loop_body
      %s23 = ssub.s32 %s18, 1
      %s24 = ssub.s32 %s18, 2
      %s25 = sadd.s32 %s18, 1
      %s26 = ssub.s32 %s18, %s25
      %p27 = scmp.eq.s32.totalorder %s26, 0
      %s29 = sadd.s32 %s28, 1
      %s30 = scalar_select %p27, %s28, %s29
      %p33 = pneg %p27
      %p34 = scmp.eq.s32.totalorder %s18, 1
      %p35 = por %p33, %p34
      %p36 = scmp.ne.s32.totalorder %s28, %s31
      %p37 = scmp.eq.s32.totalorder %s18, 0
      %p38 = por %p36, %p37
      %p39 = scmp.ne.s32.totalorder %s28, %s31
      %p40 = scmp.eq.s32.totalorder %s23, 1
      %p41 = por %p39, %p40
      %p42 = scmp.ne.s32.totalorder %s31, %s32
      %p43 = scmp.eq.s32.totalorder %s23, 0
      %p44 = por %p42, %p43
      %p45 = scmp.ne.s32.totalorder %s31, %s32
      %p46 = scmp.eq.s32.totalorder %s24, 1
      %p47 = por %p45, %p46
      %p49 = scmp.ne.s32.totalorder %s32, %s48
      %p50 = scmp.eq.s32.totalorder %s24, 0
      %p51 = por %p49, %p50
      %s53 = sadd.s32 %s52, 1
      %p56 = scmp.eq.s32.totalorder %s18, 1
      %p57 = scmp.ne.s32.totalorder %s52, %s54
      %p58 = scmp.eq.s32.totalorder %s18, 0
      %p59 = por %p57, %p58
      %p60 = scmp.ne.s32.totalorder %s52, %s54
      %p61 = scmp.eq.s32.totalorder %s23, 1
      %p62 = por %p60, %p61
      %p63 = scmp.ne.s32.totalorder %s54, %s55
      %p64 = scmp.eq.s32.totalorder %s23, 0
      %p65 = por %p63, %p64
      %p66 = scmp.ne.s32.totalorder %s54, %s55
      %p67 = scmp.eq.s32.totalorder %s24, 1
      %p68 = por %p66, %p67
      %p70 = scmp.ne.s32.totalorder %s55, %s69
      %p71 = scmp.eq.s32.totalorder %s24, 0
      %p72 = por %p70, %p71
      %s74 = sadd.s32 %s73, 1
      %p77 = scmp.eq.s32.totalorder %s18, 1
      %p78 = scmp.ne.s32.totalorder %s73, %s75
      %p79 = scmp.eq.s32.totalorder %s18, 0
      %p80 = por %p78, %p79
      %p81 = scmp.ne.s32.totalorder %s73, %s75
      %p82 = scmp.eq.s32.totalorder %s23, 1
      %p83 = por %p81, %p82
      %p84 = scmp.ne.s32.totalorder %s75, %s76
      %p85 = scmp.eq.s32.totalorder %s23, 0
      %p86 = por %p84, %p85
      %p87 = scmp.ne.s32.totalorder %s75, %s76
      %p88 = scmp.eq.s32.totalorder %s24, 1
      %p89 = por %p87, %p88
      %p91 = scmp.ne.s32.totalorder %s76, %s90
      %p92 = scmp.eq.s32.totalorder %s24, 0
      %p93 = por %p91, %p92
      %s95 = sadd.s32 %s94, 1
      %p98 = scmp.eq.s32.totalorder %s18, 1
      %p99 = scmp.ne.s32.totalorder %s94, %s96
      %p100 = scmp.eq.s32.totalorder %s18, 0
      %p101 = por %p99, %p100
      %p102 = scmp.ne.s32.totalorder %s94, %s96
      %p103 = scmp.eq.s32.totalorder %s23, 1
      %p104 = por %p102, %p103
      %p105 = scmp.ne.s32.totalorder %s96, %s97
      %p106 = scmp.eq.s32.totalorder %s23, 0
      %p107 = por %p105, %p106
      %p108 = scmp.ne.s32.totalorder %s96, %s97
      %p109 = scmp.eq.s32.totalorder %s24, 1
      %p110 = por %p108, %p109
      %p112 = scmp.ne.s32.totalorder %s97, %s111
      %p113 = scmp.eq.s32.totalorder %s24, 0
      %p114 = por %p112, %p113
      %s116 = sadd.s32 %s115, 1
      %p119 = scmp.eq.s32.totalorder %s18, 1
      %p120 = scmp.ne.s32.totalorder %s115, %s117
      %p121 = scmp.eq.s32.totalorder %s18, 0
      %p122 = por %p120, %p121
      %p123 = scmp.ne.s32.totalorder %s115, %s117
      %p124 = scmp.eq.s32.totalorder %s23, 1
      %p125 = por %p123, %p124
      %p126 = scmp.ne.s32.totalorder %s117, %s118
      %p127 = scmp.eq.s32.totalorder %s23, 0
      %p128 = por %p126, %p127
      %p129 = scmp.ne.s32.totalorder %s117, %s118
      %p130 = scmp.eq.s32.totalorder %s24, 1
      %p131 = por %p129, %p130
      %p133 = scmp.ne.s32.totalorder %s118, %s132
      %p134 = scmp.eq.s32.totalorder %s24, 0
      %p135 = por %p133, %p134
      %s137 = sadd.s32 %s136, 1
      %p140 = scmp.eq.s32.totalorder %s18, 1
      %p141 = scmp.ne.s32.totalorder %s136, %s138
      %p142 = scmp.eq.s32.totalorder %s18, 0
      %p143 = por %p141, %p142
      %p144 = scmp.ne.s32.totalorder %s136, %s138
      %p145 = scmp.eq.s32.totalorder %s23, 1
      %p146 = por %p144, %p145
      %p147 = scmp.ne.s32.totalorder %s138, %s139
      %p148 = scmp.eq.s32.totalorder %s23, 0
      %p149 = por %p147, %p148
      %p150 = scmp.ne.s32.totalorder %s138, %s139
      %p151 = scmp.eq.s32.totalorder %s24, 1
      %p152 = por %p150, %p151
      %p154 = scmp.ne.s32.totalorder %s139, %s153
      %p155 = scmp.eq.s32.totalorder %s24, 0
      %p156 = por %p154, %p155
      %s158 = sadd.s32 %s157, 1
      %p161 = scmp.eq.s32.totalorder %s18, 1
      %p162 = scmp.ne.s32.totalorder %s157, %s159
      %p163 = scmp.eq.s32.totalorder %s18, 0
      %p164 = por %p162, %p163
      %p165 = scmp.ne.s32.totalorder %s157, %s159
      %p166 = scmp.eq.s32.totalorder %s23, 1
      %p167 = por %p165, %p166
      %p168 = scmp.ne.s32.totalorder %s159, %s160
      %p169 = scmp.eq.s32.totalorder %s23, 0
      %p170 = por %p168, %p169
      %p171 = scmp.ne.s32.totalorder %s159, %s160
      %p172 = scmp.eq.s32.totalorder %s24, 1
      %p173 = por %p171, %p172
      %p175 = scmp.ne.s32.totalorder %s160, %s174
      %p176 = scmp.eq.s32.totalorder %s24, 0
      %p177 = por %p175, %p176
      %s179 = sadd.s32 %s178, 1
      %p182 = scmp.eq.s32.totalorder %s18, 1
      %p183 = scmp.ne.s32.totalorder %s178, %s180
      %p184 = scmp.eq.s32.totalorder %s18, 0
      %p185 = por %p183, %p184
      %p186 = scmp.ne.s32.totalorder %s178, %s180
      %p187 = scmp.eq.s32.totalorder %s23, 1
      %p188 = por %p186, %p187
      %p189 = scmp.ne.s32.totalorder %s180, %s181
      %p190 = scmp.eq.s32.totalorder %s23, 0
      %p191 = por %p189, %p190
      %p192 = scmp.ne.s32.totalorder %s180, %s181
      %p193 = scmp.eq.s32.totalorder %s24, 1
      %p194 = por %p192, %p193
      %p196 = scmp.ne.s32.totalorder %s181, %s195
      %p197 = scmp.eq.s32.totalorder %s24, 0
      %p198 = por %p196, %p197
      %s200 = sadd.s32 %s199, 1
      %p203 = scmp.eq.s32.totalorder %s18, 1
      %p204 = scmp.ne.s32.totalorder %s199, %s201
      %p205 = scmp.eq.s32.totalorder %s18, 0
      %p206 = por %p204, %p205
      %p207 = scmp.ne.s32.totalorder %s199, %s201
      %p208 = scmp.eq.s32.totalorder %s23, 1
      %p209 = por %p207, %p208
      %p210 = scmp.ne.s32.totalorder %s201, %s202
      %p211 = scmp.eq.s32.totalorder %s23, 0
      %p212 = por %p210, %p211
      %p213 = scmp.ne.s32.totalorder %s201, %s202
      %p214 = scmp.eq.s32.totalorder %s24, 1
      %p215 = por %p213, %p214
      %p217 = scmp.ne.s32.totalorder %s202, %s216
      %p218 = scmp.eq.s32.totalorder %s24, 0
      %p219 = por %p217, %p218
      %s220 = ssub.s32 %s18, %s25
      %p221 = scmp.eq.s32.totalorder %s220, 0
      %s223 = sadd.s32 %s222, 1
      %s224 = scalar_select %p221, %s222, %s223
      %p227 = pneg %p221
      %p228 = scmp.eq.s32.totalorder %s18, 1
      %p229 = por %p227, %p228
      %p230 = scmp.ne.s32.totalorder %s222, %s225
      %p231 = scmp.eq.s32.totalorder %s18, 0
      %p232 = por %p230, %p231
      %p233 = scmp.ne.s32.totalorder %s222, %s225
      %p234 = scmp.eq.s32.totalorder %s23, 1
      %p235 = por %p233, %p234
      %p236 = scmp.ne.s32.totalorder %s225, %s226
      %p237 = scmp.eq.s32.totalorder %s23, 0
      %p238 = por %p236, %p237
      %p239 = scmp.ne.s32.totalorder %s225, %s226
      %p240 = scmp.eq.s32.totalorder %s24, 1
      %p241 = por %p239, %p240
      %p243 = scmp.ne.s32.totalorder %s226, %s242
      %p244 = scmp.eq.s32.totalorder %s24, 0
      %p245 = por %p243, %p244
      %p246 = scmp.le.s32.totalorder 1, %s18
      %p247 = scmp.lt.s32.totalorder %s18, 3
      %p248 = pnand %p246, %p247
      %p249 = pneg %p248
      // Predicated region
      $region9: #{tpu_custom_call.1} parent=5 // pred_check
        _
      $region10: #{tpu_custom_call.1} parent=5 // pred_check_branch
        %251 = sbr.rel (%p248) target = $region12
      $region11: #{tpu_custom_call.1} parent=5 // pred_region
        %s252 = ssub.s32 %s18, 1
        // Predicated region
        $region13: #{tpu_custom_call.1} parent=11 // pred_check
          %p253 = pneg %p65
        $region14: #{tpu_custom_call.1} parent=11 // pred_check_branch
          %255 = sbr.rel (%p253) target = $region16
        $region15: #{tpu_custom_call.1} parent=11 // pred_region
          _
        $region16: #{tpu_custom_call.1} parent=11 // pred_fallthru
          _
        // Predicated region
        $region17: #{tpu_custom_call.1} parent=11 // pred_check
          %p256 = pneg %p86
        $region18: #{tpu_custom_call.1} parent=11 // pred_check_branch
          %258 = sbr.rel (%p256) target = $region20
        $region19: #{tpu_custom_call.1} parent=11 // pred_region
          _
        $region20: #{tpu_custom_call.1} parent=11 // pred_fallthru
          _
        // Predicated region
        $region21: #{tpu_custom_call.1} parent=11 // pred_check
          %p259 = pneg %p107
        $region22: #{tpu_custom_call.1} parent=11 // pred_check_branch
          %261 = sbr.rel (%p259) target = $region24
        $region23: #{tpu_custom_call.1} parent=11 // pred_region
          _
        $region24: #{tpu_custom_call.1} parent=11 // pred_fallthru
          _
        // Predicated region
        $region25: #{tpu_custom_call.1} parent=11 // pred_check
          %p262 = pneg %p128
        $region26: #{tpu_custom_call.1} parent=11 // pred_check_branch
          %264 = sbr.rel (%p262) target = $region28
        $region27: #{tpu_custom_call.1} parent=11 // pred_region
          _
        $region28: #{tpu_custom_call.1} parent=11 // pred_fallthru
          _
        // Predicated region
        $region29: #{tpu_custom_call.1} parent=11 // pred_check
          %p265 = pneg %p149
        $region30: #{tpu_custom_call.1} parent=11 // pred_check_branch
          %267 = sbr.rel (%p265) target = $region32
        $region31: #{tpu_custom_call.1} parent=11 // pred_region
          _
        $region32: #{tpu_custom_call.1} parent=11 // pred_fallthru
          _
        // Predicated region
        $region33: #{tpu_custom_call.1} parent=11 // pred_check
          %p268 = pneg %p170
        $region34: #{tpu_custom_call.1} parent=11 // pred_check_branch
          %270 = sbr.rel (%p268) target = $region36
        $region35: #{tpu_custom_call.1} parent=11 // pred_region
          _
        $region36: #{tpu_custom_call.1} parent=11 // pred_fallthru
          _
        // Predicated region
        $region37: #{tpu_custom_call.1} parent=11 // pred_check
          %p271 = pneg %p191
        $region38: #{tpu_custom_call.1} parent=11 // pred_check_branch
          %273 = sbr.rel (%p271) target = $region40
        $region39: #{tpu_custom_call.1} parent=11 // pred_region
          _
        $region40: #{tpu_custom_call.1} parent=11 // pred_fallthru
          _
        // Predicated region
        $region41: #{tpu_custom_call.1} parent=11 // pred_check
          %p274 = pneg %p212
        $region42: #{tpu_custom_call.1} parent=11 // pred_check_branch
          %276 = sbr.rel (%p274) target = $region44
        $region43: #{tpu_custom_call.1} parent=11 // pred_region
          _
        $region44: #{tpu_custom_call.1} parent=11 // pred_fallthru
          _
      $region12: #{tpu_custom_call.1} parent=5 // pred_fallthru
        _
      %p277 = scmp.lt.s32.totalorder %s18, 2
      // Predicated region
      $region45: #{tpu_custom_call.1} parent=5 // pred_check
        %p278 = pneg %p277
      $region46: #{tpu_custom_call.1} parent=5 // pred_check_branch
        %280 = sbr.rel (%p278) target = $region48
      $region47: #{tpu_custom_call.1} parent=5 // pred_region
        // Predicated region
        $region49: #{tpu_custom_call.1} parent=47 // pred_check
          %p281 = pneg %p38
        $region50: #{tpu_custom_call.1} parent=47 // pred_check_branch
          %283 = sbr.rel (%p281) target = $region52
        $region51: #{tpu_custom_call.1} parent=47 // pred_region
          %s284 = smul.u32 2, %s18
          %p285 = scmp.lt.s32.totalorder %s284, 3
          %s286 = scalar_select %p285, %s284, 3
          %s287 = smul.addr %s286, 4
          %s288 = scalar_lea.vmem %s0, %s287
          %s289 = smul.u32 2, %s18
        $region52: #{tpu_custom_call.1} parent=47 // pred_fallthru
          _
      $region48: #{tpu_custom_call.1} parent=5 // pred_fallthru
        _
      %p290 = scmp.le.s32.totalorder 1, %s18
      %p291 = scmp.lt.s32.totalorder %s18, 3
      %p292 = pnand %p290, %p291
      %p293 = pneg %p292
      // Predicated region
      $region53: #{tpu_custom_call.1} parent=5 // pred_check
        _
      $region54: #{tpu_custom_call.1} parent=5 // pred_check_branch
        %295 = sbr.rel (%p292) target = $region56
      $region55: #{tpu_custom_call.1} parent=5 // pred_region
        %s296 = ssub.s32 %s18, 1
        %s297 = smul.u32 2, %s23
        %p298 = scmp.lt.s32.totalorder %s297, 3
        %s299 = scalar_select %p298, %s297, 3
        %s300 = smul.addr %s299, 4
        %s301 = scalar_lea.vmem %s0, %s300
        %p302 = pneg %p44
        %p303 = pneg %p41
        %p304 = pneg %p65
        %p305 = pneg %p62
        %p306 = pneg %p86
        %p307 = pneg %p83
        %p308 = pneg %p107
        %p309 = pneg %p104
        %p310 = pneg %p128
        %p311 = pneg %p125
        %p312 = pneg %p149
        %p313 = pneg %p146
        %p314 = pneg %p170
        %p315 = pneg %p167
        %p316 = pneg %p191
        %p317 = pneg %p188
        %p318 = pneg %p212
        %p319 = pneg %p209
        %p320 = pneg %p238
        %p321 = pneg %p235
        %s322 = sand.u32 %s225, 1
        %s323 = scalar_lea.sflag [#allocation3], %s322
        %s324 = sand.u32 %s225, 1
        %s325 = smul.addr %s324, 16
        %s326 = scalar_lea.vmem [#allocation2], %s325
        %s327 = smul.u32 2, %s23
        %p328 = scmp.lt.s32.totalorder %s327, 3
        %s329 = scalar_select %p328, %s327, 3
        %s330 = smul.addr %s329, 4
        %s331 = scalar_lea.vmem %s0, %s330
        %s332 = smul.u32 2, %s23
        %s333 = smul.u32 2, %s23
        %v334 = vld [vmem:[%s331] sm:$0x7]
        %v335 = vld [vmem:[%s331 + $0x4] sm:$0x7]
        %338 = vrot.lane.b32.xlu0 %v334, 112
        %v339 = vpop.permute.xlu0 %338
        %340 = vrot.lane.b32.xlu0 %v335, 112
        %v341 = vpop.permute.xlu0 %340
        %v344 = vadd.f32 %v334, %v339
        %v345 = vadd.f32 %v335, %v341
        %346 = vrot.lane.b32.xlu0 %v334, 96
        %v347 = vpop.permute.xlu0 %346
        %348 = vrot.lane.b32.xlu0 %v335, 96
        %v349 = vpop.permute.xlu0 %348
        %v352 = vadd.f32 %v344, %v347
        %v353 = vadd.f32 %v345, %v349
        %354 = vrot.lane.b32.xlu0 %v334, 80
        %v355 = vpop.permute.xlu0 %354
        %356 = vrot.lane.b32.xlu0 %v335, 80
        %v357 = vpop.permute.xlu0 %356
        %v360 = vadd.f32 %v352, %v355
        %v361 = vadd.f32 %v353, %v357
        %362 = vrot.lane.b32.xlu0 %v334, 64
        %v363 = vpop.permute.xlu0 %362
        %364 = vrot.lane.b32.xlu0 %v335, 64
        %v365 = vpop.permute.xlu0 %364
        %v368 = vadd.f32 %v360, %v363
        %v369 = vadd.f32 %v361, %v365
        %370 = vrot.lane.b32.xlu0 %v334, 48
        %v371 = vpop.permute.xlu0 %370
        %372 = vrot.lane.b32.xlu0 %v335, 48
        %v373 = vpop.permute.xlu0 %372
        %v376 = vadd.f32 %v368, %v371
        %v377 = vadd.f32 %v369, %v373
        %378 = vrot.lane.b32.xlu0 %v334, 32
        %v379 = vpop.permute.xlu0 %378
        %380 = vrot.lane.b32.xlu0 %v335, 32
        %v381 = vpop.permute.xlu0 %380
        %v384 = vadd.f32 %v376, %v379
        %v385 = vadd.f32 %v377, %v381
        %386 = vrot.lane.b32.xlu0 %v334, 16
        %v387 = vpop.permute.xlu0 %386
        %388 = vrot.lane.b32.xlu0 %v335, 16
        %v389 = vpop.permute.xlu0 %388
        %v392 = vadd.f32 %v384, %v387
        %v393 = vadd.f32 %v385, %v389
        %v394 = vmul.f32 %v392, 0.125
        %v395 = vmul.f32 %v393, 0.125
        %v396 = vld [vmem:[%s2] sm:$0xff]
        %v397 = vld [vmem:[%s2 + $0x8] sm:$0xff]
        %v398 = vld [vmem:[%s2 + $0x10] sm:$0xff]
        %v399 = vld [vmem:[%s2 + $0x18] sm:$0xff]
        %v400 = vld [vmem:[%s2 + $0x20] sm:$0xff]
        %v401 = vld [vmem:[%s2 + $0x28] sm:$0xff]
        %v402 = vld [vmem:[%s3] sm:$0xff]
        %v403 = vld [vmem:[%s3 + $0x8] sm:$0xff]
        %v404 = vld [vmem:[%s3 + $0x10] sm:$0xff]
        %v405 = vld [vmem:[%s3 + $0x18] sm:$0xff]
        %v406 = vld [vmem:[%s3 + $0x20] sm:$0xff]
        %v407 = vld [vmem:[%s3 + $0x28] sm:$0xff]
        %409 = vset.pattern.permute.xlu0 0
        %410 = vperm.xlu0 %409, %v396
        %v411 = vpop.permute.xlu0 %410
        %414 = vset.pattern.permute.xlu0 0
        %415 = vperm.xlu0 %414, %v397
        %v416 = vpop.permute.xlu0 %415
        %419 = vset.pattern.permute.xlu0 0
        %420 = vperm.xlu0 %419, %v398
        %v421 = vpop.permute.xlu0 %420
        %424 = vset.pattern.permute.xlu0 0
        %425 = vperm.xlu0 %424, %v399
        %v426 = vpop.permute.xlu0 %425
        %429 = vset.pattern.permute.xlu0 0
        %430 = vperm.xlu0 %429, %v400
        %v431 = vpop.permute.xlu0 %430
        %434 = vset.pattern.permute.xlu0 0
        %435 = vperm.xlu0 %434, %v401
        %v436 = vpop.permute.xlu0 %435
        %v438 = vperm.slane %v394, 0
        %v439 = vperm.slane %v395, 0
        %v440 = vmul.f32 %v411, %v438
        %v441 = vmul.f32 %v416, %v438
        %v442 = vmul.f32 %v421, %v438
        %v443 = vmul.f32 %v426, %v438
        %v444 = vmul.f32 %v431, %v438
        %v445 = vmul.f32 %v436, %v438
        %v446 = vmul.f32 %v411, %v439
        %v447 = vmul.f32 %v416, %v439
        %v448 = vmul.f32 %v421, %v439
        %v449 = vmul.f32 %v426, %v439
        %v450 = vmul.f32 %v431, %v439
        %v451 = vmul.f32 %v436, %v439
        %453 = vset.pattern.permute.xlu0 0
        %454 = vperm.xlu0 %453, %v402
        %v455 = vpop.permute.xlu0 %454
        %458 = vset.pattern.permute.xlu0 0
        %459 = vperm.xlu0 %458, %v403
        %v460 = vpop.permute.xlu0 %459
        %463 = vset.pattern.permute.xlu0 0
        %464 = vperm.xlu0 %463, %v404
        %v465 = vpop.permute.xlu0 %464
        %468 = vset.pattern.permute.xlu0 0
        %469 = vperm.xlu0 %468, %v405
        %v470 = vpop.permute.xlu0 %469
        %473 = vset.pattern.permute.xlu0 0
        %474 = vperm.xlu0 %473, %v406
        %v475 = vpop.permute.xlu0 %474
        %478 = vset.pattern.permute.xlu0 0
        %479 = vperm.xlu0 %478, %v407
        %v480 = vpop.permute.xlu0 %479
        %v482 = vadd.f32 %v455, %v440
        %v483 = vadd.f32 %v460, %v441
        %v484 = vadd.f32 %v465, %v442
        %v485 = vadd.f32 %v470, %v443
        %v486 = vadd.f32 %v475, %v444
        %v487 = vadd.f32 %v480, %v445
        %v488 = vadd.f32 %v455, %v446
        %v489 = vadd.f32 %v460, %v447
        %v490 = vadd.f32 %v465, %v448
        %v491 = vadd.f32 %v470, %v449
        %v492 = vadd.f32 %v475, %v450
        %v493 = vadd.f32 %v480, %v451
        %494 = vset.pattern.permute.xlu0 1
        %495 = vperm.xlu0 %494, %v396
        %v496 = vpop.permute.xlu0 %495
        %498 = vset.pattern.permute.xlu0 1
        %499 = vperm.xlu0 %498, %v397
        %v500 = vpop.permute.xlu0 %499
        %502 = vset.pattern.permute.xlu0 1
        %503 = vperm.xlu0 %502, %v398
        %v504 = vpop.permute.xlu0 %503
        %506 = vset.pattern.permute.xlu0 1
        %507 = vperm.xlu0 %506, %v399
        %v508 = vpop.permute.xlu0 %507
        %510 = vset.pattern.permute.xlu0 1
        %511 = vperm.xlu0 %510, %v400
        %v512 = vpop.permute.xlu0 %511
        %514 = vset.pattern.permute.xlu0 1
        %515 = vperm.xlu0 %514, %v401
        %v516 = vpop.permute.xlu0 %515
        %v518 = vperm.slane %v394, 1
        %v519 = vperm.slane %v395, 1
        %v520 = vmul.f32 %v496, %v518
        %v521 = vmul.f32 %v500, %v518
        %v522 = vmul.f32 %v504, %v518
        %v523 = vmul.f32 %v508, %v518
        %v524 = vmul.f32 %v512, %v518
        %v525 = vmul.f32 %v516, %v518
        %v526 = vmul.f32 %v496, %v519
        %v527 = vmul.f32 %v500, %v519
        %v528 = vmul.f32 %v504, %v519
        %v529 = vmul.f32 %v508, %v519
        %v530 = vmul.f32 %v512, %v519
        %v531 = vmul.f32 %v516, %v519
        %v532 = vadd.f32 %v482, %v520
        %v533 = vadd.f32 %v483, %v521
        %v534 = vadd.f32 %v484, %v522
        %v535 = vadd.f32 %v485, %v523
        %v536 = vadd.f32 %v486, %v524
        %v537 = vadd.f32 %v487, %v525
        %v538 = vadd.f32 %v488, %v526
        %v539 = vadd.f32 %v489, %v527
        %v540 = vadd.f32 %v490, %v528
        %v541 = vadd.f32 %v491, %v529
        %v542 = vadd.f32 %v492, %v530
        %v543 = vadd.f32 %v493, %v531
        %544 = vset.pattern.permute.xlu0 2
        %545 = vperm.xlu0 %544, %v396
        %v546 = vpop.permute.xlu0 %545
        %548 = vset.pattern.permute.xlu0 2
        %549 = vperm.xlu0 %548, %v397
        %v550 = vpop.permute.xlu0 %549
        %552 = vset.pattern.permute.xlu0 2
        %553 = vperm.xlu0 %552, %v398
        %v554 = vpop.permute.xlu0 %553
        %556 = vset.pattern.permute.xlu0 2
        %557 = vperm.xlu0 %556, %v399
        %v558 = vpop.permute.xlu0 %557
        %560 = vset.pattern.permute.xlu0 2
        %561 = vperm.xlu0 %560, %v400
        %v562 = vpop.permute.xlu0 %561
        %564 = vset.pattern.permute.xlu0 2
        %565 = vperm.xlu0 %564, %v401
        %v566 = vpop.permute.xlu0 %565
        %v568 = vperm.slane %v394, 2
        %v569 = vperm.slane %v395, 2
        %v570 = vmul.f32 %v546, %v568
        %v571 = vmul.f32 %v550, %v568
        %v572 = vmul.f32 %v554, %v568
        %v573 = vmul.f32 %v558, %v568
        %v574 = vmul.f32 %v562, %v568
        %v575 = vmul.f32 %v566, %v568
        %v576 = vmul.f32 %v546, %v569
        %v577 = vmul.f32 %v550, %v569
        %v578 = vmul.f32 %v554, %v569
        %v579 = vmul.f32 %v558, %v569
        %v580 = vmul.f32 %v562, %v569
        %v581 = vmul.f32 %v566, %v569
        %v582 = vadd.f32 %v532, %v570
        %v583 = vadd.f32 %v533, %v571
        %v584 = vadd.f32 %v534, %v572
        %v585 = vadd.f32 %v535, %v573
        %v586 = vadd.f32 %v536, %v574
        %v587 = vadd.f32 %v537, %v575
        %v588 = vadd.f32 %v538, %v576
        %v589 = vadd.f32 %v539, %v577
        %v590 = vadd.f32 %v540, %v578
        %v591 = vadd.f32 %v541, %v579
        %v592 = vadd.f32 %v542, %v580
        %v593 = vadd.f32 %v543, %v581
        %v594 = vld [vmem:[%s4] sm:$0xff]
        %v595 = vld [vmem:[%s4 + $0x8] sm:$0xff]
        %v596 = vld [vmem:[%s4 + $0x10] sm:$0xff]
        %v597 = vld [vmem:[%s4 + $0x18] sm:$0xff]
        %v598 = vld [vmem:[%s5] sm:$0xff]
        %v599 = vld [vmem:[%s5 + $0x8] sm:$0xff]
        %v600 = vld [vmem:[%s5 + $0x10] sm:$0xff]
        %v601 = vld [vmem:[%s5 + $0x18] sm:$0xff]
        %603 = vset.pattern.permute.xlu0 0
        %604 = vperm.xlu0 %603, %v594
        %v605 = vpop.permute.xlu0 %604
        %608 = vset.pattern.permute.xlu0 0
        %609 = vperm.xlu0 %608, %v595
        %v610 = vpop.permute.xlu0 %609
        %613 = vset.pattern.permute.xlu0 0
        %614 = vperm.xlu0 %613, %v596
        %v615 = vpop.permute.xlu0 %614
        %618 = vset.pattern.permute.xlu0 0
        %619 = vperm.xlu0 %618, %v597
        %v620 = vpop.permute.xlu0 %619
        %v622 = vperm.slane %v334, 0
        %v623 = vperm.slane %v335, 0
        %v624 = vmul.f32 %v605, %v622
        %v625 = vmul.f32 %v610, %v622
        %v626 = vmul.f32 %v615, %v622
        %v627 = vmul.f32 %v620, %v622
        %v628 = vmul.f32 %v605, %v623
        %v629 = vmul.f32 %v610, %v623
        %v630 = vmul.f32 %v615, %v623
        %v631 = vmul.f32 %v620, %v623
        %633 = vset.pattern.permute.xlu0 0
        %634 = vperm.xlu0 %633, %v598
        %v635 = vpop.permute.xlu0 %634
        %638 = vset.pattern.permute.xlu0 0
        %639 = vperm.xlu0 %638, %v599
        %v640 = vpop.permute.xlu0 %639
        %643 = vset.pattern.permute.xlu0 0
        %644 = vperm.xlu0 %643, %v600
        %v645 = vpop.permute.xlu0 %644
        %648 = vset.pattern.permute.xlu0 0
        %649 = vperm.xlu0 %648, %v601
        %v650 = vpop.permute.xlu0 %649
        %v652 = vadd.f32 %v635, %v624
        %v653 = vadd.f32 %v640, %v625
        %v654 = vadd.f32 %v645, %v626
        %v655 = vadd.f32 %v650, %v627
        %v656 = vadd.f32 %v635, %v628
        %v657 = vadd.f32 %v640, %v629
        %v658 = vadd.f32 %v645, %v630
        %v659 = vadd.f32 %v650, %v631
        %660 = vset.pattern.permute.xlu0 1
        %661 = vperm.xlu0 %660, %v594
        %v662 = vpop.permute.xlu0 %661
        %664 = vset.pattern.permute.xlu0 1
        %665 = vperm.xlu0 %664, %v595
        %v666 = vpop.permute.xlu0 %665
        %668 = vset.pattern.permute.xlu0 1
        %669 = vperm.xlu0 %668, %v596
        %v670 = vpop.permute.xlu0 %669
        %672 = vset.pattern.permute.xlu0 1
        %673 = vperm.xlu0 %672, %v597
        %v674 = vpop.permute.xlu0 %673
        %v676 = vperm.slane %v334, 1
        %v677 = vperm.slane %v335, 1
        %v678 = vmul.f32 %v662, %v676
        %v679 = vmul.f32 %v666, %v676
        %v680 = vmul.f32 %v670, %v676
        %v681 = vmul.f32 %v674, %v676
        %v682 = vmul.f32 %v662, %v677
        %v683 = vmul.f32 %v666, %v677
        %v684 = vmul.f32 %v670, %v677
        %v685 = vmul.f32 %v674, %v677
        %v686 = vadd.f32 %v652, %v678
        %v687 = vadd.f32 %v653, %v679
        %v688 = vadd.f32 %v654, %v680
        %v689 = vadd.f32 %v655, %v681
        %v690 = vadd.f32 %v656, %v682
        %v691 = vadd.f32 %v657, %v683
        %v692 = vadd.f32 %v658, %v684
        %v693 = vadd.f32 %v659, %v685
        %694 = vset.pattern.permute.xlu0 2
        %695 = vperm.xlu0 %694, %v594
        %v696 = vpop.permute.xlu0 %695
        %698 = vset.pattern.permute.xlu0 2
        %699 = vperm.xlu0 %698, %v595
        %v700 = vpop.permute.xlu0 %699
        %702 = vset.pattern.permute.xlu0 2
        %703 = vperm.xlu0 %702, %v596
        %v704 = vpop.permute.xlu0 %703
        %706 = vset.pattern.permute.xlu0 2
        %707 = vperm.xlu0 %706, %v597
        %v708 = vpop.permute.xlu0 %707
        %v710 = vperm.slane %v334, 2
        %v711 = vperm.slane %v335, 2
        %v712 = vmul.f32 %v696, %v710
        %v713 = vmul.f32 %v700, %v710
        %v714 = vmul.f32 %v704, %v710
        %v715 = vmul.f32 %v708, %v710
        %v716 = vmul.f32 %v696, %v711
        %v717 = vmul.f32 %v700, %v711
        %v718 = vmul.f32 %v704, %v711
        %v719 = vmul.f32 %v708, %v711
        %v720 = vadd.f32 %v686, %v712
        %v721 = vadd.f32 %v687, %v713
        %v722 = vadd.f32 %v688, %v714
        %v723 = vadd.f32 %v689, %v715
        %v724 = vadd.f32 %v690, %v716
        %v725 = vadd.f32 %v691, %v717
        %v726 = vadd.f32 %v692, %v718
        %v727 = vadd.f32 %v693, %v719
        %734 = vrot.lane.b32.xlu0 %v720, 112
        %v735 = vpop.permute.xlu0 %734
        %736 = vrot.lane.b32.xlu0 %v721, 112
        %v737 = vpop.permute.xlu0 %736
        %738 = vrot.lane.b32.xlu0 %v722, 112
        %v739 = vpop.permute.xlu0 %738
        %740 = vrot.lane.b32.xlu0 %v724, 112
        %v741 = vpop.permute.xlu0 %740
        %742 = vrot.lane.b32.xlu0 %v725, 112
        %v743 = vpop.permute.xlu0 %742
        %744 = vrot.lane.b32.xlu0 %v726, 112
        %v745 = vpop.permute.xlu0 %744
        %752 = vrot.lane.b32.xlu0 %v720, 96
        %v753 = vpop.permute.xlu0 %752
        %754 = vrot.lane.b32.xlu0 %v721, 96
        %v755 = vpop.permute.xlu0 %754
        %756 = vrot.lane.b32.xlu0 %v722, 96
        %v757 = vpop.permute.xlu0 %756
        %758 = vrot.lane.b32.xlu0 %v724, 96
        %v759 = vpop.permute.xlu0 %758
        %760 = vrot.lane.b32.xlu0 %v725, 96
        %v761 = vpop.permute.xlu0 %760
        %762 = vrot.lane.b32.xlu0 %v726, 96
        %v763 = vpop.permute.xlu0 %762
        %770 = vrot.lane.b32.xlu0 %v720, 80
        %v771 = vpop.permute.xlu0 %770
        %772 = vrot.lane.b32.xlu0 %v721, 80
        %v773 = vpop.permute.xlu0 %772
        %774 = vrot.lane.b32.xlu0 %v722, 80
        %v775 = vpop.permute.xlu0 %774
        %776 = vrot.lane.b32.xlu0 %v724, 80
        %v777 = vpop.permute.xlu0 %776
        %778 = vrot.lane.b32.xlu0 %v725, 80
        %v779 = vpop.permute.xlu0 %778
        %780 = vrot.lane.b32.xlu0 %v726, 80
        %v781 = vpop.permute.xlu0 %780
        %788 = vrot.lane.b32.xlu0 %v720, 64
        %v789 = vpop.permute.xlu0 %788
        %790 = vrot.lane.b32.xlu0 %v721, 64
        %v791 = vpop.permute.xlu0 %790
        %792 = vrot.lane.b32.xlu0 %v722, 64
        %v793 = vpop.permute.xlu0 %792
        %794 = vrot.lane.b32.xlu0 %v724, 64
        %v795 = vpop.permute.xlu0 %794
        %796 = vrot.lane.b32.xlu0 %v725, 64
        %v797 = vpop.permute.xlu0 %796
        %798 = vrot.lane.b32.xlu0 %v726, 64
        %v799 = vpop.permute.xlu0 %798
        %806 = vrot.lane.b32.xlu0 %v720, 48
        %v807 = vpop.permute.xlu0 %806
        %808 = vrot.lane.b32.xlu0 %v721, 48
        %v809 = vpop.permute.xlu0 %808
        %810 = vrot.lane.b32.xlu0 %v722, 48
        %v811 = vpop.permute.xlu0 %810
        %812 = vrot.lane.b32.xlu0 %v724, 48
        %v813 = vpop.permute.xlu0 %812
        %814 = vrot.lane.b32.xlu0 %v725, 48
        %v815 = vpop.permute.xlu0 %814
        %816 = vrot.lane.b32.xlu0 %v726, 48
        %v817 = vpop.permute.xlu0 %816
        %824 = vrot.lane.b32.xlu0 %v720, 32
        %v825 = vpop.permute.xlu0 %824
        %826 = vrot.lane.b32.xlu0 %v721, 32
        %v827 = vpop.permute.xlu0 %826
        %828 = vrot.lane.b32.xlu0 %v722, 32
        %v829 = vpop.permute.xlu0 %828
        %830 = vrot.lane.b32.xlu0 %v724, 32
        %v831 = vpop.permute.xlu0 %830
        %832 = vrot.lane.b32.xlu0 %v725, 32
        %v833 = vpop.permute.xlu0 %832
        %834 = vrot.lane.b32.xlu0 %v726, 32
        %v835 = vpop.permute.xlu0 %834
        %842 = vrot.lane.b32.xlu0 %v720, 16
        %v843 = vpop.permute.xlu0 %842
        %844 = vrot.lane.b32.xlu0 %v721, 16
        %v845 = vpop.permute.xlu0 %844
        %846 = vrot.lane.b32.xlu0 %v722, 16
        %v847 = vpop.permute.xlu0 %846
        %848 = vrot.lane.b32.xlu0 %v724, 16
        %v849 = vpop.permute.xlu0 %848
        %850 = vrot.lane.b32.xlu0 %v725, 16
        %v851 = vpop.permute.xlu0 %850
        %852 = vrot.lane.b32.xlu0 %v726, 16
        %v853 = vpop.permute.xlu0 %852
        %v860 = vrot.slane %v753, 4
        %vm861 = vcmask 1047556
        %v862 = vsel %vm861, %v860, %v720
        %v863 = vrot.slane %v720, 4
        %v864 = vsel %vm861, %v753, %v863
        %v866 = vunpack.c.l.s4 1983009808
        %v867 = vunpack.c.0.s8 %v866
        %v868 = vperm.slane %v862, %v867
        %v870 = vunpack.c.l.s4 1983009808
        %v871 = vunpack.c.0.s8 %v870
        %v872 = vperm.slane %v864, %v871
        %v873 = vrot.slane %v771, 4
        %v874 = vsel %vm861, %v873, %v735
        %v875 = vrot.slane %v735, 4
        %v876 = vsel %vm861, %v771, %v875
        %v878 = vunpack.c.l.s4 1983009808
        %v879 = vunpack.c.0.s8 %v878
        %v880 = vperm.slane %v874, %v879
        %v882 = vunpack.c.l.s4 1983009808
        %v883 = vunpack.c.0.s8 %v882
        %v884 = vperm.slane %v876, %v883
        %v885 = vrot.slane %v825, 4
        %v886 = vsel %vm861, %v885, %v789
        %v887 = vrot.slane %v789, 4
        %v888 = vsel %vm861, %v825, %v887
        %v890 = vunpack.c.l.s4 1983009808
        %v891 = vunpack.c.0.s8 %v890
        %v892 = vperm.slane %v886, %v891
        %v894 = vunpack.c.l.s4 1983009808
        %v895 = vunpack.c.0.s8 %v894
        %v896 = vperm.slane %v888, %v895
        %v897 = vrot.slane %v843, 4
        %v898 = vsel %vm861, %v897, %v807
        %v899 = vrot.slane %v807, 4
        %v900 = vsel %vm861, %v843, %v899
        %v902 = vunpack.c.l.s4 1983009808
        %v903 = vunpack.c.0.s8 %v902
        %v904 = vperm.slane %v898, %v903
        %v906 = vunpack.c.l.s4 1983009808
        %v907 = vunpack.c.0.s8 %v906
        %v908 = vperm.slane %v900, %v907
        %v909 = vrot.slane %v880, 4
        %v910 = vsel %vm861, %v909, %v868
        %v911 = vrot.slane %v868, 4
        %v912 = vsel %vm861, %v880, %v911
        %v914 = vunpack.c.l.s4 1934713408
        %v915 = vunpack.c.0.s8 %v914
        %v916 = vperm.slane %v910, %v915
        %v918 = vunpack.c.l.s4 1934713408
        %v919 = vunpack.c.0.s8 %v918
        %v920 = vperm.slane %v912, %v919
        %v921 = vrot.slane %v884, 4
        %v922 = vsel %vm861, %v921, %v872
        %v923 = vrot.slane %v872, 4
        %v924 = vsel %vm861, %v884, %v923
        %v926 = vunpack.c.l.s4 1934713408
        %v927 = vunpack.c.0.s8 %v926
        %v928 = vperm.slane %v922, %v927
        %v930 = vunpack.c.l.s4 1934713408
        %v931 = vunpack.c.0.s8 %v930
        %v932 = vperm.slane %v924, %v931
        %v933 = vrot.slane %v904, 4
        %v934 = vsel %vm861, %v933, %v892
        %v935 = vrot.slane %v892, 4
        %v936 = vsel %vm861, %v904, %v935
        %v938 = vunpack.c.l.s4 1934713408
        %v939 = vunpack.c.0.s8 %v938
        %v940 = vperm.slane %v934, %v939
        %v942 = vunpack.c.l.s4 1934713408
        %v943 = vunpack.c.0.s8 %v942
        %v944 = vperm.slane %v936, %v943
        %v945 = vrot.slane %v908, 4
        %v946 = vsel %vm861, %v945, %v896
        %v947 = vrot.slane %v896, 4
        %v948 = vsel %vm861, %v908, %v947
        %v950 = vunpack.c.l.s4 1934713408
        %v951 = vunpack.c.0.s8 %v950
        %v952 = vperm.slane %v946, %v951
        %v954 = vunpack.c.l.s4 1934713408
        %v955 = vunpack.c.0.s8 %v954
        %v956 = vperm.slane %v948, %v955
        %v957 = vrot.slane %v940, 4
        %v958 = vsel %vm861, %v957, %v916
        %v959 = vrot.slane %v916, 4
        %v960 = vsel %vm861, %v940, %v959
        %v961 = vrot.slane %v944, 4
        %v962 = vsel %vm861, %v961, %v920
        %v963 = vrot.slane %v920, 4
        %v964 = vsel %vm861, %v944, %v963
        %v965 = vrot.slane %v952, 4
        %v966 = vsel %vm861, %v965, %v928
        %v967 = vrot.slane %v928, 4
        %v968 = vsel %vm861, %v952, %v967
        %v969 = vrot.slane %v956, 4
        %v970 = vsel %vm861, %v969, %v932
        %v971 = vrot.slane %v932, 4
        %v972 = vsel %vm861, %v956, %v971
        %v973 = vrot.slane %v755, 4
        %v974 = vsel %vm861, %v973, %v721
        %v975 = vrot.slane %v721, 4
        %v976 = vsel %vm861, %v755, %v975
        %v978 = vunpack.c.l.s4 1983009808
        %v979 = vunpack.c.0.s8 %v978
        %v980 = vperm.slane %v974, %v979
        %v982 = vunpack.c.l.s4 1983009808
        %v983 = vunpack.c.0.s8 %v982
        %v984 = vperm.slane %v976, %v983
        %v985 = vrot.slane %v773, 4
        %v986 = vsel %vm861, %v985, %v737
        %v987 = vrot.slane %v737, 4
        %v988 = vsel %vm861, %v773, %v987
        %v990 = vunpack.c.l.s4 1983009808
        %v991 = vunpack.c.0.s8 %v990
        %v992 = vperm.slane %v986, %v991
        %v994 = vunpack.c.l.s4 1983009808
        %v995 = vunpack.c.0.s8 %v994
        %v996 = vperm.slane %v988, %v995
        %v997 = vrot.slane %v827, 4
        %v998 = vsel %vm861, %v997, %v791
        %v999 = vrot.slane %v791, 4
        %v1000 = vsel %vm861, %v827, %v999
        %v1002 = vunpack.c.l.s4 1983009808
        %v1003 = vunpack.c.0.s8 %v1002
        %v1004 = vperm.slane %v998, %v1003
        %v1006 = vunpack.c.l.s4 1983009808
        %v1007 = vunpack.c.0.s8 %v1006
        %v1008 = vperm.slane %v1000, %v1007
        %v1009 = vrot.slane %v845, 4
        %v1010 = vsel %vm861, %v1009, %v809
        %v1011 = vrot.slane %v809, 4
        %v1012 = vsel %vm861, %v845, %v1011
        %v1014 = vunpack.c.l.s4 1983009808
        %v1015 = vunpack.c.0.s8 %v1014
        %v1016 = vperm.slane %v1010, %v1015
        %v1018 = vunpack.c.l.s4 1983009808
        %v1019 = vunpack.c.0.s8 %v1018
        %v1020 = vperm.slane %v1012, %v1019
        %v1021 = vrot.slane %v992, 4
        %v1022 = vsel %vm861, %v1021, %v980
        %v1023 = vrot.slane %v980, 4
        %v1024 = vsel %vm861, %v992, %v1023
        %v1026 = vunpack.c.l.s4 1934713408
        %v1027 = vunpack.c.0.s8 %v1026
        %v1028 = vperm.slane %v1022, %v1027
        %v1030 = vunpack.c.l.s4 1934713408
        %v1031 = vunpack.c.0.s8 %v1030
        %v1032 = vperm.slane %v1024, %v1031
        %v1033 = vrot.slane %v996, 4
        %v1034 = vsel %vm861, %v1033, %v984
        %v1035 = vrot.slane %v984, 4
        %v1036 = vsel %vm861, %v996, %v1035
        %v1038 = vunpack.c.l.s4 1934713408
        %v1039 = vunpack.c.0.s8 %v1038
        %v1040 = vperm.slane %v1034, %v1039
        %v1042 = vunpack.c.l.s4 1934713408
        %v1043 = vunpack.c.0.s8 %v1042
        %v1044 = vperm.slane %v1036, %v1043
        %v1045 = vrot.slane %v1016, 4
        %v1046 = vsel %vm861, %v1045, %v1004
        %v1047 = vrot.slane %v1004, 4
        %v1048 = vsel %vm861, %v1016, %v1047
        %v1050 = vunpack.c.l.s4 1934713408
        %v1051 = vunpack.c.0.s8 %v1050
        %v1052 = vperm.slane %v1046, %v1051
        %v1054 = vunpack.c.l.s4 1934713408
        %v1055 = vunpack.c.0.s8 %v1054
        %v1056 = vperm.slane %v1048, %v1055
        %v1057 = vrot.slane %v1020, 4
        %v1058 = vsel %vm861, %v1057, %v1008
        %v1059 = vrot.slane %v1008, 4
        %v1060 = vsel %vm861, %v1020, %v1059
        %v1062 = vunpack.c.l.s4 1934713408
        %v1063 = vunpack.c.0.s8 %v1062
        %v1064 = vperm.slane %v1058, %v1063
        %v1066 = vunpack.c.l.s4 1934713408
        %v1067 = vunpack.c.0.s8 %v1066
        %v1068 = vperm.slane %v1060, %v1067
        %v1069 = vrot.slane %v1052, 4
        %v1070 = vsel %vm861, %v1069, %v1028
        %v1071 = vrot.slane %v1028, 4
        %v1072 = vsel %vm861, %v1052, %v1071
        %v1073 = vrot.slane %v1056, 4
        %v1074 = vsel %vm861, %v1073, %v1032
        %v1075 = vrot.slane %v1032, 4
        %v1076 = vsel %vm861, %v1056, %v1075
        %v1077 = vrot.slane %v1064, 4
        %v1078 = vsel %vm861, %v1077, %v1040
        %v1079 = vrot.slane %v1040, 4
        %v1080 = vsel %vm861, %v1064, %v1079
        %v1081 = vrot.slane %v1068, 4
        %v1082 = vsel %vm861, %v1081, %v1044
        %v1083 = vrot.slane %v1044, 4
        %v1084 = vsel %vm861, %v1068, %v1083
        %v1085 = vrot.slane %v757, 4
        %v1086 = vsel %vm861, %v1085, %v722
        %v1087 = vrot.slane %v722, 4
        %v1088 = vsel %vm861, %v757, %v1087
        %v1090 = vunpack.c.l.s4 1983009808
        %v1091 = vunpack.c.0.s8 %v1090
        %v1092 = vperm.slane %v1086, %v1091
        %v1094 = vunpack.c.l.s4 1983009808
        %v1095 = vunpack.c.0.s8 %v1094
        %v1096 = vperm.slane %v1088, %v1095
        %v1097 = vrot.slane %v775, 4
        %v1098 = vsel %vm861, %v1097, %v739
        %v1099 = vrot.slane %v739, 4
        %v1100 = vsel %vm861, %v775, %v1099
        %v1102 = vunpack.c.l.s4 1983009808
        %v1103 = vunpack.c.0.s8 %v1102
        %v1104 = vperm.slane %v1098, %v1103
        %v1106 = vunpack.c.l.s4 1983009808
        %v1107 = vunpack.c.0.s8 %v1106
        %v1108 = vperm.slane %v1100, %v1107
        %v1109 = vrot.slane %v829, 4
        %v1110 = vsel %vm861, %v1109, %v793
        %v1111 = vrot.slane %v793, 4
        %v1112 = vsel %vm861, %v829, %v1111
        %v1114 = vunpack.c.l.s4 1983009808
        %v1115 = vunpack.c.0.s8 %v1114
        %v1116 = vperm.slane %v1110, %v1115
        %v1118 = vunpack.c.l.s4 1983009808
        %v1119 = vunpack.c.0.s8 %v1118
        %v1120 = vperm.slane %v1112, %v1119
        %v1121 = vrot.slane %v847, 4
        %v1122 = vsel %vm861, %v1121, %v811
        %v1123 = vrot.slane %v811, 4
        %v1124 = vsel %vm861, %v847, %v1123
        %v1126 = vunpack.c.l.s4 1983009808
        %v1127 = vunpack.c.0.s8 %v1126
        %v1128 = vperm.slane %v1122, %v1127
        %v1130 = vunpack.c.l.s4 1983009808
        %v1131 = vunpack.c.0.s8 %v1130
        %v1132 = vperm.slane %v1124, %v1131
        %v1133 = vrot.slane %v1104, 4
        %v1134 = vsel %vm861, %v1133, %v1092
        %v1135 = vrot.slane %v1092, 4
        %v1136 = vsel %vm861, %v1104, %v1135
        %v1138 = vunpack.c.l.s4 1934713408
        %v1139 = vunpack.c.0.s8 %v1138
        %v1140 = vperm.slane %v1134, %v1139
        %v1142 = vunpack.c.l.s4 1934713408
        %v1143 = vunpack.c.0.s8 %v1142
        %v1144 = vperm.slane %v1136, %v1143
        %v1145 = vrot.slane %v1108, 4
        %v1146 = vsel %vm861, %v1145, %v1096
        %v1147 = vrot.slane %v1096, 4
        %v1148 = vsel %vm861, %v1108, %v1147
        %v1150 = vunpack.c.l.s4 1934713408
        %v1151 = vunpack.c.0.s8 %v1150
        %v1152 = vperm.slane %v1146, %v1151
        %v1154 = vunpack.c.l.s4 1934713408
        %v1155 = vunpack.c.0.s8 %v1154
        %v1156 = vperm.slane %v1148, %v1155
        %v1157 = vrot.slane %v1128, 4
        %v1158 = vsel %vm861, %v1157, %v1116
        %v1159 = vrot.slane %v1116, 4
        %v1160 = vsel %vm861, %v1128, %v1159
        %v1162 = vunpack.c.l.s4 1934713408
        %v1163 = vunpack.c.0.s8 %v1162
        %v1164 = vperm.slane %v1158, %v1163
        %v1166 = vunpack.c.l.s4 1934713408
        %v1167 = vunpack.c.0.s8 %v1166
        %v1168 = vperm.slane %v1160, %v1167
        %v1169 = vrot.slane %v1132, 4
        %v1170 = vsel %vm861, %v1169, %v1120
        %v1171 = vrot.slane %v1120, 4
        %v1172 = vsel %vm861, %v1132, %v1171
        %v1174 = vunpack.c.l.s4 1934713408
        %v1175 = vunpack.c.0.s8 %v1174
        %v1176 = vperm.slane %v1170, %v1175
        %v1178 = vunpack.c.l.s4 1934713408
        %v1179 = vunpack.c.0.s8 %v1178
        %v1180 = vperm.slane %v1172, %v1179
        %v1181 = vrot.slane %v1164, 4
        %v1182 = vsel %vm861, %v1181, %v1140
        %v1183 = vrot.slane %v1140, 4
        %v1184 = vsel %vm861, %v1164, %v1183
        %v1185 = vrot.slane %v1168, 4
        %v1186 = vsel %vm861, %v1185, %v1144
        %v1187 = vrot.slane %v1144, 4
        %v1188 = vsel %vm861, %v1168, %v1187
        %v1189 = vrot.slane %v1176, 4
        %v1190 = vsel %vm861, %v1189, %v1152
        %v1191 = vrot.slane %v1152, 4
        %v1192 = vsel %vm861, %v1176, %v1191
        %v1193 = vrot.slane %v1180, 4
        %v1194 = vsel %vm861, %v1193, %v1156
        %v1195 = vrot.slane %v1156, 4
        %v1196 = vsel %vm861, %v1180, %v1195
        %v1197 = vrot.slane %v759, 4
        %v1198 = vsel %vm861, %v1197, %v724
        %v1199 = vrot.slane %v724, 4
        %v1200 = vsel %vm861, %v759, %v1199
        %v1202 = vunpack.c.l.s4 1983009808
        %v1203 = vunpack.c.0.s8 %v1202
        %v1204 = vperm.slane %v1198, %v1203
        %v1206 = vunpack.c.l.s4 1983009808
        %v1207 = vunpack.c.0.s8 %v1206
        %v1208 = vperm.slane %v1200, %v1207
        %v1209 = vrot.slane %v777, 4
        %v1210 = vsel %vm861, %v1209, %v741
        %v1211 = vrot.slane %v741, 4
        %v1212 = vsel %vm861, %v777, %v1211
        %v1214 = vunpack.c.l.s4 1983009808
        %v1215 = vunpack.c.0.s8 %v1214
        %v1216 = vperm.slane %v1210, %v1215
        %v1218 = vunpack.c.l.s4 1983009808
        %v1219 = vunpack.c.0.s8 %v1218
        %v1220 = vperm.slane %v1212, %v1219
        %v1221 = vrot.slane %v831, 4
        %v1222 = vsel %vm861, %v1221, %v795
        %v1223 = vrot.slane %v795, 4
        %v1224 = vsel %vm861, %v831, %v1223
        %v1226 = vunpack.c.l.s4 1983009808
        %v1227 = vunpack.c.0.s8 %v1226
        %v1228 = vperm.slane %v1222, %v1227
        %v1230 = vunpack.c.l.s4 1983009808
        %v1231 = vunpack.c.0.s8 %v1230
        %v1232 = vperm.slane %v1224, %v1231
        %v1233 = vrot.slane %v849, 4
        %v1234 = vsel %vm861, %v1233, %v813
        %v1235 = vrot.slane %v813, 4
        %v1236 = vsel %vm861, %v849, %v1235
        %v1238 = vunpack.c.l.s4 1983009808
        %v1239 = vunpack.c.0.s8 %v1238
        %v1240 = vperm.slane %v1234, %v1239
        %v1242 = vunpack.c.l.s4 1983009808
        %v1243 = vunpack.c.0.s8 %v1242
        %v1244 = vperm.slane %v1236, %v1243
        %v1245 = vrot.slane %v1216, 4
        %v1246 = vsel %vm861, %v1245, %v1204
        %v1247 = vrot.slane %v1204, 4
        %v1248 = vsel %vm861, %v1216, %v1247
        %v1250 = vunpack.c.l.s4 1934713408
        %v1251 = vunpack.c.0.s8 %v1250
        %v1252 = vperm.slane %v1246, %v1251
        %v1254 = vunpack.c.l.s4 1934713408
        %v1255 = vunpack.c.0.s8 %v1254
        %v1256 = vperm.slane %v1248, %v1255
        %v1257 = vrot.slane %v1220, 4
        %v1258 = vsel %vm861, %v1257, %v1208
        %v1259 = vrot.slane %v1208, 4
        %v1260 = vsel %vm861, %v1220, %v1259
        %v1262 = vunpack.c.l.s4 1934713408
        %v1263 = vunpack.c.0.s8 %v1262
        %v1264 = vperm.slane %v1258, %v1263
        %v1266 = vunpack.c.l.s4 1934713408
        %v1267 = vunpack.c.0.s8 %v1266
        %v1268 = vperm.slane %v1260, %v1267
        %v1269 = vrot.slane %v1240, 4
        %v1270 = vsel %vm861, %v1269, %v1228
        %v1271 = vrot.slane %v1228, 4
        %v1272 = vsel %vm861, %v1240, %v1271
        %v1274 = vunpack.c.l.s4 1934713408
        %v1275 = vunpack.c.0.s8 %v1274
        %v1276 = vperm.slane %v1270, %v1275
        %v1278 = vunpack.c.l.s4 1934713408
        %v1279 = vunpack.c.0.s8 %v1278
        %v1280 = vperm.slane %v1272, %v1279
        %v1281 = vrot.slane %v1244, 4
        %v1282 = vsel %vm861, %v1281, %v1232
        %v1283 = vrot.slane %v1232, 4
        %v1284 = vsel %vm861, %v1244, %v1283
        %v1286 = vunpack.c.l.s4 1934713408
        %v1287 = vunpack.c.0.s8 %v1286
        %v1288 = vperm.slane %v1282, %v1287
        %v1290 = vunpack.c.l.s4 1934713408
        %v1291 = vunpack.c.0.s8 %v1290
        %v1292 = vperm.slane %v1284, %v1291
        %v1293 = vrot.slane %v1276, 4
        %v1294 = vsel %vm861, %v1293, %v1252
        %v1295 = vrot.slane %v1252, 4
        %v1296 = vsel %vm861, %v1276, %v1295
        %v1297 = vrot.slane %v1280, 4
        %v1298 = vsel %vm861, %v1297, %v1256
        %v1299 = vrot.slane %v1256, 4
        %v1300 = vsel %vm861, %v1280, %v1299
        %v1301 = vrot.slane %v1288, 4
        %v1302 = vsel %vm861, %v1301, %v1264
        %v1303 = vrot.slane %v1264, 4
        %v1304 = vsel %vm861, %v1288, %v1303
        %v1305 = vrot.slane %v1292, 4
        %v1306 = vsel %vm861, %v1305, %v1268
        %v1307 = vrot.slane %v1268, 4
        %v1308 = vsel %vm861, %v1292, %v1307
        %v1309 = vrot.slane %v761, 4
        %v1310 = vsel %vm861, %v1309, %v725
        %v1311 = vrot.slane %v725, 4
        %v1312 = vsel %vm861, %v761, %v1311
        %v1314 = vunpack.c.l.s4 1983009808
        %v1315 = vunpack.c.0.s8 %v1314
        %v1316 = vperm.slane %v1310, %v1315
        %v1318 = vunpack.c.l.s4 1983009808
        %v1319 = vunpack.c.0.s8 %v1318
        %v1320 = vperm.slane %v1312, %v1319
        %v1321 = vrot.slane %v779, 4
        %v1322 = vsel %vm861, %v1321, %v743
        %v1323 = vrot.slane %v743, 4
        %v1324 = vsel %vm861, %v779, %v1323
        %v1326 = vunpack.c.l.s4 1983009808
        %v1327 = vunpack.c.0.s8 %v1326
        %v1328 = vperm.slane %v1322, %v1327
        %v1330 = vunpack.c.l.s4 1983009808
        %v1331 = vunpack.c.0.s8 %v1330
        %v1332 = vperm.slane %v1324, %v1331
        %v1333 = vrot.slane %v833, 4
        %v1334 = vsel %vm861, %v1333, %v797
        %v1335 = vrot.slane %v797, 4
        %v1336 = vsel %vm861, %v833, %v1335
        %v1338 = vunpack.c.l.s4 1983009808
        %v1339 = vunpack.c.0.s8 %v1338
        %v1340 = vperm.slane %v1334, %v1339
        %v1342 = vunpack.c.l.s4 1983009808
        %v1343 = vunpack.c.0.s8 %v1342
        %v1344 = vperm.slane %v1336, %v1343
        %v1345 = vrot.slane %v851, 4
        %v1346 = vsel %vm861, %v1345, %v815
        %v1347 = vrot.slane %v815, 4
        %v1348 = vsel %vm861, %v851, %v1347
        %v1350 = vunpack.c.l.s4 1983009808
        %v1351 = vunpack.c.0.s8 %v1350
        %v1352 = vperm.slane %v1346, %v1351
        %v1354 = vunpack.c.l.s4 1983009808
        %v1355 = vunpack.c.0.s8 %v1354
        %v1356 = vperm.slane %v1348, %v1355
        %v1357 = vrot.slane %v1328, 4
        %v1358 = vsel %vm861, %v1357, %v1316
        %v1359 = vrot.slane %v1316, 4
        %v1360 = vsel %vm861, %v1328, %v1359
        %v1362 = vunpack.c.l.s4 1934713408
        %v1363 = vunpack.c.0.s8 %v1362
        %v1364 = vperm.slane %v1358, %v1363
        %v1366 = vunpack.c.l.s4 1934713408
        %v1367 = vunpack.c.0.s8 %v1366
        %v1368 = vperm.slane %v1360, %v1367
        %v1369 = vrot.slane %v1332, 4
        %v1370 = vsel %vm861, %v1369, %v1320
        %v1371 = vrot.slane %v1320, 4
        %v1372 = vsel %vm861, %v1332, %v1371
        %v1374 = vunpack.c.l.s4 1934713408
        %v1375 = vunpack.c.0.s8 %v1374
        %v1376 = vperm.slane %v1370, %v1375
        %v1378 = vunpack.c.l.s4 1934713408
        %v1379 = vunpack.c.0.s8 %v1378
        %v1380 = vperm.slane %v1372, %v1379
        %v1381 = vrot.slane %v1352, 4
        %v1382 = vsel %vm861, %v1381, %v1340
        %v1383 = vrot.slane %v1340, 4
        %v1384 = vsel %vm861, %v1352, %v1383
        %v1386 = vunpack.c.l.s4 1934713408
        %v1387 = vunpack.c.0.s8 %v1386
        %v1388 = vperm.slane %v1382, %v1387
        %v1390 = vunpack.c.l.s4 1934713408
        %v1391 = vunpack.c.0.s8 %v1390
        %v1392 = vperm.slane %v1384, %v1391
        %v1393 = vrot.slane %v1356, 4
        %v1394 = vsel %vm861, %v1393, %v1344
        %v1395 = vrot.slane %v1344, 4
        %v1396 = vsel %vm861, %v1356, %v1395
        %v1398 = vunpack.c.l.s4 1934713408
        %v1399 = vunpack.c.0.s8 %v1398
        %v1400 = vperm.slane %v1394, %v1399
        %v1402 = vunpack.c.l.s4 1934713408
        %v1403 = vunpack.c.0.s8 %v1402
        %v1404 = vperm.slane %v1396, %v1403
        %v1405 = vrot.slane %v1388, 4
        %v1406 = vsel %vm861, %v1405, %v1364
        %v1407 = vrot.slane %v1364, 4
        %v1408 = vsel %vm861, %v1388, %v1407
        %v1409 = vrot.slane %v1392, 4
        %v1410 = vsel %vm861, %v1409, %v1368
        %v1411 = vrot.slane %v1368, 4
        %v1412 = vsel %vm861, %v1392, %v1411
        %v1413 = vrot.slane %v1400, 4
        %v1414 = vsel %vm861, %v1413, %v1376
        %v1415 = vrot.slane %v1376, 4
        %v1416 = vsel %vm861, %v1400, %v1415
        %v1417 = vrot.slane %v1404, 4
        %v1418 = vsel %vm861, %v1417, %v1380
        %v1419 = vrot.slane %v1380, 4
        %v1420 = vsel %vm861, %v1404, %v1419
        %v1421 = vrot.slane %v763, 4
        %v1422 = vsel %vm861, %v1421, %v726
        %v1423 = vrot.slane %v726, 4
        %v1424 = vsel %vm861, %v763, %v1423
        %v1426 = vunpack.c.l.s4 1983009808
        %v1427 = vunpack.c.0.s8 %v1426
        %v1428 = vperm.slane %v1422, %v1427
        %v1430 = vunpack.c.l.s4 1983009808
        %v1431 = vunpack.c.0.s8 %v1430
        %v1432 = vperm.slane %v1424, %v1431
        %v1433 = vrot.slane %v781, 4
        %v1434 = vsel %vm861, %v1433, %v745
        %v1435 = vrot.slane %v745, 4
        %v1436 = vsel %vm861, %v781, %v1435
        %v1438 = vunpack.c.l.s4 1983009808
        %v1439 = vunpack.c.0.s8 %v1438
        %v1440 = vperm.slane %v1434, %v1439
        %v1442 = vunpack.c.l.s4 1983009808
        %v1443 = vunpack.c.0.s8 %v1442
        %v1444 = vperm.slane %v1436, %v1443
        %v1445 = vrot.slane %v835, 4
        %v1446 = vsel %vm861, %v1445, %v799
        %v1447 = vrot.slane %v799, 4
        %v1448 = vsel %vm861, %v835, %v1447
        %v1450 = vunpack.c.l.s4 1983009808
        %v1451 = vunpack.c.0.s8 %v1450
        %v1452 = vperm.slane %v1446, %v1451
        %v1454 = vunpack.c.l.s4 1983009808
        %v1455 = vunpack.c.0.s8 %v1454
        %v1456 = vperm.slane %v1448, %v1455
        %v1457 = vrot.slane %v853, 4
        %v1458 = vsel %vm861, %v1457, %v817
        %v1459 = vrot.slane %v817, 4
        %v1460 = vsel %vm861, %v853, %v1459
        %v1462 = vunpack.c.l.s4 1983009808
        %v1463 = vunpack.c.0.s8 %v1462
        %v1464 = vperm.slane %v1458, %v1463
        %v1466 = vunpack.c.l.s4 1983009808
        %v1467 = vunpack.c.0.s8 %v1466
        %v1468 = vperm.slane %v1460, %v1467
        %v1469 = vrot.slane %v1440, 4
        %v1470 = vsel %vm861, %v1469, %v1428
        %v1471 = vrot.slane %v1428, 4
        %v1472 = vsel %vm861, %v1440, %v1471
        %v1474 = vunpack.c.l.s4 1934713408
        %v1475 = vunpack.c.0.s8 %v1474
        %v1476 = vperm.slane %v1470, %v1475
        %v1478 = vunpack.c.l.s4 1934713408
        %v1479 = vunpack.c.0.s8 %v1478
        %v1480 = vperm.slane %v1472, %v1479
        %v1481 = vrot.slane %v1444, 4
        %v1482 = vsel %vm861, %v1481, %v1432
        %v1483 = vrot.slane %v1432, 4
        %v1484 = vsel %vm861, %v1444, %v1483
        %v1486 = vunpack.c.l.s4 1934713408
        %v1487 = vunpack.c.0.s8 %v1486
        %v1488 = vperm.slane %v1482, %v1487
        %v1490 = vunpack.c.l.s4 1934713408
        %v1491 = vunpack.c.0.s8 %v1490
        %v1492 = vperm.slane %v1484, %v1491
        %v1493 = vrot.slane %v1464, 4
        %v1494 = vsel %vm861, %v1493, %v1452
        %v1495 = vrot.slane %v1452, 4
        %v1496 = vsel %vm861, %v1464, %v1495
        %v1498 = vunpack.c.l.s4 1934713408
        %v1499 = vunpack.c.0.s8 %v1498
        %v1500 = vperm.slane %v1494, %v1499
        %v1502 = vunpack.c.l.s4 1934713408
        %v1503 = vunpack.c.0.s8 %v1502
        %v1504 = vperm.slane %v1496, %v1503
        %v1505 = vrot.slane %v1468, 4
        %v1506 = vsel %vm861, %v1505, %v1456
        %v1507 = vrot.slane %v1456, 4
        %v1508 = vsel %vm861, %v1468, %v1507
        %v1510 = vunpack.c.l.s4 1934713408
        %v1511 = vunpack.c.0.s8 %v1510
        %v1512 = vperm.slane %v1506, %v1511
        %v1514 = vunpack.c.l.s4 1934713408
        %v1515 = vunpack.c.0.s8 %v1514
        %v1516 = vperm.slane %v1508, %v1515
        %v1517 = vrot.slane %v1500, 4
        %v1518 = vsel %vm861, %v1517, %v1476
        %v1519 = vrot.slane %v1476, 4
        %v1520 = vsel %vm861, %v1500, %v1519
        %v1521 = vrot.slane %v1504, 4
        %v1522 = vsel %vm861, %v1521, %v1480
        %v1523 = vrot.slane %v1480, 4
        %v1524 = vsel %vm861, %v1504, %v1523
        %v1525 = vrot.slane %v1512, 4
        %v1526 = vsel %vm861, %v1525, %v1488
        %v1527 = vrot.slane %v1488, 4
        %v1528 = vsel %vm861, %v1512, %v1527
        %v1529 = vrot.slane %v1516, 4
        %v1530 = vsel %vm861, %v1529, %v1492
        %v1531 = vrot.slane %v1492, 4
        %v1532 = vsel %vm861, %v1516, %v1531
        %v1533 = vperm.slane %v582, 0
        %v1534 = vlaneseq
        %v1535 = vshrl.u32 %v1534, 7
        %1537 = vset.pattern.permute.xlu0 %v1535
        %1538 = vperm.xlu0 %1537, %v1533
        %v1539 = vpop.permute.xlu0 %1538
        %v1540 = vlaneseq
        %v1541 = vshrl.u32 %v1540, 7
        %v1542 = vadd.s32 %v1541, 8
        %1543 = vset.pattern.permute.xlu0 %v1542
        %1544 = vperm.xlu0 %1543, %v1533
        %v1545 = vpop.permute.xlu0 %1544
        %v1546 = vperm.slane %v582, 1
        %v1547 = vlaneseq
        %v1548 = vshrl.u32 %v1547, 7
        %1550 = vset.pattern.permute.xlu0 %v1548
        %1551 = vperm.xlu0 %1550, %v1546
        %v1552 = vpop.permute.xlu0 %1551
        %v1553 = vlaneseq
        %v1554 = vshrl.u32 %v1553, 7
        %v1555 = vadd.s32 %v1554, 8
        %1556 = vset.pattern.permute.xlu0 %v1555
        %1557 = vperm.xlu0 %1556, %v1546
        %v1558 = vpop.permute.xlu0 %1557
        %v1559 = vperm.slane %v582, 2
        %v1560 = vlaneseq
        %v1561 = vshrl.u32 %v1560, 7
        %1563 = vset.pattern.permute.xlu0 %v1561
        %1564 = vperm.xlu0 %1563, %v1559
        %v1565 = vpop.permute.xlu0 %1564
        %v1566 = vlaneseq
        %v1567 = vshrl.u32 %v1566, 7
        %v1568 = vadd.s32 %v1567, 8
        %1569 = vset.pattern.permute.xlu0 %v1568
        %1570 = vperm.xlu0 %1569, %v1559
        %v1571 = vpop.permute.xlu0 %1570
        %v1572 = vperm.slane %v582, 3
        %v1573 = vlaneseq
        %v1574 = vshrl.u32 %v1573, 7
        %1576 = vset.pattern.permute.xlu0 %v1574
        %1577 = vperm.xlu0 %1576, %v1572
        %v1578 = vpop.permute.xlu0 %1577
        %v1579 = vlaneseq
        %v1580 = vshrl.u32 %v1579, 7
        %v1581 = vadd.s32 %v1580, 8
        %1582 = vset.pattern.permute.xlu0 %v1581
        %1583 = vperm.xlu0 %1582, %v1572
        %v1584 = vpop.permute.xlu0 %1583
        %v1585 = vperm.slane %v582, 4
        %v1586 = vlaneseq
        %v1587 = vshrl.u32 %v1586, 7
        %1589 = vset.pattern.permute.xlu0 %v1587
        %1590 = vperm.xlu0 %1589, %v1585
        %v1591 = vpop.permute.xlu0 %1590
        %v1592 = vlaneseq
        %v1593 = vshrl.u32 %v1592, 7
        %v1594 = vadd.s32 %v1593, 8
        %1595 = vset.pattern.permute.xlu0 %v1594
        %1596 = vperm.xlu0 %1595, %v1585
        %v1597 = vpop.permute.xlu0 %1596
        %v1598 = vperm.slane %v582, 5
        %v1599 = vlaneseq
        %v1600 = vshrl.u32 %v1599, 7
        %1602 = vset.pattern.permute.xlu0 %v1600
        %1603 = vperm.xlu0 %1602, %v1598
        %v1604 = vpop.permute.xlu0 %1603
        %v1605 = vlaneseq
        %v1606 = vshrl.u32 %v1605, 7
        %v1607 = vadd.s32 %v1606, 8
        %1608 = vset.pattern.permute.xlu0 %v1607
        %1609 = vperm.xlu0 %1608, %v1598
        %v1610 = vpop.permute.xlu0 %1609
        %v1611 = vperm.slane %v582, 6
        %v1612 = vlaneseq
        %v1613 = vshrl.u32 %v1612, 7
        %1615 = vset.pattern.permute.xlu0 %v1613
        %1616 = vperm.xlu0 %1615, %v1611
        %v1617 = vpop.permute.xlu0 %1616
        %v1618 = vlaneseq
        %v1619 = vshrl.u32 %v1618, 7
        %v1620 = vadd.s32 %v1619, 8
        %1621 = vset.pattern.permute.xlu0 %v1620
        %1622 = vperm.xlu0 %1621, %v1611
        %v1623 = vpop.permute.xlu0 %1622
        %v1624 = vperm.slane %v582, 7
        %v1625 = vlaneseq
        %v1626 = vshrl.u32 %v1625, 7
        %1628 = vset.pattern.permute.xlu0 %v1626
        %1629 = vperm.xlu0 %1628, %v1624
        %v1630 = vpop.permute.xlu0 %1629
        %v1631 = vlaneseq
        %v1632 = vshrl.u32 %v1631, 7
        %v1633 = vadd.s32 %v1632, 8
        %1634 = vset.pattern.permute.xlu0 %v1633
        %1635 = vperm.xlu0 %1634, %v1624
        %v1636 = vpop.permute.xlu0 %1635
        %v1637 = vperm.slane %v588, 0
        %v1638 = vlaneseq
        %v1639 = vshrl.u32 %v1638, 7
        %1641 = vset.pattern.permute.xlu0 %v1639
        %1642 = vperm.xlu0 %1641, %v1637
        %v1643 = vpop.permute.xlu0 %1642
        %v1644 = vlaneseq
        %v1645 = vshrl.u32 %v1644, 7
        %v1646 = vadd.s32 %v1645, 8
        %1647 = vset.pattern.permute.xlu0 %v1646
        %1648 = vperm.xlu0 %1647, %v1637
        %v1649 = vpop.permute.xlu0 %1648
        %v1650 = vperm.slane %v588, 1
        %v1651 = vlaneseq
        %v1652 = vshrl.u32 %v1651, 7
        %1654 = vset.pattern.permute.xlu0 %v1652
        %1655 = vperm.xlu0 %1654, %v1650
        %v1656 = vpop.permute.xlu0 %1655
        %v1657 = vlaneseq
        %v1658 = vshrl.u32 %v1657, 7
        %v1659 = vadd.s32 %v1658, 8
        %1660 = vset.pattern.permute.xlu0 %v1659
        %1661 = vperm.xlu0 %1660, %v1650
        %v1662 = vpop.permute.xlu0 %1661
        %v1663 = vperm.slane %v588, 2
        %v1664 = vlaneseq
        %v1665 = vshrl.u32 %v1664, 7
        %1667 = vset.pattern.permute.xlu0 %v1665
        %1668 = vperm.xlu0 %1667, %v1663
        %v1669 = vpop.permute.xlu0 %1668
        %v1670 = vlaneseq
        %v1671 = vshrl.u32 %v1670, 7
        %v1672 = vadd.s32 %v1671, 8
        %1673 = vset.pattern.permute.xlu0 %v1672
        %1674 = vperm.xlu0 %1673, %v1663
        %v1675 = vpop.permute.xlu0 %1674
        %v1676 = vperm.slane %v588, 3
        %v1677 = vlaneseq
        %v1678 = vshrl.u32 %v1677, 7
        %1680 = vset.pattern.permute.xlu0 %v1678
        %1681 = vperm.xlu0 %1680, %v1676
        %v1682 = vpop.permute.xlu0 %1681
        %v1683 = vlaneseq
        %v1684 = vshrl.u32 %v1683, 7
        %v1685 = vadd.s32 %v1684, 8
        %1686 = vset.pattern.permute.xlu0 %v1685
        %1687 = vperm.xlu0 %1686, %v1676
        %v1688 = vpop.permute.xlu0 %1687
        %v1689 = vperm.slane %v588, 4
        %v1690 = vlaneseq
        %v1691 = vshrl.u32 %v1690, 7
        %1693 = vset.pattern.permute.xlu0 %v1691
        %1694 = vperm.xlu0 %1693, %v1689
        %v1695 = vpop.permute.xlu0 %1694
        %v1696 = vlaneseq
        %v1697 = vshrl.u32 %v1696, 7
        %v1698 = vadd.s32 %v1697, 8
        %1699 = vset.pattern.permute.xlu0 %v1698
        %1700 = vperm.xlu0 %1699, %v1689
        %v1701 = vpop.permute.xlu0 %1700
        %v1702 = vperm.slane %v588, 5
        %v1703 = vlaneseq
        %v1704 = vshrl.u32 %v1703, 7
        %1706 = vset.pattern.permute.xlu0 %v1704
        %1707 = vperm.xlu0 %1706, %v1702
        %v1708 = vpop.permute.xlu0 %1707
        %v1709 = vlaneseq
        %v1710 = vshrl.u32 %v1709, 7
        %v1711 = vadd.s32 %v1710, 8
        %1712 = vset.pattern.permute.xlu0 %v1711
        %1713 = vperm.xlu0 %1712, %v1702
        %v1714 = vpop.permute.xlu0 %1713
        %v1715 = vperm.slane %v588, 6
        %v1716 = vlaneseq
        %v1717 = vshrl.u32 %v1716, 7
        %1719 = vset.pattern.permute.xlu0 %v1717
        %1720 = vperm.xlu0 %1719, %v1715
        %v1721 = vpop.permute.xlu0 %1720
        %v1722 = vlaneseq
        %v1723 = vshrl.u32 %v1722, 7
        %v1724 = vadd.s32 %v1723, 8
        %1725 = vset.pattern.permute.xlu0 %v1724
        %1726 = vperm.xlu0 %1725, %v1715
        %v1727 = vpop.permute.xlu0 %1726
        %v1728 = vperm.slane %v588, 7
        %v1729 = vlaneseq
        %v1730 = vshrl.u32 %v1729, 7
        %1732 = vset.pattern.permute.xlu0 %v1730
        %1733 = vperm.xlu0 %1732, %v1728
        %v1734 = vpop.permute.xlu0 %1733
        %v1735 = vlaneseq
        %v1736 = vshrl.u32 %v1735, 7
        %v1737 = vadd.s32 %v1736, 8
        %1738 = vset.pattern.permute.xlu0 %v1737
        %1739 = vperm.xlu0 %1738, %v1728
        %v1740 = vpop.permute.xlu0 %1739
        %v1743 = vrot.slane %v585, 1
        %v1744 = vrot.slane %v585, 2
        %v1745 = vrot.slane %v585, 3
        %v1746 = vrot.slane %v585, 4
        %v1747 = vrot.slane %v585, 5
        %v1748 = vrot.slane %v585, 6
        %v1749 = vrot.slane %v585, 7
        %v1750 = vrot.slane %v591, 1
        %v1751 = vrot.slane %v591, 2
        %v1752 = vrot.slane %v591, 3
        %v1753 = vrot.slane %v591, 4
        %v1754 = vrot.slane %v591, 5
        %v1755 = vrot.slane %v591, 6
        %v1756 = vrot.slane %v591, 7
        %v1757 = vperm.slane %v585, 0
        %v1758 = vperm.slane %v1743, 0
        %v1759 = vperm.slane %v1744, 0
        %v1760 = vperm.slane %v1745, 0
        %v1761 = vperm.slane %v1746, 0
        %v1762 = vperm.slane %v1747, 0
        %v1763 = vperm.slane %v1748, 0
        %v1764 = vperm.slane %v1749, 0
        %v1765 = vperm.slane %v591, 0
        %v1766 = vperm.slane %v1750, 0
        %v1767 = vperm.slane %v1751, 0
        %v1768 = vperm.slane %v1752, 0
        %v1769 = vperm.slane %v1753, 0
        %v1770 = vperm.slane %v1754, 0
        %v1771 = vperm.slane %v1755, 0
        %v1772 = vperm.slane %v1756, 0
        %v1789 = vsub.f32 %v1539, %v1757
        %v1790 = vsub.f32 %v1545, %v1757
        %v1791 = vsub.f32 %v1552, %v1758
        %v1792 = vsub.f32 %v1558, %v1758
        %v1793 = vsub.f32 %v1565, %v1759
        %v1794 = vsub.f32 %v1571, %v1759
        %v1795 = vsub.f32 %v1578, %v1760
        %v1796 = vsub.f32 %v1584, %v1760
        %v1797 = vsub.f32 %v1591, %v1761
        %v1798 = vsub.f32 %v1597, %v1761
        %v1799 = vsub.f32 %v1604, %v1762
        %v1800 = vsub.f32 %v1610, %v1762
        %v1801 = vsub.f32 %v1617, %v1763
        %v1802 = vsub.f32 %v1623, %v1763
        %v1803 = vsub.f32 %v1630, %v1764
        %v1804 = vsub.f32 %v1636, %v1764
        %v1805 = vsub.f32 %v1643, %v1765
        %v1806 = vsub.f32 %v1649, %v1765
        %v1807 = vsub.f32 %v1656, %v1766
        %v1808 = vsub.f32 %v1662, %v1766
        %v1809 = vsub.f32 %v1669, %v1767
        %v1810 = vsub.f32 %v1675, %v1767
        %v1811 = vsub.f32 %v1682, %v1768
        %v1812 = vsub.f32 %v1688, %v1768
        %v1813 = vsub.f32 %v1695, %v1769
        %v1814 = vsub.f32 %v1701, %v1769
        %v1815 = vsub.f32 %v1708, %v1770
        %v1816 = vsub.f32 %v1714, %v1770
        %v1817 = vsub.f32 %v1721, %v1771
        %v1818 = vsub.f32 %v1727, %v1771
        %v1819 = vsub.f32 %v1734, %v1772
        %v1820 = vsub.f32 %v1740, %v1772
        %v1821 = vtanh.pop %v1789
        %v1822 = vtanh.pop %v1790
        %v1823 = vtanh.pop %v1791
        %v1824 = vtanh.pop %v1792
        %v1825 = vtanh.pop %v1793
        %v1826 = vtanh.pop %v1794
        %v1827 = vtanh.pop %v1795
        %v1828 = vtanh.pop %v1796
        %v1829 = vtanh.pop %v1797
        %v1830 = vtanh.pop %v1798
        %v1831 = vtanh.pop %v1799
        %v1832 = vtanh.pop %v1800
        %v1833 = vtanh.pop %v1801
        %v1834 = vtanh.pop %v1802
        %v1835 = vtanh.pop %v1803
        %v1836 = vtanh.pop %v1804
        %v1837 = vtanh.pop %v1805
        %v1838 = vtanh.pop %v1806
        %v1839 = vtanh.pop %v1807
        %v1840 = vtanh.pop %v1808
        %v1841 = vtanh.pop %v1809
        %v1842 = vtanh.pop %v1810
        %v1843 = vtanh.pop %v1811
        %v1844 = vtanh.pop %v1812
        %v1845 = vtanh.pop %v1813
        %v1846 = vtanh.pop %v1814
        %v1847 = vtanh.pop %v1815
        %v1848 = vtanh.pop %v1816
        %v1849 = vtanh.pop %v1817
        %v1850 = vtanh.pop %v1818
        %v1851 = vtanh.pop %v1819
        %v1852 = vtanh.pop %v1820
        %v1853 = vld [vmem:[%s6] sm:$0xff]
        %v1854 = vld [vmem:[%s7] sm:$0x1]
        %v1855 = vperm.slane %v1854, 0
        %v1856 = vlaneseq
        %v1857 = vshrl.u32 %v1856, 7
        %1859 = vset.pattern.permute.xlu0 %v1857
        %1860 = vperm.xlu0 %1859, %v1855
        %v1861 = vpop.permute.xlu0 %1860
        %v1862 = vperm.slane %v1861, 0
        %v1863 = vperm.slane %v1861, 1
        %v1864 = vperm.slane %v1861, 2
        %v1865 = vperm.slane %v1861, 3
        %v1866 = vperm.slane %v1861, 4
        %v1867 = vperm.slane %v1861, 5
        %v1868 = vperm.slane %v1861, 6
        %v1869 = vperm.slane %v1861, 7
        %v1871 = vrot.slane %v1853, 1
        %v1872 = vrot.slane %v1853, 2
        %v1873 = vrot.slane %v1853, 3
        %v1874 = vrot.slane %v1853, 4
        %v1875 = vrot.slane %v1853, 5
        %v1876 = vrot.slane %v1853, 6
        %v1877 = vrot.slane %v1853, 7
        %v1878 = vperm.slane %v1853, 0
        %v1879 = vperm.slane %v1871, 0
        %v1880 = vperm.slane %v1872, 0
        %v1881 = vperm.slane %v1873, 0
        %v1882 = vperm.slane %v1874, 0
        %v1883 = vperm.slane %v1875, 0
        %v1884 = vperm.slane %v1876, 0
        %v1885 = vperm.slane %v1877, 0
        %1886 = vset.pattern.permute.xlu0 0
        %1887 = vperm.xlu0 %1886, %v1878
        %v1888 = vpop.permute.xlu0 %1887
        %1890 = vset.pattern.permute.xlu0 0
        %1891 = vperm.xlu0 %1890, %v1879
        %v1892 = vpop.permute.xlu0 %1891
        %1894 = vset.pattern.permute.xlu0 0
        %1895 = vperm.xlu0 %1894, %v1880
        %v1896 = vpop.permute.xlu0 %1895
        %1898 = vset.pattern.permute.xlu0 0
        %1899 = vperm.xlu0 %1898, %v1881
        %v1900 = vpop.permute.xlu0 %1899
        %1902 = vset.pattern.permute.xlu0 0
        %1903 = vperm.xlu0 %1902, %v1882
        %v1904 = vpop.permute.xlu0 %1903
        %1906 = vset.pattern.permute.xlu0 0
        %1907 = vperm.xlu0 %1906, %v1883
        %v1908 = vpop.permute.xlu0 %1907
        %1910 = vset.pattern.permute.xlu0 0
        %1911 = vperm.xlu0 %1910, %v1884
        %v1912 = vpop.permute.xlu0 %1911
        %1914 = vset.pattern.permute.xlu0 0
        %1915 = vperm.xlu0 %1914, %v1885
        %v1916 = vpop.permute.xlu0 %1915
        %v1918 = vmul.f32 %v1888, %v1821
        %v1919 = vmul.f32 %v1888, %v1822
        %v1920 = vmul.f32 %v1892, %v1821
        %v1921 = vmul.f32 %v1892, %v1822
        %v1922 = vmul.f32 %v1896, %v1821
        %v1923 = vmul.f32 %v1896, %v1822
        %v1924 = vmul.f32 %v1900, %v1821
        %v1925 = vmul.f32 %v1900, %v1822
        %v1926 = vmul.f32 %v1904, %v1821
        %v1927 = vmul.f32 %v1904, %v1822
        %v1928 = vmul.f32 %v1908, %v1821
        %v1929 = vmul.f32 %v1908, %v1822
        %v1930 = vmul.f32 %v1912, %v1821
        %v1931 = vmul.f32 %v1912, %v1822
        %v1932 = vmul.f32 %v1916, %v1821
        %v1933 = vmul.f32 %v1916, %v1822
        %v1934 = vmul.f32 %v1888, %v1837
        %v1935 = vmul.f32 %v1888, %v1838
        %v1936 = vmul.f32 %v1892, %v1837
        %v1937 = vmul.f32 %v1892, %v1838
        %v1938 = vmul.f32 %v1896, %v1837
        %v1939 = vmul.f32 %v1896, %v1838
        %v1940 = vmul.f32 %v1900, %v1837
        %v1941 = vmul.f32 %v1900, %v1838
        %v1942 = vmul.f32 %v1904, %v1837
        %v1943 = vmul.f32 %v1904, %v1838
        %v1944 = vmul.f32 %v1908, %v1837
        %v1945 = vmul.f32 %v1908, %v1838
        %v1946 = vmul.f32 %v1912, %v1837
        %v1947 = vmul.f32 %v1912, %v1838
        %v1948 = vmul.f32 %v1916, %v1837
        %v1949 = vmul.f32 %v1916, %v1838
        %v1950 = vadd.f32 %v1862, %v1918
        %v1951 = vadd.f32 %v1862, %v1919
        %v1952 = vadd.f32 %v1863, %v1920
        %v1953 = vadd.f32 %v1863, %v1921
        %v1954 = vadd.f32 %v1864, %v1922
        %v1955 = vadd.f32 %v1864, %v1923
        %v1956 = vadd.f32 %v1865, %v1924
        %v1957 = vadd.f32 %v1865, %v1925
        %v1958 = vadd.f32 %v1866, %v1926
        %v1959 = vadd.f32 %v1866, %v1927
        %v1960 = vadd.f32 %v1867, %v1928
        %v1961 = vadd.f32 %v1867, %v1929
        %v1962 = vadd.f32 %v1868, %v1930
        %v1963 = vadd.f32 %v1868, %v1931
        %v1964 = vadd.f32 %v1869, %v1932
        %v1965 = vadd.f32 %v1869, %v1933
        %v1966 = vadd.f32 %v1862, %v1934
        %v1967 = vadd.f32 %v1862, %v1935
        %v1968 = vadd.f32 %v1863, %v1936
        %v1969 = vadd.f32 %v1863, %v1937
        %v1970 = vadd.f32 %v1864, %v1938
        %v1971 = vadd.f32 %v1864, %v1939
        %v1972 = vadd.f32 %v1865, %v1940
        %v1973 = vadd.f32 %v1865, %v1941
        %v1974 = vadd.f32 %v1866, %v1942
        %v1975 = vadd.f32 %v1866, %v1943
        %v1976 = vadd.f32 %v1867, %v1944
        %v1977 = vadd.f32 %v1867, %v1945
        %v1978 = vadd.f32 %v1868, %v1946
        %v1979 = vadd.f32 %v1868, %v1947
        %v1980 = vadd.f32 %v1869, %v1948
        %v1981 = vadd.f32 %v1869, %v1949
        %1982 = vset.pattern.permute.xlu0 1
        %1983 = vperm.xlu0 %1982, %v1878
        %v1984 = vpop.permute.xlu0 %1983
        %1986 = vset.pattern.permute.xlu0 1
        %1987 = vperm.xlu0 %1986, %v1879
        %v1988 = vpop.permute.xlu0 %1987
        %1990 = vset.pattern.permute.xlu0 1
        %1991 = vperm.xlu0 %1990, %v1880
        %v1992 = vpop.permute.xlu0 %1991
        %1994 = vset.pattern.permute.xlu0 1
        %1995 = vperm.xlu0 %1994, %v1881
        %v1996 = vpop.permute.xlu0 %1995
        %1998 = vset.pattern.permute.xlu0 1
        %1999 = vperm.xlu0 %1998, %v1882
        %v2000 = vpop.permute.xlu0 %1999
        %2002 = vset.pattern.permute.xlu0 1
        %2003 = vperm.xlu0 %2002, %v1883
        %v2004 = vpop.permute.xlu0 %2003
        %2006 = vset.pattern.permute.xlu0 1
        %2007 = vperm.xlu0 %2006, %v1884
        %v2008 = vpop.permute.xlu0 %2007
        %2010 = vset.pattern.permute.xlu0 1
        %2011 = vperm.xlu0 %2010, %v1885
        %v2012 = vpop.permute.xlu0 %2011
        %v2014 = vmul.f32 %v1984, %v1823
        %v2015 = vmul.f32 %v1984, %v1824
        %v2016 = vmul.f32 %v1988, %v1823
        %v2017 = vmul.f32 %v1988, %v1824
        %v2018 = vmul.f32 %v1992, %v1823
        %v2019 = vmul.f32 %v1992, %v1824
        %v2020 = vmul.f32 %v1996, %v1823
        %v2021 = vmul.f32 %v1996, %v1824
        %v2022 = vmul.f32 %v2000, %v1823
        %v2023 = vmul.f32 %v2000, %v1824
        %v2024 = vmul.f32 %v2004, %v1823
        %v2025 = vmul.f32 %v2004, %v1824
        %v2026 = vmul.f32 %v2008, %v1823
        %v2027 = vmul.f32 %v2008, %v1824
        %v2028 = vmul.f32 %v2012, %v1823
        %v2029 = vmul.f32 %v2012, %v1824
        %v2030 = vmul.f32 %v1984, %v1839
        %v2031 = vmul.f32 %v1984, %v1840
        %v2032 = vmul.f32 %v1988, %v1839
        %v2033 = vmul.f32 %v1988, %v1840
        %v2034 = vmul.f32 %v1992, %v1839
        %v2035 = vmul.f32 %v1992, %v1840
        %v2036 = vmul.f32 %v1996, %v1839
        %v2037 = vmul.f32 %v1996, %v1840
        %v2038 = vmul.f32 %v2000, %v1839
        %v2039 = vmul.f32 %v2000, %v1840
        %v2040 = vmul.f32 %v2004, %v1839
        %v2041 = vmul.f32 %v2004, %v1840
        %v2042 = vmul.f32 %v2008, %v1839
        %v2043 = vmul.f32 %v2008, %v1840
        %v2044 = vmul.f32 %v2012, %v1839
        %v2045 = vmul.f32 %v2012, %v1840
        %v2046 = vadd.f32 %v1950, %v2014
        %v2047 = vadd.f32 %v1951, %v2015
        %v2048 = vadd.f32 %v1952, %v2016
        %v2049 = vadd.f32 %v1953, %v2017
        %v2050 = vadd.f32 %v1954, %v2018
        %v2051 = vadd.f32 %v1955, %v2019
        %v2052 = vadd.f32 %v1956, %v2020
        %v2053 = vadd.f32 %v1957, %v2021
        %v2054 = vadd.f32 %v1958, %v2022
        %v2055 = vadd.f32 %v1959, %v2023
        %v2056 = vadd.f32 %v1960, %v2024
        %v2057 = vadd.f32 %v1961, %v2025
        %v2058 = vadd.f32 %v1962, %v2026
        %v2059 = vadd.f32 %v1963, %v2027
        %v2060 = vadd.f32 %v1964, %v2028
        %v2061 = vadd.f32 %v1965, %v2029
        %v2062 = vadd.f32 %v1966, %v2030
        %v2063 = vadd.f32 %v1967, %v2031
        %v2064 = vadd.f32 %v1968, %v2032
        %v2065 = vadd.f32 %v1969, %v2033
        %v2066 = vadd.f32 %v1970, %v2034
        %v2067 = vadd.f32 %v1971, %v2035
        %v2068 = vadd.f32 %v1972, %v2036
        %v2069 = vadd.f32 %v1973, %v2037
        %v2070 = vadd.f32 %v1974, %v2038
        %v2071 = vadd.f32 %v1975, %v2039
        %v2072 = vadd.f32 %v1976, %v2040
        %v2073 = vadd.f32 %v1977, %v2041
        %v2074 = vadd.f32 %v1978, %v2042
        %v2075 = vadd.f32 %v1979, %v2043
        %v2076 = vadd.f32 %v1980, %v2044
        %v2077 = vadd.f32 %v1981, %v2045
        %2078 = vset.pattern.permute.xlu0 2
        %2079 = vperm.xlu0 %2078, %v1878
        %v2080 = vpop.permute.xlu0 %2079
        %2082 = vset.pattern.permute.xlu0 2
        %2083 = vperm.xlu0 %2082, %v1879
        %v2084 = vpop.permute.xlu0 %2083
        %2086 = vset.pattern.permute.xlu0 2
        %2087 = vperm.xlu0 %2086, %v1880
        %v2088 = vpop.permute.xlu0 %2087
        %2090 = vset.pattern.permute.xlu0 2
        %2091 = vperm.xlu0 %2090, %v1881
        %v2092 = vpop.permute.xlu0 %2091
        %2094 = vset.pattern.permute.xlu0 2
        %2095 = vperm.xlu0 %2094, %v1882
        %v2096 = vpop.permute.xlu0 %2095
        %2098 = vset.pattern.permute.xlu0 2
        %2099 = vperm.xlu0 %2098, %v1883
        %v2100 = vpop.permute.xlu0 %2099
        %2102 = vset.pattern.permute.xlu0 2
        %2103 = vperm.xlu0 %2102, %v1884
        %v2104 = vpop.permute.xlu0 %2103
        %2106 = vset.pattern.permute.xlu0 2
        %2107 = vperm.xlu0 %2106, %v1885
        %v2108 = vpop.permute.xlu0 %2107
        %v2110 = vmul.f32 %v2080, %v1825
        %v2111 = vmul.f32 %v2080, %v1826
        %v2112 = vmul.f32 %v2084, %v1825
        %v2113 = vmul.f32 %v2084, %v1826
        %v2114 = vmul.f32 %v2088, %v1825
        %v2115 = vmul.f32 %v2088, %v1826
        %v2116 = vmul.f32 %v2092, %v1825
        %v2117 = vmul.f32 %v2092, %v1826
        %v2118 = vmul.f32 %v2096, %v1825
        %v2119 = vmul.f32 %v2096, %v1826
        %v2120 = vmul.f32 %v2100, %v1825
        %v2121 = vmul.f32 %v2100, %v1826
        %v2122 = vmul.f32 %v2104, %v1825
        %v2123 = vmul.f32 %v2104, %v1826
        %v2124 = vmul.f32 %v2108, %v1825
        %v2125 = vmul.f32 %v2108, %v1826
        %v2126 = vmul.f32 %v2080, %v1841
        %v2127 = vmul.f32 %v2080, %v1842
        %v2128 = vmul.f32 %v2084, %v1841
        %v2129 = vmul.f32 %v2084, %v1842
        %v2130 = vmul.f32 %v2088, %v1841
        %v2131 = vmul.f32 %v2088, %v1842
        %v2132 = vmul.f32 %v2092, %v1841
        %v2133 = vmul.f32 %v2092, %v1842
        %v2134 = vmul.f32 %v2096, %v1841
        %v2135 = vmul.f32 %v2096, %v1842
        %v2136 = vmul.f32 %v2100, %v1841
        %v2137 = vmul.f32 %v2100, %v1842
        %v2138 = vmul.f32 %v2104, %v1841
        %v2139 = vmul.f32 %v2104, %v1842
        %v2140 = vmul.f32 %v2108, %v1841
        %v2141 = vmul.f32 %v2108, %v1842
        %v2142 = vadd.f32 %v2046, %v2110
        %v2143 = vadd.f32 %v2047, %v2111
        %v2144 = vadd.f32 %v2048, %v2112
        %v2145 = vadd.f32 %v2049, %v2113
        %v2146 = vadd.f32 %v2050, %v2114
        %v2147 = vadd.f32 %v2051, %v2115
        %v2148 = vadd.f32 %v2052, %v2116
        %v2149 = vadd.f32 %v2053, %v2117
        %v2150 = vadd.f32 %v2054, %v2118
        %v2151 = vadd.f32 %v2055, %v2119
        %v2152 = vadd.f32 %v2056, %v2120
        %v2153 = vadd.f32 %v2057, %v2121
        %v2154 = vadd.f32 %v2058, %v2122
        %v2155 = vadd.f32 %v2059, %v2123
        %v2156 = vadd.f32 %v2060, %v2124
        %v2157 = vadd.f32 %v2061, %v2125
        %v2158 = vadd.f32 %v2062, %v2126
        %v2159 = vadd.f32 %v2063, %v2127
        %v2160 = vadd.f32 %v2064, %v2128
        %v2161 = vadd.f32 %v2065, %v2129
        %v2162 = vadd.f32 %v2066, %v2130
        %v2163 = vadd.f32 %v2067, %v2131
        %v2164 = vadd.f32 %v2068, %v2132
        %v2165 = vadd.f32 %v2069, %v2133
        %v2166 = vadd.f32 %v2070, %v2134
        %v2167 = vadd.f32 %v2071, %v2135
        %v2168 = vadd.f32 %v2072, %v2136
        %v2169 = vadd.f32 %v2073, %v2137
        %v2170 = vadd.f32 %v2074, %v2138
        %v2171 = vadd.f32 %v2075, %v2139
        %v2172 = vadd.f32 %v2076, %v2140
        %v2173 = vadd.f32 %v2077, %v2141
        %2174 = vset.pattern.permute.xlu0 3
        %2175 = vperm.xlu0 %2174, %v1878
        %v2176 = vpop.permute.xlu0 %2175
        %2178 = vset.pattern.permute.xlu0 3
        %2179 = vperm.xlu0 %2178, %v1879
        %v2180 = vpop.permute.xlu0 %2179
        %2182 = vset.pattern.permute.xlu0 3
        %2183 = vperm.xlu0 %2182, %v1880
        %v2184 = vpop.permute.xlu0 %2183
        %2186 = vset.pattern.permute.xlu0 3
        %2187 = vperm.xlu0 %2186, %v1881
        %v2188 = vpop.permute.xlu0 %2187
        %2190 = vset.pattern.permute.xlu0 3
        %2191 = vperm.xlu0 %2190, %v1882
        %v2192 = vpop.permute.xlu0 %2191
        %2194 = vset.pattern.permute.xlu0 3
        %2195 = vperm.xlu0 %2194, %v1883
        %v2196 = vpop.permute.xlu0 %2195
        %2198 = vset.pattern.permute.xlu0 3
        %2199 = vperm.xlu0 %2198, %v1884
        %v2200 = vpop.permute.xlu0 %2199
        %2202 = vset.pattern.permute.xlu0 3
        %2203 = vperm.xlu0 %2202, %v1885
        %v2204 = vpop.permute.xlu0 %2203
        %v2206 = vmul.f32 %v2176, %v1827
        %v2207 = vmul.f32 %v2176, %v1828
        %v2208 = vmul.f32 %v2180, %v1827
        %v2209 = vmul.f32 %v2180, %v1828
        %v2210 = vmul.f32 %v2184, %v1827
        %v2211 = vmul.f32 %v2184, %v1828
        %v2212 = vmul.f32 %v2188, %v1827
        %v2213 = vmul.f32 %v2188, %v1828
        %v2214 = vmul.f32 %v2192, %v1827
        %v2215 = vmul.f32 %v2192, %v1828
        %v2216 = vmul.f32 %v2196, %v1827
        %v2217 = vmul.f32 %v2196, %v1828
        %v2218 = vmul.f32 %v2200, %v1827
        %v2219 = vmul.f32 %v2200, %v1828
        %v2220 = vmul.f32 %v2204, %v1827
        %v2221 = vmul.f32 %v2204, %v1828
        %v2222 = vmul.f32 %v2176, %v1843
        %v2223 = vmul.f32 %v2176, %v1844
        %v2224 = vmul.f32 %v2180, %v1843
        %v2225 = vmul.f32 %v2180, %v1844
        %v2226 = vmul.f32 %v2184, %v1843
        %v2227 = vmul.f32 %v2184, %v1844
        %v2228 = vmul.f32 %v2188, %v1843
        %v2229 = vmul.f32 %v2188, %v1844
        %v2230 = vmul.f32 %v2192, %v1843
        %v2231 = vmul.f32 %v2192, %v1844
        %v2232 = vmul.f32 %v2196, %v1843
        %v2233 = vmul.f32 %v2196, %v1844
        %v2234 = vmul.f32 %v2200, %v1843
        %v2235 = vmul.f32 %v2200, %v1844
        %v2236 = vmul.f32 %v2204, %v1843
        %v2237 = vmul.f32 %v2204, %v1844
        %v2238 = vadd.f32 %v2142, %v2206
        %v2239 = vadd.f32 %v2143, %v2207
        %v2240 = vadd.f32 %v2144, %v2208
        %v2241 = vadd.f32 %v2145, %v2209
        %v2242 = vadd.f32 %v2146, %v2210
        %v2243 = vadd.f32 %v2147, %v2211
        %v2244 = vadd.f32 %v2148, %v2212
        %v2245 = vadd.f32 %v2149, %v2213
        %v2246 = vadd.f32 %v2150, %v2214
        %v2247 = vadd.f32 %v2151, %v2215
        %v2248 = vadd.f32 %v2152, %v2216
        %v2249 = vadd.f32 %v2153, %v2217
        %v2250 = vadd.f32 %v2154, %v2218
        %v2251 = vadd.f32 %v2155, %v2219
        %v2252 = vadd.f32 %v2156, %v2220
        %v2253 = vadd.f32 %v2157, %v2221
        %v2254 = vadd.f32 %v2158, %v2222
        %v2255 = vadd.f32 %v2159, %v2223
        %v2256 = vadd.f32 %v2160, %v2224
        %v2257 = vadd.f32 %v2161, %v2225
        %v2258 = vadd.f32 %v2162, %v2226
        %v2259 = vadd.f32 %v2163, %v2227
        %v2260 = vadd.f32 %v2164, %v2228
        %v2261 = vadd.f32 %v2165, %v2229
        %v2262 = vadd.f32 %v2166, %v2230
        %v2263 = vadd.f32 %v2167, %v2231
        %v2264 = vadd.f32 %v2168, %v2232
        %v2265 = vadd.f32 %v2169, %v2233
        %v2266 = vadd.f32 %v2170, %v2234
        %v2267 = vadd.f32 %v2171, %v2235
        %v2268 = vadd.f32 %v2172, %v2236
        %v2269 = vadd.f32 %v2173, %v2237
        %2270 = vset.pattern.permute.xlu0 4
        %2271 = vperm.xlu0 %2270, %v1878
        %v2272 = vpop.permute.xlu0 %2271
        %2274 = vset.pattern.permute.xlu0 4
        %2275 = vperm.xlu0 %2274, %v1879
        %v2276 = vpop.permute.xlu0 %2275
        %2278 = vset.pattern.permute.xlu0 4
        %2279 = vperm.xlu0 %2278, %v1880
        %v2280 = vpop.permute.xlu0 %2279
        %2282 = vset.pattern.permute.xlu0 4
        %2283 = vperm.xlu0 %2282, %v1881
        %v2284 = vpop.permute.xlu0 %2283
        %2286 = vset.pattern.permute.xlu0 4
        %2287 = vperm.xlu0 %2286, %v1882
        %v2288 = vpop.permute.xlu0 %2287
        %2290 = vset.pattern.permute.xlu0 4
        %2291 = vperm.xlu0 %2290, %v1883
        %v2292 = vpop.permute.xlu0 %2291
        %2294 = vset.pattern.permute.xlu0 4
        %2295 = vperm.xlu0 %2294, %v1884
        %v2296 = vpop.permute.xlu0 %2295
        %2298 = vset.pattern.permute.xlu0 4
        %2299 = vperm.xlu0 %2298, %v1885
        %v2300 = vpop.permute.xlu0 %2299
        %v2302 = vmul.f32 %v2272, %v1829
        %v2303 = vmul.f32 %v2272, %v1830
        %v2304 = vmul.f32 %v2276, %v1829
        %v2305 = vmul.f32 %v2276, %v1830
        %v2306 = vmul.f32 %v2280, %v1829
        %v2307 = vmul.f32 %v2280, %v1830
        %v2308 = vmul.f32 %v2284, %v1829
        %v2309 = vmul.f32 %v2284, %v1830
        %v2310 = vmul.f32 %v2288, %v1829
        %v2311 = vmul.f32 %v2288, %v1830
        %v2312 = vmul.f32 %v2292, %v1829
        %v2313 = vmul.f32 %v2292, %v1830
        %v2314 = vmul.f32 %v2296, %v1829
        %v2315 = vmul.f32 %v2296, %v1830
        %v2316 = vmul.f32 %v2300, %v1829
        %v2317 = vmul.f32 %v2300, %v1830
        %v2318 = vmul.f32 %v2272, %v1845
        %v2319 = vmul.f32 %v2272, %v1846
        %v2320 = vmul.f32 %v2276, %v1845
        %v2321 = vmul.f32 %v2276, %v1846
        %v2322 = vmul.f32 %v2280, %v1845
        %v2323 = vmul.f32 %v2280, %v1846
        %v2324 = vmul.f32 %v2284, %v1845
        %v2325 = vmul.f32 %v2284, %v1846
        %v2326 = vmul.f32 %v2288, %v1845
        %v2327 = vmul.f32 %v2288, %v1846
        %v2328 = vmul.f32 %v2292, %v1845
        %v2329 = vmul.f32 %v2292, %v1846
        %v2330 = vmul.f32 %v2296, %v1845
        %v2331 = vmul.f32 %v2296, %v1846
        %v2332 = vmul.f32 %v2300, %v1845
        %v2333 = vmul.f32 %v2300, %v1846
        %v2334 = vadd.f32 %v2238, %v2302
        %v2335 = vadd.f32 %v2239, %v2303
        %v2336 = vadd.f32 %v2240, %v2304
        %v2337 = vadd.f32 %v2241, %v2305
        %v2338 = vadd.f32 %v2242, %v2306
        %v2339 = vadd.f32 %v2243, %v2307
        %v2340 = vadd.f32 %v2244, %v2308
        %v2341 = vadd.f32 %v2245, %v2309
        %v2342 = vadd.f32 %v2246, %v2310
        %v2343 = vadd.f32 %v2247, %v2311
        %v2344 = vadd.f32 %v2248, %v2312
        %v2345 = vadd.f32 %v2249, %v2313
        %v2346 = vadd.f32 %v2250, %v2314
        %v2347 = vadd.f32 %v2251, %v2315
        %v2348 = vadd.f32 %v2252, %v2316
        %v2349 = vadd.f32 %v2253, %v2317
        %v2350 = vadd.f32 %v2254, %v2318
        %v2351 = vadd.f32 %v2255, %v2319
        %v2352 = vadd.f32 %v2256, %v2320
        %v2353 = vadd.f32 %v2257, %v2321
        %v2354 = vadd.f32 %v2258, %v2322
        %v2355 = vadd.f32 %v2259, %v2323
        %v2356 = vadd.f32 %v2260, %v2324
        %v2357 = vadd.f32 %v2261, %v2325
        %v2358 = vadd.f32 %v2262, %v2326
        %v2359 = vadd.f32 %v2263, %v2327
        %v2360 = vadd.f32 %v2264, %v2328
        %v2361 = vadd.f32 %v2265, %v2329
        %v2362 = vadd.f32 %v2266, %v2330
        %v2363 = vadd.f32 %v2267, %v2331
        %v2364 = vadd.f32 %v2268, %v2332
        %v2365 = vadd.f32 %v2269, %v2333
        %2366 = vset.pattern.permute.xlu0 5
        %2367 = vperm.xlu0 %2366, %v1878
        %v2368 = vpop.permute.xlu0 %2367
        %2370 = vset.pattern.permute.xlu0 5
        %2371 = vperm.xlu0 %2370, %v1879
        %v2372 = vpop.permute.xlu0 %2371
        %2374 = vset.pattern.permute.xlu0 5
        %2375 = vperm.xlu0 %2374, %v1880
        %v2376 = vpop.permute.xlu0 %2375
        %2378 = vset.pattern.permute.xlu0 5
        %2379 = vperm.xlu0 %2378, %v1881
        %v2380 = vpop.permute.xlu0 %2379
        %2382 = vset.pattern.permute.xlu0 5
        %2383 = vperm.xlu0 %2382, %v1882
        %v2384 = vpop.permute.xlu0 %2383
        %2386 = vset.pattern.permute.xlu0 5
        %2387 = vperm.xlu0 %2386, %v1883
        %v2388 = vpop.permute.xlu0 %2387
        %2390 = vset.pattern.permute.xlu0 5
        %2391 = vperm.xlu0 %2390, %v1884
        %v2392 = vpop.permute.xlu0 %2391
        %2394 = vset.pattern.permute.xlu0 5
        %2395 = vperm.xlu0 %2394, %v1885
        %v2396 = vpop.permute.xlu0 %2395
        %v2398 = vmul.f32 %v2368, %v1831
        %v2399 = vmul.f32 %v2368, %v1832
        %v2400 = vmul.f32 %v2372, %v1831
        %v2401 = vmul.f32 %v2372, %v1832
        %v2402 = vmul.f32 %v2376, %v1831
        %v2403 = vmul.f32 %v2376, %v1832
        %v2404 = vmul.f32 %v2380, %v1831
        %v2405 = vmul.f32 %v2380, %v1832
        %v2406 = vmul.f32 %v2384, %v1831
        %v2407 = vmul.f32 %v2384, %v1832
        %v2408 = vmul.f32 %v2388, %v1831
        %v2409 = vmul.f32 %v2388, %v1832
        %v2410 = vmul.f32 %v2392, %v1831
        %v2411 = vmul.f32 %v2392, %v1832
        %v2412 = vmul.f32 %v2396, %v1831
        %v2413 = vmul.f32 %v2396, %v1832
        %v2414 = vmul.f32 %v2368, %v1847
        %v2415 = vmul.f32 %v2368, %v1848
        %v2416 = vmul.f32 %v2372, %v1847
        %v2417 = vmul.f32 %v2372, %v1848
        %v2418 = vmul.f32 %v2376, %v1847
        %v2419 = vmul.f32 %v2376, %v1848
        %v2420 = vmul.f32 %v2380, %v1847
        %v2421 = vmul.f32 %v2380, %v1848
        %v2422 = vmul.f32 %v2384, %v1847
        %v2423 = vmul.f32 %v2384, %v1848
        %v2424 = vmul.f32 %v2388, %v1847
        %v2425 = vmul.f32 %v2388, %v1848
        %v2426 = vmul.f32 %v2392, %v1847
        %v2427 = vmul.f32 %v2392, %v1848
        %v2428 = vmul.f32 %v2396, %v1847
        %v2429 = vmul.f32 %v2396, %v1848
        %v2430 = vadd.f32 %v2334, %v2398
        %v2431 = vadd.f32 %v2335, %v2399
        %v2432 = vadd.f32 %v2336, %v2400
        %v2433 = vadd.f32 %v2337, %v2401
        %v2434 = vadd.f32 %v2338, %v2402
        %v2435 = vadd.f32 %v2339, %v2403
        %v2436 = vadd.f32 %v2340, %v2404
        %v2437 = vadd.f32 %v2341, %v2405
        %v2438 = vadd.f32 %v2342, %v2406
        %v2439 = vadd.f32 %v2343, %v2407
        %v2440 = vadd.f32 %v2344, %v2408
        %v2441 = vadd.f32 %v2345, %v2409
        %v2442 = vadd.f32 %v2346, %v2410
        %v2443 = vadd.f32 %v2347, %v2411
        %v2444 = vadd.f32 %v2348, %v2412
        %v2445 = vadd.f32 %v2349, %v2413
        %v2446 = vadd.f32 %v2350, %v2414
        %v2447 = vadd.f32 %v2351, %v2415
        %v2448 = vadd.f32 %v2352, %v2416
        %v2449 = vadd.f32 %v2353, %v2417
        %v2450 = vadd.f32 %v2354, %v2418
        %v2451 = vadd.f32 %v2355, %v2419
        %v2452 = vadd.f32 %v2356, %v2420
        %v2453 = vadd.f32 %v2357, %v2421
        %v2454 = vadd.f32 %v2358, %v2422
        %v2455 = vadd.f32 %v2359, %v2423
        %v2456 = vadd.f32 %v2360, %v2424
        %v2457 = vadd.f32 %v2361, %v2425
        %v2458 = vadd.f32 %v2362, %v2426
        %v2459 = vadd.f32 %v2363, %v2427
        %v2460 = vadd.f32 %v2364, %v2428
        %v2461 = vadd.f32 %v2365, %v2429
        %2462 = vset.pattern.permute.xlu0 6
        %2463 = vperm.xlu0 %2462, %v1878
        %v2464 = vpop.permute.xlu0 %2463
        %2466 = vset.pattern.permute.xlu0 6
        %2467 = vperm.xlu0 %2466, %v1879
        %v2468 = vpop.permute.xlu0 %2467
        %2470 = vset.pattern.permute.xlu0 6
        %2471 = vperm.xlu0 %2470, %v1880
        %v2472 = vpop.permute.xlu0 %2471
        %2474 = vset.pattern.permute.xlu0 6
        %2475 = vperm.xlu0 %2474, %v1881
        %v2476 = vpop.permute.xlu0 %2475
        %2478 = vset.pattern.permute.xlu0 6
        %2479 = vperm.xlu0 %2478, %v1882
        %v2480 = vpop.permute.xlu0 %2479
        %2482 = vset.pattern.permute.xlu0 6
        %2483 = vperm.xlu0 %2482, %v1883
        %v2484 = vpop.permute.xlu0 %2483
        %2486 = vset.pattern.permute.xlu0 6
        %2487 = vperm.xlu0 %2486, %v1884
        %v2488 = vpop.permute.xlu0 %2487
        %2490 = vset.pattern.permute.xlu0 6
        %2491 = vperm.xlu0 %2490, %v1885
        %v2492 = vpop.permute.xlu0 %2491
        %v2494 = vmul.f32 %v2464, %v1833
        %v2495 = vmul.f32 %v2464, %v1834
        %v2496 = vmul.f32 %v2468, %v1833
        %v2497 = vmul.f32 %v2468, %v1834
        %v2498 = vmul.f32 %v2472, %v1833
        %v2499 = vmul.f32 %v2472, %v1834
        %v2500 = vmul.f32 %v2476, %v1833
        %v2501 = vmul.f32 %v2476, %v1834
        %v2502 = vmul.f32 %v2480, %v1833
        %v2503 = vmul.f32 %v2480, %v1834
        %v2504 = vmul.f32 %v2484, %v1833
        %v2505 = vmul.f32 %v2484, %v1834
        %v2506 = vmul.f32 %v2488, %v1833
        %v2507 = vmul.f32 %v2488, %v1834
        %v2508 = vmul.f32 %v2492, %v1833
        %v2509 = vmul.f32 %v2492, %v1834
        %v2510 = vmul.f32 %v2464, %v1849
        %v2511 = vmul.f32 %v2464, %v1850
        %v2512 = vmul.f32 %v2468, %v1849
        %v2513 = vmul.f32 %v2468, %v1850
        %v2514 = vmul.f32 %v2472, %v1849
        %v2515 = vmul.f32 %v2472, %v1850
        %v2516 = vmul.f32 %v2476, %v1849
        %v2517 = vmul.f32 %v2476, %v1850
        %v2518 = vmul.f32 %v2480, %v1849
        %v2519 = vmul.f32 %v2480, %v1850
        %v2520 = vmul.f32 %v2484, %v1849
        %v2521 = vmul.f32 %v2484, %v1850
        %v2522 = vmul.f32 %v2488, %v1849
        %v2523 = vmul.f32 %v2488, %v1850
        %v2524 = vmul.f32 %v2492, %v1849
        %v2525 = vmul.f32 %v2492, %v1850
        %v2526 = vadd.f32 %v2430, %v2494
        %v2527 = vadd.f32 %v2431, %v2495
        %v2528 = vadd.f32 %v2432, %v2496
        %v2529 = vadd.f32 %v2433, %v2497
        %v2530 = vadd.f32 %v2434, %v2498
        %v2531 = vadd.f32 %v2435, %v2499
        %v2532 = vadd.f32 %v2436, %v2500
        %v2533 = vadd.f32 %v2437, %v2501
        %v2534 = vadd.f32 %v2438, %v2502
        %v2535 = vadd.f32 %v2439, %v2503
        %v2536 = vadd.f32 %v2440, %v2504
        %v2537 = vadd.f32 %v2441, %v2505
        %v2538 = vadd.f32 %v2442, %v2506
        %v2539 = vadd.f32 %v2443, %v2507
        %v2540 = vadd.f32 %v2444, %v2508
        %v2541 = vadd.f32 %v2445, %v2509
        %v2542 = vadd.f32 %v2446, %v2510
        %v2543 = vadd.f32 %v2447, %v2511
        %v2544 = vadd.f32 %v2448, %v2512
        %v2545 = vadd.f32 %v2449, %v2513
        %v2546 = vadd.f32 %v2450, %v2514
        %v2547 = vadd.f32 %v2451, %v2515
        %v2548 = vadd.f32 %v2452, %v2516
        %v2549 = vadd.f32 %v2453, %v2517
        %v2550 = vadd.f32 %v2454, %v2518
        %v2551 = vadd.f32 %v2455, %v2519
        %v2552 = vadd.f32 %v2456, %v2520
        %v2553 = vadd.f32 %v2457, %v2521
        %v2554 = vadd.f32 %v2458, %v2522
        %v2555 = vadd.f32 %v2459, %v2523
        %v2556 = vadd.f32 %v2460, %v2524
        %v2557 = vadd.f32 %v2461, %v2525
        %2558 = vset.pattern.permute.xlu0 7
        %2559 = vperm.xlu0 %2558, %v1878
        %v2560 = vpop.permute.xlu0 %2559
        %2562 = vset.pattern.permute.xlu0 7
        %2563 = vperm.xlu0 %2562, %v1879
        %v2564 = vpop.permute.xlu0 %2563
        %2566 = vset.pattern.permute.xlu0 7
        %2567 = vperm.xlu0 %2566, %v1880
        %v2568 = vpop.permute.xlu0 %2567
        %2570 = vset.pattern.permute.xlu0 7
        %2571 = vperm.xlu0 %2570, %v1881
        %v2572 = vpop.permute.xlu0 %2571
        %2574 = vset.pattern.permute.xlu0 7
        %2575 = vperm.xlu0 %2574, %v1882
        %v2576 = vpop.permute.xlu0 %2575
        %2578 = vset.pattern.permute.xlu0 7
        %2579 = vperm.xlu0 %2578, %v1883
        %v2580 = vpop.permute.xlu0 %2579
        %2582 = vset.pattern.permute.xlu0 7
        %2583 = vperm.xlu0 %2582, %v1884
        %v2584 = vpop.permute.xlu0 %2583
        %2586 = vset.pattern.permute.xlu0 7
        %2587 = vperm.xlu0 %2586, %v1885
        %v2588 = vpop.permute.xlu0 %2587
        %v2590 = vmul.f32 %v2560, %v1835
        %v2591 = vmul.f32 %v2560, %v1836
        %v2592 = vmul.f32 %v2564, %v1835
        %v2593 = vmul.f32 %v2564, %v1836
        %v2594 = vmul.f32 %v2568, %v1835
        %v2595 = vmul.f32 %v2568, %v1836
        %v2596 = vmul.f32 %v2572, %v1835
        %v2597 = vmul.f32 %v2572, %v1836
        %v2598 = vmul.f32 %v2576, %v1835
        %v2599 = vmul.f32 %v2576, %v1836
        %v2600 = vmul.f32 %v2580, %v1835
        %v2601 = vmul.f32 %v2580, %v1836
        %v2602 = vmul.f32 %v2584, %v1835
        %v2603 = vmul.f32 %v2584, %v1836
        %v2604 = vmul.f32 %v2588, %v1835
        %v2605 = vmul.f32 %v2588, %v1836
        %v2606 = vmul.f32 %v2560, %v1851
        %v2607 = vmul.f32 %v2560, %v1852
        %v2608 = vmul.f32 %v2564, %v1851
        %v2609 = vmul.f32 %v2564, %v1852
        %v2610 = vmul.f32 %v2568, %v1851
        %v2611 = vmul.f32 %v2568, %v1852
        %v2612 = vmul.f32 %v2572, %v1851
        %v2613 = vmul.f32 %v2572, %v1852
        %v2614 = vmul.f32 %v2576, %v1851
        %v2615 = vmul.f32 %v2576, %v1852
        %v2616 = vmul.f32 %v2580, %v1851
        %v2617 = vmul.f32 %v2580, %v1852
        %v2618 = vmul.f32 %v2584, %v1851
        %v2619 = vmul.f32 %v2584, %v1852
        %v2620 = vmul.f32 %v2588, %v1851
        %v2621 = vmul.f32 %v2588, %v1852
        %v2622 = vadd.f32 %v2526, %v2590
        %v2623 = vadd.f32 %v2527, %v2591
        %v2624 = vadd.f32 %v2528, %v2592
        %v2625 = vadd.f32 %v2529, %v2593
        %v2626 = vadd.f32 %v2530, %v2594
        %v2627 = vadd.f32 %v2531, %v2595
        %v2628 = vadd.f32 %v2532, %v2596
        %v2629 = vadd.f32 %v2533, %v2597
        %v2630 = vadd.f32 %v2534, %v2598
        %v2631 = vadd.f32 %v2535, %v2599
        %v2632 = vadd.f32 %v2536, %v2600
        %v2633 = vadd.f32 %v2537, %v2601
        %v2634 = vadd.f32 %v2538, %v2602
        %v2635 = vadd.f32 %v2539, %v2603
        %v2636 = vadd.f32 %v2540, %v2604
        %v2637 = vadd.f32 %v2541, %v2605
        %v2638 = vadd.f32 %v2542, %v2606
        %v2639 = vadd.f32 %v2543, %v2607
        %v2640 = vadd.f32 %v2544, %v2608
        %v2641 = vadd.f32 %v2545, %v2609
        %v2642 = vadd.f32 %v2546, %v2610
        %v2643 = vadd.f32 %v2547, %v2611
        %v2644 = vadd.f32 %v2548, %v2612
        %v2645 = vadd.f32 %v2549, %v2613
        %v2646 = vadd.f32 %v2550, %v2614
        %v2647 = vadd.f32 %v2551, %v2615
        %v2648 = vadd.f32 %v2552, %v2616
        %v2649 = vadd.f32 %v2553, %v2617
        %v2650 = vadd.f32 %v2554, %v2618
        %v2651 = vadd.f32 %v2555, %v2619
        %v2652 = vadd.f32 %v2556, %v2620
        %v2653 = vadd.f32 %v2557, %v2621
        %v2654 = vld [vmem:[%s1] sm:$0xff]
        %v2655 = vld [vmem:[%s1 + $0x8] sm:$0xff]
        %v2656 = vadd.f32 %v2622, %v2654
        %v2657 = vadd.f32 %v2623, %v2655
        %v2658 = vadd.f32 %v2624, %v2654
        %v2659 = vadd.f32 %v2625, %v2655
        %v2660 = vadd.f32 %v2626, %v2654
        %v2661 = vadd.f32 %v2627, %v2655
        %v2662 = vadd.f32 %v2628, %v2654
        %v2663 = vadd.f32 %v2629, %v2655
        %v2664 = vadd.f32 %v2630, %v2654
        %v2665 = vadd.f32 %v2631, %v2655
        %v2666 = vadd.f32 %v2632, %v2654
        %v2667 = vadd.f32 %v2633, %v2655
        %v2668 = vadd.f32 %v2634, %v2654
        %v2669 = vadd.f32 %v2635, %v2655
        %v2670 = vadd.f32 %v2636, %v2654
        %v2671 = vadd.f32 %v2637, %v2655
        %v2672 = vadd.f32 %v2638, %v2654
        %v2673 = vadd.f32 %v2639, %v2655
        %v2674 = vadd.f32 %v2640, %v2654
        %v2675 = vadd.f32 %v2641, %v2655
        %v2676 = vadd.f32 %v2642, %v2654
        %v2677 = vadd.f32 %v2643, %v2655
        %v2678 = vadd.f32 %v2644, %v2654
        %v2679 = vadd.f32 %v2645, %v2655
        %v2680 = vadd.f32 %v2646, %v2654
        %v2681 = vadd.f32 %v2647, %v2655
        %v2682 = vadd.f32 %v2648, %v2654
        %v2683 = vadd.f32 %v2649, %v2655
        %v2684 = vadd.f32 %v2650, %v2654
        %v2685 = vadd.f32 %v2651, %v2655
        %v2686 = vadd.f32 %v2652, %v2654
        %v2687 = vadd.f32 %v2653, %v2655
        %v2688 = vperm.slane %v583, 0
        %v2689 = vlaneseq
        %v2690 = vshrl.u32 %v2689, 7
        %2692 = vset.pattern.permute.xlu0 %v2690
        %2693 = vperm.xlu0 %2692, %v2688
        %v2694 = vpop.permute.xlu0 %2693
        %v2695 = vlaneseq
        %v2696 = vshrl.u32 %v2695, 7
        %v2697 = vadd.s32 %v2696, 8
        %2698 = vset.pattern.permute.xlu0 %v2697
        %2699 = vperm.xlu0 %2698, %v2688
        %v2700 = vpop.permute.xlu0 %2699
        %v2701 = vperm.slane %v583, 1
        %v2702 = vlaneseq
        %v2703 = vshrl.u32 %v2702, 7
        %2705 = vset.pattern.permute.xlu0 %v2703
        %2706 = vperm.xlu0 %2705, %v2701
        %v2707 = vpop.permute.xlu0 %2706
        %v2708 = vlaneseq
        %v2709 = vshrl.u32 %v2708, 7
        %v2710 = vadd.s32 %v2709, 8
        %2711 = vset.pattern.permute.xlu0 %v2710
        %2712 = vperm.xlu0 %2711, %v2701
        %v2713 = vpop.permute.xlu0 %2712
        %v2714 = vperm.slane %v583, 2
        %v2715 = vlaneseq
        %v2716 = vshrl.u32 %v2715, 7
        %2718 = vset.pattern.permute.xlu0 %v2716
        %2719 = vperm.xlu0 %2718, %v2714
        %v2720 = vpop.permute.xlu0 %2719
        %v2721 = vlaneseq
        %v2722 = vshrl.u32 %v2721, 7
        %v2723 = vadd.s32 %v2722, 8
        %2724 = vset.pattern.permute.xlu0 %v2723
        %2725 = vperm.xlu0 %2724, %v2714
        %v2726 = vpop.permute.xlu0 %2725
        %v2727 = vperm.slane %v583, 3
        %v2728 = vlaneseq
        %v2729 = vshrl.u32 %v2728, 7
        %2731 = vset.pattern.permute.xlu0 %v2729
        %2732 = vperm.xlu0 %2731, %v2727
        %v2733 = vpop.permute.xlu0 %2732
        %v2734 = vlaneseq
        %v2735 = vshrl.u32 %v2734, 7
        %v2736 = vadd.s32 %v2735, 8
        %2737 = vset.pattern.permute.xlu0 %v2736
        %2738 = vperm.xlu0 %2737, %v2727
        %v2739 = vpop.permute.xlu0 %2738
        %v2740 = vperm.slane %v583, 4
        %v2741 = vlaneseq
        %v2742 = vshrl.u32 %v2741, 7
        %2744 = vset.pattern.permute.xlu0 %v2742
        %2745 = vperm.xlu0 %2744, %v2740
        %v2746 = vpop.permute.xlu0 %2745
        %v2747 = vlaneseq
        %v2748 = vshrl.u32 %v2747, 7
        %v2749 = vadd.s32 %v2748, 8
        %2750 = vset.pattern.permute.xlu0 %v2749
        %2751 = vperm.xlu0 %2750, %v2740
        %v2752 = vpop.permute.xlu0 %2751
        %v2753 = vperm.slane %v583, 5
        %v2754 = vlaneseq
        %v2755 = vshrl.u32 %v2754, 7
        %2757 = vset.pattern.permute.xlu0 %v2755
        %2758 = vperm.xlu0 %2757, %v2753
        %v2759 = vpop.permute.xlu0 %2758
        %v2760 = vlaneseq
        %v2761 = vshrl.u32 %v2760, 7
        %v2762 = vadd.s32 %v2761, 8
        %2763 = vset.pattern.permute.xlu0 %v2762
        %2764 = vperm.xlu0 %2763, %v2753
        %v2765 = vpop.permute.xlu0 %2764
        %v2766 = vperm.slane %v583, 6
        %v2767 = vlaneseq
        %v2768 = vshrl.u32 %v2767, 7
        %2770 = vset.pattern.permute.xlu0 %v2768
        %2771 = vperm.xlu0 %2770, %v2766
        %v2772 = vpop.permute.xlu0 %2771
        %v2773 = vlaneseq
        %v2774 = vshrl.u32 %v2773, 7
        %v2775 = vadd.s32 %v2774, 8
        %2776 = vset.pattern.permute.xlu0 %v2775
        %2777 = vperm.xlu0 %2776, %v2766
        %v2778 = vpop.permute.xlu0 %2777
        %v2779 = vperm.slane %v583, 7
        %v2780 = vlaneseq
        %v2781 = vshrl.u32 %v2780, 7
        %2783 = vset.pattern.permute.xlu0 %v2781
        %2784 = vperm.xlu0 %2783, %v2779
        %v2785 = vpop.permute.xlu0 %2784
        %v2786 = vlaneseq
        %v2787 = vshrl.u32 %v2786, 7
        %v2788 = vadd.s32 %v2787, 8
        %2789 = vset.pattern.permute.xlu0 %v2788
        %2790 = vperm.xlu0 %2789, %v2779
        %v2791 = vpop.permute.xlu0 %2790
        %v2792 = vperm.slane %v589, 0
        %v2793 = vlaneseq
        %v2794 = vshrl.u32 %v2793, 7
        %2796 = vset.pattern.permute.xlu0 %v2794
        %2797 = vperm.xlu0 %2796, %v2792
        %v2798 = vpop.permute.xlu0 %2797
        %v2799 = vlaneseq
        %v2800 = vshrl.u32 %v2799, 7
        %v2801 = vadd.s32 %v2800, 8
        %2802 = vset.pattern.permute.xlu0 %v2801
        %2803 = vperm.xlu0 %2802, %v2792
        %v2804 = vpop.permute.xlu0 %2803
        %v2805 = vperm.slane %v589, 1
        %v2806 = vlaneseq
        %v2807 = vshrl.u32 %v2806, 7
        %2809 = vset.pattern.permute.xlu0 %v2807
        %2810 = vperm.xlu0 %2809, %v2805
        %v2811 = vpop.permute.xlu0 %2810
        %v2812 = vlaneseq
        %v2813 = vshrl.u32 %v2812, 7
        %v2814 = vadd.s32 %v2813, 8
        %2815 = vset.pattern.permute.xlu0 %v2814
        %2816 = vperm.xlu0 %2815, %v2805
        %v2817 = vpop.permute.xlu0 %2816
        %v2818 = vperm.slane %v589, 2
        %v2819 = vlaneseq
        %v2820 = vshrl.u32 %v2819, 7
        %2822 = vset.pattern.permute.xlu0 %v2820
        %2823 = vperm.xlu0 %2822, %v2818
        %v2824 = vpop.permute.xlu0 %2823
        %v2825 = vlaneseq
        %v2826 = vshrl.u32 %v2825, 7
        %v2827 = vadd.s32 %v2826, 8
        %2828 = vset.pattern.permute.xlu0 %v2827
        %2829 = vperm.xlu0 %2828, %v2818
        %v2830 = vpop.permute.xlu0 %2829
        %v2831 = vperm.slane %v589, 3
        %v2832 = vlaneseq
        %v2833 = vshrl.u32 %v2832, 7
        %2835 = vset.pattern.permute.xlu0 %v2833
        %2836 = vperm.xlu0 %2835, %v2831
        %v2837 = vpop.permute.xlu0 %2836
        %v2838 = vlaneseq
        %v2839 = vshrl.u32 %v2838, 7
        %v2840 = vadd.s32 %v2839, 8
        %2841 = vset.pattern.permute.xlu0 %v2840
        %2842 = vperm.xlu0 %2841, %v2831
        %v2843 = vpop.permute.xlu0 %2842
        %v2844 = vperm.slane %v589, 4
        %v2845 = vlaneseq
        %v2846 = vshrl.u32 %v2845, 7
        %2848 = vset.pattern.permute.xlu0 %v2846
        %2849 = vperm.xlu0 %2848, %v2844
        %v2850 = vpop.permute.xlu0 %2849
        %v2851 = vlaneseq
        %v2852 = vshrl.u32 %v2851, 7
        %v2853 = vadd.s32 %v2852, 8
        %2854 = vset.pattern.permute.xlu0 %v2853
        %2855 = vperm.xlu0 %2854, %v2844
        %v2856 = vpop.permute.xlu0 %2855
        %v2857 = vperm.slane %v589, 5
        %v2858 = vlaneseq
        %v2859 = vshrl.u32 %v2858, 7
        %2861 = vset.pattern.permute.xlu0 %v2859
        %2862 = vperm.xlu0 %2861, %v2857
        %v2863 = vpop.permute.xlu0 %2862
        %v2864 = vlaneseq
        %v2865 = vshrl.u32 %v2864, 7
        %v2866 = vadd.s32 %v2865, 8
        %2867 = vset.pattern.permute.xlu0 %v2866
        %2868 = vperm.xlu0 %2867, %v2857
        %v2869 = vpop.permute.xlu0 %2868
        %v2870 = vperm.slane %v589, 6
        %v2871 = vlaneseq
        %v2872 = vshrl.u32 %v2871, 7
        %2874 = vset.pattern.permute.xlu0 %v2872
        %2875 = vperm.xlu0 %2874, %v2870
        %v2876 = vpop.permute.xlu0 %2875
        %v2877 = vlaneseq
        %v2878 = vshrl.u32 %v2877, 7
        %v2879 = vadd.s32 %v2878, 8
        %2880 = vset.pattern.permute.xlu0 %v2879
        %2881 = vperm.xlu0 %2880, %v2870
        %v2882 = vpop.permute.xlu0 %2881
        %v2883 = vperm.slane %v589, 7
        %v2884 = vlaneseq
        %v2885 = vshrl.u32 %v2884, 7
        %2887 = vset.pattern.permute.xlu0 %v2885
        %2888 = vperm.xlu0 %2887, %v2883
        %v2889 = vpop.permute.xlu0 %2888
        %v2890 = vlaneseq
        %v2891 = vshrl.u32 %v2890, 7
        %v2892 = vadd.s32 %v2891, 8
        %2893 = vset.pattern.permute.xlu0 %v2892
        %2894 = vperm.xlu0 %2893, %v2883
        %v2895 = vpop.permute.xlu0 %2894
        %v2898 = vrot.slane %v586, 1
        %v2899 = vrot.slane %v586, 2
        %v2900 = vrot.slane %v586, 3
        %v2901 = vrot.slane %v586, 4
        %v2902 = vrot.slane %v586, 5
        %v2903 = vrot.slane %v586, 6
        %v2904 = vrot.slane %v586, 7
        %v2905 = vrot.slane %v592, 1
        %v2906 = vrot.slane %v592, 2
        %v2907 = vrot.slane %v592, 3
        %v2908 = vrot.slane %v592, 4
        %v2909 = vrot.slane %v592, 5
        %v2910 = vrot.slane %v592, 6
        %v2911 = vrot.slane %v592, 7
        %v2912 = vperm.slane %v586, 0
        %v2913 = vperm.slane %v2898, 0
        %v2914 = vperm.slane %v2899, 0
        %v2915 = vperm.slane %v2900, 0
        %v2916 = vperm.slane %v2901, 0
        %v2917 = vperm.slane %v2902, 0
        %v2918 = vperm.slane %v2903, 0
        %v2919 = vperm.slane %v2904, 0
        %v2920 = vperm.slane %v592, 0
        %v2921 = vperm.slane %v2905, 0
        %v2922 = vperm.slane %v2906, 0
        %v2923 = vperm.slane %v2907, 0
        %v2924 = vperm.slane %v2908, 0
        %v2925 = vperm.slane %v2909, 0
        %v2926 = vperm.slane %v2910, 0
        %v2927 = vperm.slane %v2911, 0
        %v2944 = vsub.f32 %v2694, %v2912
        %v2945 = vsub.f32 %v2700, %v2912
        %v2946 = vsub.f32 %v2707, %v2913
        %v2947 = vsub.f32 %v2713, %v2913
        %v2948 = vsub.f32 %v2720, %v2914
        %v2949 = vsub.f32 %v2726, %v2914
        %v2950 = vsub.f32 %v2733, %v2915
        %v2951 = vsub.f32 %v2739, %v2915
        %v2952 = vsub.f32 %v2746, %v2916
        %v2953 = vsub.f32 %v2752, %v2916
        %v2954 = vsub.f32 %v2759, %v2917
        %v2955 = vsub.f32 %v2765, %v2917
        %v2956 = vsub.f32 %v2772, %v2918
        %v2957 = vsub.f32 %v2778, %v2918
        %v2958 = vsub.f32 %v2785, %v2919
        %v2959 = vsub.f32 %v2791, %v2919
        %v2960 = vsub.f32 %v2798, %v2920
        %v2961 = vsub.f32 %v2804, %v2920
        %v2962 = vsub.f32 %v2811, %v2921
        %v2963 = vsub.f32 %v2817, %v2921
        %v2964 = vsub.f32 %v2824, %v2922
        %v2965 = vsub.f32 %v2830, %v2922
        %v2966 = vsub.f32 %v2837, %v2923
        %v2967 = vsub.f32 %v2843, %v2923
        %v2968 = vsub.f32 %v2850, %v2924
        %v2969 = vsub.f32 %v2856, %v2924
        %v2970 = vsub.f32 %v2863, %v2925
        %v2971 = vsub.f32 %v2869, %v2925
        %v2972 = vsub.f32 %v2876, %v2926
        %v2973 = vsub.f32 %v2882, %v2926
        %v2974 = vsub.f32 %v2889, %v2927
        %v2975 = vsub.f32 %v2895, %v2927
        %v2976 = vtanh.pop %v2944
        %v2977 = vtanh.pop %v2945
        %v2978 = vtanh.pop %v2946
        %v2979 = vtanh.pop %v2947
        %v2980 = vtanh.pop %v2948
        %v2981 = vtanh.pop %v2949
        %v2982 = vtanh.pop %v2950
        %v2983 = vtanh.pop %v2951
        %v2984 = vtanh.pop %v2952
        %v2985 = vtanh.pop %v2953
        %v2986 = vtanh.pop %v2954
        %v2987 = vtanh.pop %v2955
        %v2988 = vtanh.pop %v2956
        %v2989 = vtanh.pop %v2957
        %v2990 = vtanh.pop %v2958
        %v2991 = vtanh.pop %v2959
        %v2992 = vtanh.pop %v2960
        %v2993 = vtanh.pop %v2961
        %v2994 = vtanh.pop %v2962
        %v2995 = vtanh.pop %v2963
        %v2996 = vtanh.pop %v2964
        %v2997 = vtanh.pop %v2965
        %v2998 = vtanh.pop %v2966
        %v2999 = vtanh.pop %v2967
        %v3000 = vtanh.pop %v2968
        %v3001 = vtanh.pop %v2969
        %v3002 = vtanh.pop %v2970
        %v3003 = vtanh.pop %v2971
        %v3004 = vtanh.pop %v2972
        %v3005 = vtanh.pop %v2973
        %v3006 = vtanh.pop %v2974
        %v3007 = vtanh.pop %v2975
        %s3008 = scalar_lea.vmem %s6, 8
        %v3009 = vld [vmem:[%s3008] sm:$0xff]
        %v3010 = vld [vmem:[%s7 + $0x1] sm:$0x1]
        %v3011 = vperm.slane %v3010, 0
        %v3012 = vlaneseq
        %v3013 = vshrl.u32 %v3012, 7
        %3015 = vset.pattern.permute.xlu0 %v3013
        %3016 = vperm.xlu0 %3015, %v3011
        %v3017 = vpop.permute.xlu0 %3016
        %v3018 = vperm.slane %v3017, 0
        %v3019 = vperm.slane %v3017, 1
        %v3020 = vperm.slane %v3017, 2
        %v3021 = vperm.slane %v3017, 3
        %v3022 = vperm.slane %v3017, 4
        %v3023 = vperm.slane %v3017, 5
        %v3024 = vperm.slane %v3017, 6
        %v3025 = vperm.slane %v3017, 7
        %v3027 = vrot.slane %v3009, 1
        %v3028 = vrot.slane %v3009, 2
        %v3029 = vrot.slane %v3009, 3
        %v3030 = vrot.slane %v3009, 4
        %v3031 = vrot.slane %v3009, 5
        %v3032 = vrot.slane %v3009, 6
        %v3033 = vrot.slane %v3009, 7
        %v3034 = vperm.slane %v3009, 0
        %v3035 = vperm.slane %v3027, 0
        %v3036 = vperm.slane %v3028, 0
        %v3037 = vperm.slane %v3029, 0
        %v3038 = vperm.slane %v3030, 0
        %v3039 = vperm.slane %v3031, 0
        %v3040 = vperm.slane %v3032, 0
        %v3041 = vperm.slane %v3033, 0
        %3042 = vset.pattern.permute.xlu0 0
        %3043 = vperm.xlu0 %3042, %v3034
        %v3044 = vpop.permute.xlu0 %3043
        %3046 = vset.pattern.permute.xlu0 0
        %3047 = vperm.xlu0 %3046, %v3035
        %v3048 = vpop.permute.xlu0 %3047
        %3050 = vset.pattern.permute.xlu0 0
        %3051 = vperm.xlu0 %3050, %v3036
        %v3052 = vpop.permute.xlu0 %3051
        %3054 = vset.pattern.permute.xlu0 0
        %3055 = vperm.xlu0 %3054, %v3037
        %v3056 = vpop.permute.xlu0 %3055
        %3058 = vset.pattern.permute.xlu0 0
        %3059 = vperm.xlu0 %3058, %v3038
        %v3060 = vpop.permute.xlu0 %3059
        %3062 = vset.pattern.permute.xlu0 0
        %3063 = vperm.xlu0 %3062, %v3039
        %v3064 = vpop.permute.xlu0 %3063
        %3066 = vset.pattern.permute.xlu0 0
        %3067 = vperm.xlu0 %3066, %v3040
        %v3068 = vpop.permute.xlu0 %3067
        %3070 = vset.pattern.permute.xlu0 0
        %3071 = vperm.xlu0 %3070, %v3041
        %v3072 = vpop.permute.xlu0 %3071
        %v3074 = vmul.f32 %v3044, %v2976
        %v3075 = vmul.f32 %v3044, %v2977
        %v3076 = vmul.f32 %v3048, %v2976
        %v3077 = vmul.f32 %v3048, %v2977
        %v3078 = vmul.f32 %v3052, %v2976
        %v3079 = vmul.f32 %v3052, %v2977
        %v3080 = vmul.f32 %v3056, %v2976
        %v3081 = vmul.f32 %v3056, %v2977
        %v3082 = vmul.f32 %v3060, %v2976
        %v3083 = vmul.f32 %v3060, %v2977
        %v3084 = vmul.f32 %v3064, %v2976
        %v3085 = vmul.f32 %v3064, %v2977
        %v3086 = vmul.f32 %v3068, %v2976
        %v3087 = vmul.f32 %v3068, %v2977
        %v3088 = vmul.f32 %v3072, %v2976
        %v3089 = vmul.f32 %v3072, %v2977
        %v3090 = vmul.f32 %v3044, %v2992
        %v3091 = vmul.f32 %v3044, %v2993
        %v3092 = vmul.f32 %v3048, %v2992
        %v3093 = vmul.f32 %v3048, %v2993
        %v3094 = vmul.f32 %v3052, %v2992
        %v3095 = vmul.f32 %v3052, %v2993
        %v3096 = vmul.f32 %v3056, %v2992
        %v3097 = vmul.f32 %v3056, %v2993
        %v3098 = vmul.f32 %v3060, %v2992
        %v3099 = vmul.f32 %v3060, %v2993
        %v3100 = vmul.f32 %v3064, %v2992
        %v3101 = vmul.f32 %v3064, %v2993
        %v3102 = vmul.f32 %v3068, %v2992
        %v3103 = vmul.f32 %v3068, %v2993
        %v3104 = vmul.f32 %v3072, %v2992
        %v3105 = vmul.f32 %v3072, %v2993
        %v3106 = vadd.f32 %v3018, %v3074
        %v3107 = vadd.f32 %v3018, %v3075
        %v3108 = vadd.f32 %v3019, %v3076
        %v3109 = vadd.f32 %v3019, %v3077
        %v3110 = vadd.f32 %v3020, %v3078
        %v3111 = vadd.f32 %v3020, %v3079
        %v3112 = vadd.f32 %v3021, %v3080
        %v3113 = vadd.f32 %v3021, %v3081
        %v3114 = vadd.f32 %v3022, %v3082
        %v3115 = vadd.f32 %v3022, %v3083
        %v3116 = vadd.f32 %v3023, %v3084
        %v3117 = vadd.f32 %v3023, %v3085
        %v3118 = vadd.f32 %v3024, %v3086
        %v3119 = vadd.f32 %v3024, %v3087
        %v3120 = vadd.f32 %v3025, %v3088
        %v3121 = vadd.f32 %v3025, %v3089
        %v3122 = vadd.f32 %v3018, %v3090
        %v3123 = vadd.f32 %v3018, %v3091
        %v3124 = vadd.f32 %v3019, %v3092
        %v3125 = vadd.f32 %v3019, %v3093
        %v3126 = vadd.f32 %v3020, %v3094
        %v3127 = vadd.f32 %v3020, %v3095
        %v3128 = vadd.f32 %v3021, %v3096
        %v3129 = vadd.f32 %v3021, %v3097
        %v3130 = vadd.f32 %v3022, %v3098
        %v3131 = vadd.f32 %v3022, %v3099
        %v3132 = vadd.f32 %v3023, %v3100
        %v3133 = vadd.f32 %v3023, %v3101
        %v3134 = vadd.f32 %v3024, %v3102
        %v3135 = vadd.f32 %v3024, %v3103
        %v3136 = vadd.f32 %v3025, %v3104
        %v3137 = vadd.f32 %v3025, %v3105
        %3138 = vset.pattern.permute.xlu0 1
        %3139 = vperm.xlu0 %3138, %v3034
        %v3140 = vpop.permute.xlu0 %3139
        %3142 = vset.pattern.permute.xlu0 1
        %3143 = vperm.xlu0 %3142, %v3035
        %v3144 = vpop.permute.xlu0 %3143
        %3146 = vset.pattern.permute.xlu0 1
        %3147 = vperm.xlu0 %3146, %v3036
        %v3148 = vpop.permute.xlu0 %3147
        %3150 = vset.pattern.permute.xlu0 1
        %3151 = vperm.xlu0 %3150, %v3037
        %v3152 = vpop.permute.xlu0 %3151
        %3154 = vset.pattern.permute.xlu0 1
        %3155 = vperm.xlu0 %3154, %v3038
        %v3156 = vpop.permute.xlu0 %3155
        %3158 = vset.pattern.permute.xlu0 1
        %3159 = vperm.xlu0 %3158, %v3039
        %v3160 = vpop.permute.xlu0 %3159
        %3162 = vset.pattern.permute.xlu0 1
        %3163 = vperm.xlu0 %3162, %v3040
        %v3164 = vpop.permute.xlu0 %3163
        %3166 = vset.pattern.permute.xlu0 1
        %3167 = vperm.xlu0 %3166, %v3041
        %v3168 = vpop.permute.xlu0 %3167
        %v3170 = vmul.f32 %v3140, %v2978
        %v3171 = vmul.f32 %v3140, %v2979
        %v3172 = vmul.f32 %v3144, %v2978
        %v3173 = vmul.f32 %v3144, %v2979
        %v3174 = vmul.f32 %v3148, %v2978
        %v3175 = vmul.f32 %v3148, %v2979
        %v3176 = vmul.f32 %v3152, %v2978
        %v3177 = vmul.f32 %v3152, %v2979
        %v3178 = vmul.f32 %v3156, %v2978
        %v3179 = vmul.f32 %v3156, %v2979
        %v3180 = vmul.f32 %v3160, %v2978
        %v3181 = vmul.f32 %v3160, %v2979
        %v3182 = vmul.f32 %v3164, %v2978
        %v3183 = vmul.f32 %v3164, %v2979
        %v3184 = vmul.f32 %v3168, %v2978
        %v3185 = vmul.f32 %v3168, %v2979
        %v3186 = vmul.f32 %v3140, %v2994
        %v3187 = vmul.f32 %v3140, %v2995
        %v3188 = vmul.f32 %v3144, %v2994
        %v3189 = vmul.f32 %v3144, %v2995
        %v3190 = vmul.f32 %v3148, %v2994
        %v3191 = vmul.f32 %v3148, %v2995
        %v3192 = vmul.f32 %v3152, %v2994
        %v3193 = vmul.f32 %v3152, %v2995
        %v3194 = vmul.f32 %v3156, %v2994
        %v3195 = vmul.f32 %v3156, %v2995
        %v3196 = vmul.f32 %v3160, %v2994
        %v3197 = vmul.f32 %v3160, %v2995
        %v3198 = vmul.f32 %v3164, %v2994
        %v3199 = vmul.f32 %v3164, %v2995
        %v3200 = vmul.f32 %v3168, %v2994
        %v3201 = vmul.f32 %v3168, %v2995
        %v3202 = vadd.f32 %v3106, %v3170
        %v3203 = vadd.f32 %v3107, %v3171
        %v3204 = vadd.f32 %v3108, %v3172
        %v3205 = vadd.f32 %v3109, %v3173
        %v3206 = vadd.f32 %v3110, %v3174
        %v3207 = vadd.f32 %v3111, %v3175
        %v3208 = vadd.f32 %v3112, %v3176
        %v3209 = vadd.f32 %v3113, %v3177
        %v3210 = vadd.f32 %v3114, %v3178
        %v3211 = vadd.f32 %v3115, %v3179
        %v3212 = vadd.f32 %v3116, %v3180
        %v3213 = vadd.f32 %v3117, %v3181
        %v3214 = vadd.f32 %v3118, %v3182
        %v3215 = vadd.f32 %v3119, %v3183
        %v3216 = vadd.f32 %v3120, %v3184
        %v3217 = vadd.f32 %v3121, %v3185
        %v3218 = vadd.f32 %v3122, %v3186
        %v3219 = vadd.f32 %v3123, %v3187
        %v3220 = vadd.f32 %v3124, %v3188
        %v3221 = vadd.f32 %v3125, %v3189
        %v3222 = vadd.f32 %v3126, %v3190
        %v3223 = vadd.f32 %v3127, %v3191
        %v3224 = vadd.f32 %v3128, %v3192
        %v3225 = vadd.f32 %v3129, %v3193
        %v3226 = vadd.f32 %v3130, %v3194
        %v3227 = vadd.f32 %v3131, %v3195
        %v3228 = vadd.f32 %v3132, %v3196
        %v3229 = vadd.f32 %v3133, %v3197
        %v3230 = vadd.f32 %v3134, %v3198
        %v3231 = vadd.f32 %v3135, %v3199
        %v3232 = vadd.f32 %v3136, %v3200
        %v3233 = vadd.f32 %v3137, %v3201
        %3234 = vset.pattern.permute.xlu0 2
        %3235 = vperm.xlu0 %3234, %v3034
        %v3236 = vpop.permute.xlu0 %3235
        %3238 = vset.pattern.permute.xlu0 2
        %3239 = vperm.xlu0 %3238, %v3035
        %v3240 = vpop.permute.xlu0 %3239
        %3242 = vset.pattern.permute.xlu0 2
        %3243 = vperm.xlu0 %3242, %v3036
        %v3244 = vpop.permute.xlu0 %3243
        %3246 = vset.pattern.permute.xlu0 2
        %3247 = vperm.xlu0 %3246, %v3037
        %v3248 = vpop.permute.xlu0 %3247
        %3250 = vset.pattern.permute.xlu0 2
        %3251 = vperm.xlu0 %3250, %v3038
        %v3252 = vpop.permute.xlu0 %3251
        %3254 = vset.pattern.permute.xlu0 2
        %3255 = vperm.xlu0 %3254, %v3039
        %v3256 = vpop.permute.xlu0 %3255
        %3258 = vset.pattern.permute.xlu0 2
        %3259 = vperm.xlu0 %3258, %v3040
        %v3260 = vpop.permute.xlu0 %3259
        %3262 = vset.pattern.permute.xlu0 2
        %3263 = vperm.xlu0 %3262, %v3041
        %v3264 = vpop.permute.xlu0 %3263
        %v3266 = vmul.f32 %v3236, %v2980
        %v3267 = vmul.f32 %v3236, %v2981
        %v3268 = vmul.f32 %v3240, %v2980
        %v3269 = vmul.f32 %v3240, %v2981
        %v3270 = vmul.f32 %v3244, %v2980
        %v3271 = vmul.f32 %v3244, %v2981
        %v3272 = vmul.f32 %v3248, %v2980
        %v3273 = vmul.f32 %v3248, %v2981
        %v3274 = vmul.f32 %v3252, %v2980
        %v3275 = vmul.f32 %v3252, %v2981
        %v3276 = vmul.f32 %v3256, %v2980
        %v3277 = vmul.f32 %v3256, %v2981
        %v3278 = vmul.f32 %v3260, %v2980
        %v3279 = vmul.f32 %v3260, %v2981
        %v3280 = vmul.f32 %v3264, %v2980
        %v3281 = vmul.f32 %v3264, %v2981
        %v3282 = vmul.f32 %v3236, %v2996
        %v3283 = vmul.f32 %v3236, %v2997
        %v3284 = vmul.f32 %v3240, %v2996
        %v3285 = vmul.f32 %v3240, %v2997
        %v3286 = vmul.f32 %v3244, %v2996
        %v3287 = vmul.f32 %v3244, %v2997
        %v3288 = vmul.f32 %v3248, %v2996
        %v3289 = vmul.f32 %v3248, %v2997
        %v3290 = vmul.f32 %v3252, %v2996
        %v3291 = vmul.f32 %v3252, %v2997
        %v3292 = vmul.f32 %v3256, %v2996
        %v3293 = vmul.f32 %v3256, %v2997
        %v3294 = vmul.f32 %v3260, %v2996
        %v3295 = vmul.f32 %v3260, %v2997
        %v3296 = vmul.f32 %v3264, %v2996
        %v3297 = vmul.f32 %v3264, %v2997
        %v3298 = vadd.f32 %v3202, %v3266
        %v3299 = vadd.f32 %v3203, %v3267
        %v3300 = vadd.f32 %v3204, %v3268
        %v3301 = vadd.f32 %v3205, %v3269
        %v3302 = vadd.f32 %v3206, %v3270
        %v3303 = vadd.f32 %v3207, %v3271
        %v3304 = vadd.f32 %v3208, %v3272
        %v3305 = vadd.f32 %v3209, %v3273
        %v3306 = vadd.f32 %v3210, %v3274
        %v3307 = vadd.f32 %v3211, %v3275
        %v3308 = vadd.f32 %v3212, %v3276
        %v3309 = vadd.f32 %v3213, %v3277
        %v3310 = vadd.f32 %v3214, %v3278
        %v3311 = vadd.f32 %v3215, %v3279
        %v3312 = vadd.f32 %v3216, %v3280
        %v3313 = vadd.f32 %v3217, %v3281
        %v3314 = vadd.f32 %v3218, %v3282
        %v3315 = vadd.f32 %v3219, %v3283
        %v3316 = vadd.f32 %v3220, %v3284
        %v3317 = vadd.f32 %v3221, %v3285
        %v3318 = vadd.f32 %v3222, %v3286
        %v3319 = vadd.f32 %v3223, %v3287
        %v3320 = vadd.f32 %v3224, %v3288
        %v3321 = vadd.f32 %v3225, %v3289
        %v3322 = vadd.f32 %v3226, %v3290
        %v3323 = vadd.f32 %v3227, %v3291
        %v3324 = vadd.f32 %v3228, %v3292
        %v3325 = vadd.f32 %v3229, %v3293
        %v3326 = vadd.f32 %v3230, %v3294
        %v3327 = vadd.f32 %v3231, %v3295
        %v3328 = vadd.f32 %v3232, %v3296
        %v3329 = vadd.f32 %v3233, %v3297
        %3330 = vset.pattern.permute.xlu0 3
        %3331 = vperm.xlu0 %3330, %v3034
        %v3332 = vpop.permute.xlu0 %3331
        %3334 = vset.pattern.permute.xlu0 3
        %3335 = vperm.xlu0 %3334, %v3035
        %v3336 = vpop.permute.xlu0 %3335
        %3338 = vset.pattern.permute.xlu0 3
        %3339 = vperm.xlu0 %3338, %v3036
        %v3340 = vpop.permute.xlu0 %3339
        %3342 = vset.pattern.permute.xlu0 3
        %3343 = vperm.xlu0 %3342, %v3037
        %v3344 = vpop.permute.xlu0 %3343
        %3346 = vset.pattern.permute.xlu0 3
        %3347 = vperm.xlu0 %3346, %v3038
        %v3348 = vpop.permute.xlu0 %3347
        %3350 = vset.pattern.permute.xlu0 3
        %3351 = vperm.xlu0 %3350, %v3039
        %v3352 = vpop.permute.xlu0 %3351
        %3354 = vset.pattern.permute.xlu0 3
        %3355 = vperm.xlu0 %3354, %v3040
        %v3356 = vpop.permute.xlu0 %3355
        %3358 = vset.pattern.permute.xlu0 3
        %3359 = vperm.xlu0 %3358, %v3041
        %v3360 = vpop.permute.xlu0 %3359
        %v3362 = vmul.f32 %v3332, %v2982
        %v3363 = vmul.f32 %v3332, %v2983
        %v3364 = vmul.f32 %v3336, %v2982
        %v3365 = vmul.f32 %v3336, %v2983
        %v3366 = vmul.f32 %v3340, %v2982
        %v3367 = vmul.f32 %v3340, %v2983
        %v3368 = vmul.f32 %v3344, %v2982
        %v3369 = vmul.f32 %v3344, %v2983
        %v3370 = vmul.f32 %v3348, %v2982
        %v3371 = vmul.f32 %v3348, %v2983
        %v3372 = vmul.f32 %v3352, %v2982
        %v3373 = vmul.f32 %v3352, %v2983
        %v3374 = vmul.f32 %v3356, %v2982
        %v3375 = vmul.f32 %v3356, %v2983
        %v3376 = vmul.f32 %v3360, %v2982
        %v3377 = vmul.f32 %v3360, %v2983
        %v3378 = vmul.f32 %v3332, %v2998
        %v3379 = vmul.f32 %v3332, %v2999
        %v3380 = vmul.f32 %v3336, %v2998
        %v3381 = vmul.f32 %v3336, %v2999
        %v3382 = vmul.f32 %v3340, %v2998
        %v3383 = vmul.f32 %v3340, %v2999
        %v3384 = vmul.f32 %v3344, %v2998
        %v3385 = vmul.f32 %v3344, %v2999
        %v3386 = vmul.f32 %v3348, %v2998
        %v3387 = vmul.f32 %v3348, %v2999
        %v3388 = vmul.f32 %v3352, %v2998
        %v3389 = vmul.f32 %v3352, %v2999
        %v3390 = vmul.f32 %v3356, %v2998
        %v3391 = vmul.f32 %v3356, %v2999
        %v3392 = vmul.f32 %v3360, %v2998
        %v3393 = vmul.f32 %v3360, %v2999
        %v3394 = vadd.f32 %v3298, %v3362
        %v3395 = vadd.f32 %v3299, %v3363
        %v3396 = vadd.f32 %v3300, %v3364
        %v3397 = vadd.f32 %v3301, %v3365
        %v3398 = vadd.f32 %v3302, %v3366
        %v3399 = vadd.f32 %v3303, %v3367
        %v3400 = vadd.f32 %v3304, %v3368
        %v3401 = vadd.f32 %v3305, %v3369
        %v3402 = vadd.f32 %v3306, %v3370
        %v3403 = vadd.f32 %v3307, %v3371
        %v3404 = vadd.f32 %v3308, %v3372
        %v3405 = vadd.f32 %v3309, %v3373
        %v3406 = vadd.f32 %v3310, %v3374
        %v3407 = vadd.f32 %v3311, %v3375
        %v3408 = vadd.f32 %v3312, %v3376
        %v3409 = vadd.f32 %v3313, %v3377
        %v3410 = vadd.f32 %v3314, %v3378
        %v3411 = vadd.f32 %v3315, %v3379
        %v3412 = vadd.f32 %v3316, %v3380
        %v3413 = vadd.f32 %v3317, %v3381
        %v3414 = vadd.f32 %v3318, %v3382
        %v3415 = vadd.f32 %v3319, %v3383
        %v3416 = vadd.f32 %v3320, %v3384
        %v3417 = vadd.f32 %v3321, %v3385
        %v3418 = vadd.f32 %v3322, %v3386
        %v3419 = vadd.f32 %v3323, %v3387
        %v3420 = vadd.f32 %v3324, %v3388
        %v3421 = vadd.f32 %v3325, %v3389
        %v3422 = vadd.f32 %v3326, %v3390
        %v3423 = vadd.f32 %v3327, %v3391
        %v3424 = vadd.f32 %v3328, %v3392
        %v3425 = vadd.f32 %v3329, %v3393
        %3426 = vset.pattern.permute.xlu0 4
        %3427 = vperm.xlu0 %3426, %v3034
        %v3428 = vpop.permute.xlu0 %3427
        %3430 = vset.pattern.permute.xlu0 4
        %3431 = vperm.xlu0 %3430, %v3035
        %v3432 = vpop.permute.xlu0 %3431
        %3434 = vset.pattern.permute.xlu0 4
        %3435 = vperm.xlu0 %3434, %v3036
        %v3436 = vpop.permute.xlu0 %3435
        %3438 = vset.pattern.permute.xlu0 4
        %3439 = vperm.xlu0 %3438, %v3037
        %v3440 = vpop.permute.xlu0 %3439
        %3442 = vset.pattern.permute.xlu0 4
        %3443 = vperm.xlu0 %3442, %v3038
        %v3444 = vpop.permute.xlu0 %3443
        %3446 = vset.pattern.permute.xlu0 4
        %3447 = vperm.xlu0 %3446, %v3039
        %v3448 = vpop.permute.xlu0 %3447
        %3450 = vset.pattern.permute.xlu0 4
        %3451 = vperm.xlu0 %3450, %v3040
        %v3452 = vpop.permute.xlu0 %3451
        %3454 = vset.pattern.permute.xlu0 4
        %3455 = vperm.xlu0 %3454, %v3041
        %v3456 = vpop.permute.xlu0 %3455
        %v3458 = vmul.f32 %v3428, %v2984
        %v3459 = vmul.f32 %v3428, %v2985
        %v3460 = vmul.f32 %v3432, %v2984
        %v3461 = vmul.f32 %v3432, %v2985
        %v3462 = vmul.f32 %v3436, %v2984
        %v3463 = vmul.f32 %v3436, %v2985
        %v3464 = vmul.f32 %v3440, %v2984
        %v3465 = vmul.f32 %v3440, %v2985
        %v3466 = vmul.f32 %v3444, %v2984
        %v3467 = vmul.f32 %v3444, %v2985
        %v3468 = vmul.f32 %v3448, %v2984
        %v3469 = vmul.f32 %v3448, %v2985
        %v3470 = vmul.f32 %v3452, %v2984
        %v3471 = vmul.f32 %v3452, %v2985
        %v3472 = vmul.f32 %v3456, %v2984
        %v3473 = vmul.f32 %v3456, %v2985
        %v3474 = vmul.f32 %v3428, %v3000
        %v3475 = vmul.f32 %v3428, %v3001
        %v3476 = vmul.f32 %v3432, %v3000
        %v3477 = vmul.f32 %v3432, %v3001
        %v3478 = vmul.f32 %v3436, %v3000
        %v3479 = vmul.f32 %v3436, %v3001
        %v3480 = vmul.f32 %v3440, %v3000
        %v3481 = vmul.f32 %v3440, %v3001
        %v3482 = vmul.f32 %v3444, %v3000
        %v3483 = vmul.f32 %v3444, %v3001
        %v3484 = vmul.f32 %v3448, %v3000
        %v3485 = vmul.f32 %v3448, %v3001
        %v3486 = vmul.f32 %v3452, %v3000
        %v3487 = vmul.f32 %v3452, %v3001
        %v3488 = vmul.f32 %v3456, %v3000
        %v3489 = vmul.f32 %v3456, %v3001
        %v3490 = vadd.f32 %v3394, %v3458
        %v3491 = vadd.f32 %v3395, %v3459
        %v3492 = vadd.f32 %v3396, %v3460
        %v3493 = vadd.f32 %v3397, %v3461
        %v3494 = vadd.f32 %v3398, %v3462
        %v3495 = vadd.f32 %v3399, %v3463
        %v3496 = vadd.f32 %v3400, %v3464
        %v3497 = vadd.f32 %v3401, %v3465
        %v3498 = vadd.f32 %v3402, %v3466
        %v3499 = vadd.f32 %v3403, %v3467
        %v3500 = vadd.f32 %v3404, %v3468
        %v3501 = vadd.f32 %v3405, %v3469
        %v3502 = vadd.f32 %v3406, %v3470
        %v3503 = vadd.f32 %v3407, %v3471
        %v3504 = vadd.f32 %v3408, %v3472
        %v3505 = vadd.f32 %v3409, %v3473
        %v3506 = vadd.f32 %v3410, %v3474
        %v3507 = vadd.f32 %v3411, %v3475
        %v3508 = vadd.f32 %v3412, %v3476
        %v3509 = vadd.f32 %v3413, %v3477
        %v3510 = vadd.f32 %v3414, %v3478
        %v3511 = vadd.f32 %v3415, %v3479
        %v3512 = vadd.f32 %v3416, %v3480
        %v3513 = vadd.f32 %v3417, %v3481
        %v3514 = vadd.f32 %v3418, %v3482
        %v3515 = vadd.f32 %v3419, %v3483
        %v3516 = vadd.f32 %v3420, %v3484
        %v3517 = vadd.f32 %v3421, %v3485
        %v3518 = vadd.f32 %v3422, %v3486
        %v3519 = vadd.f32 %v3423, %v3487
        %v3520 = vadd.f32 %v3424, %v3488
        %v3521 = vadd.f32 %v3425, %v3489
        %3522 = vset.pattern.permute.xlu0 5
        %3523 = vperm.xlu0 %3522, %v3034
        %v3524 = vpop.permute.xlu0 %3523
        %3526 = vset.pattern.permute.xlu0 5
        %3527 = vperm.xlu0 %3526, %v3035
        %v3528 = vpop.permute.xlu0 %3527
        %3530 = vset.pattern.permute.xlu0 5
        %3531 = vperm.xlu0 %3530, %v3036
        %v3532 = vpop.permute.xlu0 %3531
        %3534 = vset.pattern.permute.xlu0 5
        %3535 = vperm.xlu0 %3534, %v3037
        %v3536 = vpop.permute.xlu0 %3535
        %3538 = vset.pattern.permute.xlu0 5
        %3539 = vperm.xlu0 %3538, %v3038
        %v3540 = vpop.permute.xlu0 %3539
        %3542 = vset.pattern.permute.xlu0 5
        %3543 = vperm.xlu0 %3542, %v3039
        %v3544 = vpop.permute.xlu0 %3543
        %3546 = vset.pattern.permute.xlu0 5
        %3547 = vperm.xlu0 %3546, %v3040
        %v3548 = vpop.permute.xlu0 %3547
        %3550 = vset.pattern.permute.xlu0 5
        %3551 = vperm.xlu0 %3550, %v3041
        %v3552 = vpop.permute.xlu0 %3551
        %v3554 = vmul.f32 %v3524, %v2986
        %v3555 = vmul.f32 %v3524, %v2987
        %v3556 = vmul.f32 %v3528, %v2986
        %v3557 = vmul.f32 %v3528, %v2987
        %v3558 = vmul.f32 %v3532, %v2986
        %v3559 = vmul.f32 %v3532, %v2987
        %v3560 = vmul.f32 %v3536, %v2986
        %v3561 = vmul.f32 %v3536, %v2987
        %v3562 = vmul.f32 %v3540, %v2986
        %v3563 = vmul.f32 %v3540, %v2987
        %v3564 = vmul.f32 %v3544, %v2986
        %v3565 = vmul.f32 %v3544, %v2987
        %v3566 = vmul.f32 %v3548, %v2986
        %v3567 = vmul.f32 %v3548, %v2987
        %v3568 = vmul.f32 %v3552, %v2986
        %v3569 = vmul.f32 %v3552, %v2987
        %v3570 = vmul.f32 %v3524, %v3002
        %v3571 = vmul.f32 %v3524, %v3003
        %v3572 = vmul.f32 %v3528, %v3002
        %v3573 = vmul.f32 %v3528, %v3003
        %v3574 = vmul.f32 %v3532, %v3002
        %v3575 = vmul.f32 %v3532, %v3003
        %v3576 = vmul.f32 %v3536, %v3002
        %v3577 = vmul.f32 %v3536, %v3003
        %v3578 = vmul.f32 %v3540, %v3002
        %v3579 = vmul.f32 %v3540, %v3003
        %v3580 = vmul.f32 %v3544, %v3002
        %v3581 = vmul.f32 %v3544, %v3003
        %v3582 = vmul.f32 %v3548, %v3002
        %v3583 = vmul.f32 %v3548, %v3003
        %v3584 = vmul.f32 %v3552, %v3002
        %v3585 = vmul.f32 %v3552, %v3003
        %v3586 = vadd.f32 %v3490, %v3554
        %v3587 = vadd.f32 %v3491, %v3555
        %v3588 = vadd.f32 %v3492, %v3556
        %v3589 = vadd.f32 %v3493, %v3557
        %v3590 = vadd.f32 %v3494, %v3558
        %v3591 = vadd.f32 %v3495, %v3559
        %v3592 = vadd.f32 %v3496, %v3560
        %v3593 = vadd.f32 %v3497, %v3561
        %v3594 = vadd.f32 %v3498, %v3562
        %v3595 = vadd.f32 %v3499, %v3563
        %v3596 = vadd.f32 %v3500, %v3564
        %v3597 = vadd.f32 %v3501, %v3565
        %v3598 = vadd.f32 %v3502, %v3566
        %v3599 = vadd.f32 %v3503, %v3567
        %v3600 = vadd.f32 %v3504, %v3568
        %v3601 = vadd.f32 %v3505, %v3569
        %v3602 = vadd.f32 %v3506, %v3570
        %v3603 = vadd.f32 %v3507, %v3571
        %v3604 = vadd.f32 %v3508, %v3572
        %v3605 = vadd.f32 %v3509, %v3573
        %v3606 = vadd.f32 %v3510, %v3574
        %v3607 = vadd.f32 %v3511, %v3575
        %v3608 = vadd.f32 %v3512, %v3576
        %v3609 = vadd.f32 %v3513, %v3577
        %v3610 = vadd.f32 %v3514, %v3578
        %v3611 = vadd.f32 %v3515, %v3579
        %v3612 = vadd.f32 %v3516, %v3580
        %v3613 = vadd.f32 %v3517, %v3581
        %v3614 = vadd.f32 %v3518, %v3582
        %v3615 = vadd.f32 %v3519, %v3583
        %v3616 = vadd.f32 %v3520, %v3584
        %v3617 = vadd.f32 %v3521, %v3585
        %3618 = vset.pattern.permute.xlu0 6
        %3619 = vperm.xlu0 %3618, %v3034
        %v3620 = vpop.permute.xlu0 %3619
        %3622 = vset.pattern.permute.xlu0 6
        %3623 = vperm.xlu0 %3622, %v3035
        %v3624 = vpop.permute.xlu0 %3623
        %3626 = vset.pattern.permute.xlu0 6
        %3627 = vperm.xlu0 %3626, %v3036
        %v3628 = vpop.permute.xlu0 %3627
        %3630 = vset.pattern.permute.xlu0 6
        %3631 = vperm.xlu0 %3630, %v3037
        %v3632 = vpop.permute.xlu0 %3631
        %3634 = vset.pattern.permute.xlu0 6
        %3635 = vperm.xlu0 %3634, %v3038
        %v3636 = vpop.permute.xlu0 %3635
        %3638 = vset.pattern.permute.xlu0 6
        %3639 = vperm.xlu0 %3638, %v3039
        %v3640 = vpop.permute.xlu0 %3639
        %3642 = vset.pattern.permute.xlu0 6
        %3643 = vperm.xlu0 %3642, %v3040
        %v3644 = vpop.permute.xlu0 %3643
        %3646 = vset.pattern.permute.xlu0 6
        %3647 = vperm.xlu0 %3646, %v3041
        %v3648 = vpop.permute.xlu0 %3647
        %v3650 = vmul.f32 %v3620, %v2988
        %v3651 = vmul.f32 %v3620, %v2989
        %v3652 = vmul.f32 %v3624, %v2988
        %v3653 = vmul.f32 %v3624, %v2989
        %v3654 = vmul.f32 %v3628, %v2988
        %v3655 = vmul.f32 %v3628, %v2989
        %v3656 = vmul.f32 %v3632, %v2988
        %v3657 = vmul.f32 %v3632, %v2989
        %v3658 = vmul.f32 %v3636, %v2988
        %v3659 = vmul.f32 %v3636, %v2989
        %v3660 = vmul.f32 %v3640, %v2988
        %v3661 = vmul.f32 %v3640, %v2989
        %v3662 = vmul.f32 %v3644, %v2988
        %v3663 = vmul.f32 %v3644, %v2989
        %v3664 = vmul.f32 %v3648, %v2988
        %v3665 = vmul.f32 %v3648, %v2989
        %v3666 = vmul.f32 %v3620, %v3004
        %v3667 = vmul.f32 %v3620, %v3005
        %v3668 = vmul.f32 %v3624, %v3004
        %v3669 = vmul.f32 %v3624, %v3005
        %v3670 = vmul.f32 %v3628, %v3004
        %v3671 = vmul.f32 %v3628, %v3005
        %v3672 = vmul.f32 %v3632, %v3004
        %v3673 = vmul.f32 %v3632, %v3005
        %v3674 = vmul.f32 %v3636, %v3004
        %v3675 = vmul.f32 %v3636, %v3005
        %v3676 = vmul.f32 %v3640, %v3004
        %v3677 = vmul.f32 %v3640, %v3005
        %v3678 = vmul.f32 %v3644, %v3004
        %v3679 = vmul.f32 %v3644, %v3005
        %v3680 = vmul.f32 %v3648, %v3004
        %v3681 = vmul.f32 %v3648, %v3005
        %v3682 = vadd.f32 %v3586, %v3650
        %v3683 = vadd.f32 %v3587, %v3651
        %v3684 = vadd.f32 %v3588, %v3652
        %v3685 = vadd.f32 %v3589, %v3653
        %v3686 = vadd.f32 %v3590, %v3654
        %v3687 = vadd.f32 %v3591, %v3655
        %v3688 = vadd.f32 %v3592, %v3656
        %v3689 = vadd.f32 %v3593, %v3657
        %v3690 = vadd.f32 %v3594, %v3658
        %v3691 = vadd.f32 %v3595, %v3659
        %v3692 = vadd.f32 %v3596, %v3660
        %v3693 = vadd.f32 %v3597, %v3661
        %v3694 = vadd.f32 %v3598, %v3662
        %v3695 = vadd.f32 %v3599, %v3663
        %v3696 = vadd.f32 %v3600, %v3664
        %v3697 = vadd.f32 %v3601, %v3665
        %v3698 = vadd.f32 %v3602, %v3666
        %v3699 = vadd.f32 %v3603, %v3667
        %v3700 = vadd.f32 %v3604, %v3668
        %v3701 = vadd.f32 %v3605, %v3669
        %v3702 = vadd.f32 %v3606, %v3670
        %v3703 = vadd.f32 %v3607, %v3671
        %v3704 = vadd.f32 %v3608, %v3672
        %v3705 = vadd.f32 %v3609, %v3673
        %v3706 = vadd.f32 %v3610, %v3674
        %v3707 = vadd.f32 %v3611, %v3675
        %v3708 = vadd.f32 %v3612, %v3676
        %v3709 = vadd.f32 %v3613, %v3677
        %v3710 = vadd.f32 %v3614, %v3678
        %v3711 = vadd.f32 %v3615, %v3679
        %v3712 = vadd.f32 %v3616, %v3680
        %v3713 = vadd.f32 %v3617, %v3681
        %3714 = vset.pattern.permute.xlu0 7
        %3715 = vperm.xlu0 %3714, %v3034
        %v3716 = vpop.permute.xlu0 %3715
        %3718 = vset.pattern.permute.xlu0 7
        %3719 = vperm.xlu0 %3718, %v3035
        %v3720 = vpop.permute.xlu0 %3719
        %3722 = vset.pattern.permute.xlu0 7
        %3723 = vperm.xlu0 %3722, %v3036
        %v3724 = vpop.permute.xlu0 %3723
        %3726 = vset.pattern.permute.xlu0 7
        %3727 = vperm.xlu0 %3726, %v3037
        %v3728 = vpop.permute.xlu0 %3727
        %3730 = vset.pattern.permute.xlu0 7
        %3731 = vperm.xlu0 %3730, %v3038
        %v3732 = vpop.permute.xlu0 %3731
        %3734 = vset.pattern.permute.xlu0 7
        %3735 = vperm.xlu0 %3734, %v3039
        %v3736 = vpop.permute.xlu0 %3735
        %3738 = vset.pattern.permute.xlu0 7
        %3739 = vperm.xlu0 %3738, %v3040
        %v3740 = vpop.permute.xlu0 %3739
        %3742 = vset.pattern.permute.xlu0 7
        %3743 = vperm.xlu0 %3742, %v3041
        %v3744 = vpop.permute.xlu0 %3743
        %v3746 = vmul.f32 %v3716, %v2990
        %v3747 = vmul.f32 %v3716, %v2991
        %v3748 = vmul.f32 %v3720, %v2990
        %v3749 = vmul.f32 %v3720, %v2991
        %v3750 = vmul.f32 %v3724, %v2990
        %v3751 = vmul.f32 %v3724, %v2991
        %v3752 = vmul.f32 %v3728, %v2990
        %v3753 = vmul.f32 %v3728, %v2991
        %v3754 = vmul.f32 %v3732, %v2990
        %v3755 = vmul.f32 %v3732, %v2991
        %v3756 = vmul.f32 %v3736, %v2990
        %v3757 = vmul.f32 %v3736, %v2991
        %v3758 = vmul.f32 %v3740, %v2990
        %v3759 = vmul.f32 %v3740, %v2991
        %v3760 = vmul.f32 %v3744, %v2990
        %v3761 = vmul.f32 %v3744, %v2991
        %v3762 = vmul.f32 %v3716, %v3006
        %v3763 = vmul.f32 %v3716, %v3007
        %v3764 = vmul.f32 %v3720, %v3006
        %v3765 = vmul.f32 %v3720, %v3007
        %v3766 = vmul.f32 %v3724, %v3006
        %v3767 = vmul.f32 %v3724, %v3007
        %v3768 = vmul.f32 %v3728, %v3006
        %v3769 = vmul.f32 %v3728, %v3007
        %v3770 = vmul.f32 %v3732, %v3006
        %v3771 = vmul.f32 %v3732, %v3007
        %v3772 = vmul.f32 %v3736, %v3006
        %v3773 = vmul.f32 %v3736, %v3007
        %v3774 = vmul.f32 %v3740, %v3006
        %v3775 = vmul.f32 %v3740, %v3007
        %v3776 = vmul.f32 %v3744, %v3006
        %v3777 = vmul.f32 %v3744, %v3007
        %v3778 = vadd.f32 %v3682, %v3746
        %v3779 = vadd.f32 %v3683, %v3747
        %v3780 = vadd.f32 %v3684, %v3748
        %v3781 = vadd.f32 %v3685, %v3749
        %v3782 = vadd.f32 %v3686, %v3750
        %v3783 = vadd.f32 %v3687, %v3751
        %v3784 = vadd.f32 %v3688, %v3752
        %v3785 = vadd.f32 %v3689, %v3753
        %v3786 = vadd.f32 %v3690, %v3754
        %v3787 = vadd.f32 %v3691, %v3755
        %v3788 = vadd.f32 %v3692, %v3756
        %v3789 = vadd.f32 %v3693, %v3757
        %v3790 = vadd.f32 %v3694, %v3758
        %v3791 = vadd.f32 %v3695, %v3759
        %v3792 = vadd.f32 %v3696, %v3760
        %v3793 = vadd.f32 %v3697, %v3761
        %v3794 = vadd.f32 %v3698, %v3762
        %v3795 = vadd.f32 %v3699, %v3763
        %v3796 = vadd.f32 %v3700, %v3764
        %v3797 = vadd.f32 %v3701, %v3765
        %v3798 = vadd.f32 %v3702, %v3766
        %v3799 = vadd.f32 %v3703, %v3767
        %v3800 = vadd.f32 %v3704, %v3768
        %v3801 = vadd.f32 %v3705, %v3769
        %v3802 = vadd.f32 %v3706, %v3770
        %v3803 = vadd.f32 %v3707, %v3771
        %v3804 = vadd.f32 %v3708, %v3772
        %v3805 = vadd.f32 %v3709, %v3773
        %v3806 = vadd.f32 %v3710, %v3774
        %v3807 = vadd.f32 %v3711, %v3775
        %v3808 = vadd.f32 %v3712, %v3776
        %v3809 = vadd.f32 %v3713, %v3777
        %s3810 = scalar_lea.vmem %s1, 16
        %v3811 = vld [vmem:[%s3810] sm:$0xff]
        %v3812 = vld [vmem:[%s3810 + $0x8] sm:$0xff]
        %v3813 = vadd.f32 %v3778, %v3811
        %v3814 = vadd.f32 %v3779, %v3812
        %v3815 = vadd.f32 %v3780, %v3811
        %v3816 = vadd.f32 %v3781, %v3812
        %v3817 = vadd.f32 %v3782, %v3811
        %v3818 = vadd.f32 %v3783, %v3812
        %v3819 = vadd.f32 %v3784, %v3811
        %v3820 = vadd.f32 %v3785, %v3812
        %v3821 = vadd.f32 %v3786, %v3811
        %v3822 = vadd.f32 %v3787, %v3812
        %v3823 = vadd.f32 %v3788, %v3811
        %v3824 = vadd.f32 %v3789, %v3812
        %v3825 = vadd.f32 %v3790, %v3811
        %v3826 = vadd.f32 %v3791, %v3812
        %v3827 = vadd.f32 %v3792, %v3811
        %v3828 = vadd.f32 %v3793, %v3812
        %v3829 = vadd.f32 %v3794, %v3811
        %v3830 = vadd.f32 %v3795, %v3812
        %v3831 = vadd.f32 %v3796, %v3811
        %v3832 = vadd.f32 %v3797, %v3812
        %v3833 = vadd.f32 %v3798, %v3811
        %v3834 = vadd.f32 %v3799, %v3812
        %v3835 = vadd.f32 %v3800, %v3811
        %v3836 = vadd.f32 %v3801, %v3812
        %v3837 = vadd.f32 %v3802, %v3811
        %v3838 = vadd.f32 %v3803, %v3812
        %v3839 = vadd.f32 %v3804, %v3811
        %v3840 = vadd.f32 %v3805, %v3812
        %v3841 = vadd.f32 %v3806, %v3811
        %v3842 = vadd.f32 %v3807, %v3812
        %v3843 = vadd.f32 %v3808, %v3811
        %v3844 = vadd.f32 %v3809, %v3812
        %vm3845 = vcmask 130048
        %v3847 = vsel %vm3845, %v1070, 0
        %v3850 = vsel %vm3845, %v3813, 0
        %v3853 = vsel %vm3845, %v3814, 0
        %3855 = vmatpush.xpose.msra.mxu0 0.0
        %3856 = vmatpush.xpose.msra.mxu0 0.0
        %3857 = vmatpush.xpose.msra.mxu0 0.0
        %3858 = vmatpush.xpose.msra.mxu0 0.0
        %3859 = vmatpush.xpose.msra.mxu0 0.0
        %3860 = vmatpush.xpose.msra.mxu0 0.0
        %3861 = vmatpush.xpose.msra.mxu0 0.0
        %3862 = vmatpush.xpose.msra.mxu0 0.0
        %3863 = vmatpush.xpose.msra.mxu0 0.0
        %3864 = vmatpush.xpose.msra.mxu0 0.0
        %3865 = vmatpush.xpose.msra.mxu0 0.0
        %3866 = vmatpush.xpose.msra.mxu0 0.0
        %3867 = vmatpush.xpose.msra.mxu0 0.0
        %3868 = vmatpush.xpose.msra.mxu0 0.0
        %3869 = vmatpush.xpose.msra.mxu0 %v3853
        %3870 = vmatpush.xpose.msra.mxu0 %v3850
        %3871 = vmatmul.f32.gmra.mxu0 %v3847
        %v3872 = vpop.f32.mrf.mxu0
        %v3873 = vadd.f32 0.0, %v3872
        %3874 = vdwg.mxu0
        %v3876 = vsel %vm3845, %v1072, 0
        %v3879 = vsel %vm3845, %v3815, 0
        %v3882 = vsel %vm3845, %v3816, 0
        %3884 = vmatpush.xpose.msra.mxu0 0.0
        %3885 = vmatpush.xpose.msra.mxu0 0.0
        %3886 = vmatpush.xpose.msra.mxu0 0.0
        %3887 = vmatpush.xpose.msra.mxu0 0.0
        %3888 = vmatpush.xpose.msra.mxu0 0.0
        %3889 = vmatpush.xpose.msra.mxu0 0.0
        %3890 = vmatpush.xpose.msra.mxu0 0.0
        %3891 = vmatpush.xpose.msra.mxu0 0.0
        %3892 = vmatpush.xpose.msra.mxu0 0.0
        %3893 = vmatpush.xpose.msra.mxu0 0.0
        %3894 = vmatpush.xpose.msra.mxu0 0.0
        %3895 = vmatpush.xpose.msra.mxu0 0.0
        %3896 = vmatpush.xpose.msra.mxu0 0.0
        %3897 = vmatpush.xpose.msra.mxu0 0.0
        %3898 = vmatpush.xpose.msra.mxu0 %v3882
        %3899 = vmatpush.xpose.msra.mxu0 %v3879
        %3900 = vmatmul.f32.gmra.mxu0 %v3876
        %v3901 = vpop.f32.mrf.mxu0
        %v3902 = vadd.f32 0.0, %v3901
        %3903 = vdwg.mxu0
        %v3905 = vsel %vm3845, %v1074, 0
        %v3908 = vsel %vm3845, %v3817, 0
        %v3911 = vsel %vm3845, %v3818, 0
        %3913 = vmatpush.xpose.msra.mxu0 0.0
        %3914 = vmatpush.xpose.msra.mxu0 0.0
        %3915 = vmatpush.xpose.msra.mxu0 0.0
        %3916 = vmatpush.xpose.msra.mxu0 0.0
        %3917 = vmatpush.xpose.msra.mxu0 0.0
        %3918 = vmatpush.xpose.msra.mxu0 0.0
        %3919 = vmatpush.xpose.msra.mxu0 0.0
        %3920 = vmatpush.xpose.msra.mxu0 0.0
        %3921 = vmatpush.xpose.msra.mxu0 0.0
        %3922 = vmatpush.xpose.msra.mxu0 0.0
        %3923 = vmatpush.xpose.msra.mxu0 0.0
        %3924 = vmatpush.xpose.msra.mxu0 0.0
        %3925 = vmatpush.xpose.msra.mxu0 0.0
        %3926 = vmatpush.xpose.msra.mxu0 0.0
        %3927 = vmatpush.xpose.msra.mxu0 %v3911
        %3928 = vmatpush.xpose.msra.mxu0 %v3908
        %3929 = vmatmul.f32.gmra.mxu0 %v3905
        %v3930 = vpop.f32.mrf.mxu0
        %v3931 = vadd.f32 0.0, %v3930
        %3932 = vdwg.mxu0
        %v3934 = vsel %vm3845, %v1076, 0
        %v3937 = vsel %vm3845, %v3819, 0
        %v3940 = vsel %vm3845, %v3820, 0
        %3942 = vmatpush.xpose.msra.mxu0 0.0
        %3943 = vmatpush.xpose.msra.mxu0 0.0
        %3944 = vmatpush.xpose.msra.mxu0 0.0
        %3945 = vmatpush.xpose.msra.mxu0 0.0
        %3946 = vmatpush.xpose.msra.mxu0 0.0
        %3947 = vmatpush.xpose.msra.mxu0 0.0
        %3948 = vmatpush.xpose.msra.mxu0 0.0
        %3949 = vmatpush.xpose.msra.mxu0 0.0
        %3950 = vmatpush.xpose.msra.mxu0 0.0
        %3951 = vmatpush.xpose.msra.mxu0 0.0
        %3952 = vmatpush.xpose.msra.mxu0 0.0
        %3953 = vmatpush.xpose.msra.mxu0 0.0
        %3954 = vmatpush.xpose.msra.mxu0 0.0
        %3955 = vmatpush.xpose.msra.mxu0 0.0
        %3956 = vmatpush.xpose.msra.mxu0 %v3940
        %3957 = vmatpush.xpose.msra.mxu0 %v3937
        %3958 = vmatmul.f32.gmra.mxu0 %v3934
        %v3959 = vpop.f32.mrf.mxu0
        %v3960 = vadd.f32 0.0, %v3959
        %3961 = vdwg.mxu0
        %v3963 = vsel %vm3845, %v1078, 0
        %v3966 = vsel %vm3845, %v3821, 0
        %v3969 = vsel %vm3845, %v3822, 0
        %3971 = vmatpush.xpose.msra.mxu0 0.0
        %3972 = vmatpush.xpose.msra.mxu0 0.0
        %3973 = vmatpush.xpose.msra.mxu0 0.0
        %3974 = vmatpush.xpose.msra.mxu0 0.0
        %3975 = vmatpush.xpose.msra.mxu0 0.0
        %3976 = vmatpush.xpose.msra.mxu0 0.0
        %3977 = vmatpush.xpose.msra.mxu0 0.0
        %3978 = vmatpush.xpose.msra.mxu0 0.0
        %3979 = vmatpush.xpose.msra.mxu0 0.0
        %3980 = vmatpush.xpose.msra.mxu0 0.0
        %3981 = vmatpush.xpose.msra.mxu0 0.0
        %3982 = vmatpush.xpose.msra.mxu0 0.0
        %3983 = vmatpush.xpose.msra.mxu0 0.0
        %3984 = vmatpush.xpose.msra.mxu0 0.0
        %3985 = vmatpush.xpose.msra.mxu0 %v3969
        %3986 = vmatpush.xpose.msra.mxu0 %v3966
        %3987 = vmatmul.f32.gmra.mxu0 %v3963
        %v3988 = vpop.f32.mrf.mxu0
        %v3989 = vadd.f32 0.0, %v3988
        %3990 = vdwg.mxu0
        %v3992 = vsel %vm3845, %v1080, 0
        %v3995 = vsel %vm3845, %v3823, 0
        %v3998 = vsel %vm3845, %v3824, 0
        %4000 = vmatpush.xpose.msra.mxu0 0.0
        %4001 = vmatpush.xpose.msra.mxu0 0.0
        %4002 = vmatpush.xpose.msra.mxu0 0.0
        %4003 = vmatpush.xpose.msra.mxu0 0.0
        %4004 = vmatpush.xpose.msra.mxu0 0.0
        %4005 = vmatpush.xpose.msra.mxu0 0.0
        %4006 = vmatpush.xpose.msra.mxu0 0.0
        %4007 = vmatpush.xpose.msra.mxu0 0.0
        %4008 = vmatpush.xpose.msra.mxu0 0.0
        %4009 = vmatpush.xpose.msra.mxu0 0.0
        %4010 = vmatpush.xpose.msra.mxu0 0.0
        %4011 = vmatpush.xpose.msra.mxu0 0.0
        %4012 = vmatpush.xpose.msra.mxu0 0.0
        %4013 = vmatpush.xpose.msra.mxu0 0.0
        %4014 = vmatpush.xpose.msra.mxu0 %v3998
        %4015 = vmatpush.xpose.msra.mxu0 %v3995
        %4016 = vmatmul.f32.gmra.mxu0 %v3992
        %v4017 = vpop.f32.mrf.mxu0
        %v4018 = vadd.f32 0.0, %v4017
        %4019 = vdwg.mxu0
        %v4021 = vsel %vm3845, %v1082, 0
        %v4024 = vsel %vm3845, %v3825, 0
        %v4027 = vsel %vm3845, %v3826, 0
        %4029 = vmatpush.xpose.msra.mxu0 0.0
        %4030 = vmatpush.xpose.msra.mxu0 0.0
        %4031 = vmatpush.xpose.msra.mxu0 0.0
        %4032 = vmatpush.xpose.msra.mxu0 0.0
        %4033 = vmatpush.xpose.msra.mxu0 0.0
        %4034 = vmatpush.xpose.msra.mxu0 0.0
        %4035 = vmatpush.xpose.msra.mxu0 0.0
        %4036 = vmatpush.xpose.msra.mxu0 0.0
        %4037 = vmatpush.xpose.msra.mxu0 0.0
        %4038 = vmatpush.xpose.msra.mxu0 0.0
        %4039 = vmatpush.xpose.msra.mxu0 0.0
        %4040 = vmatpush.xpose.msra.mxu0 0.0
        %4041 = vmatpush.xpose.msra.mxu0 0.0
        %4042 = vmatpush.xpose.msra.mxu0 0.0
        %4043 = vmatpush.xpose.msra.mxu0 %v4027
        %4044 = vmatpush.xpose.msra.mxu0 %v4024
        %4045 = vmatmul.f32.gmra.mxu0 %v4021
        %v4046 = vpop.f32.mrf.mxu0
        %v4047 = vadd.f32 0.0, %v4046
        %4048 = vdwg.mxu0
        %v4050 = vsel %vm3845, %v1084, 0
        %v4053 = vsel %vm3845, %v3827, 0
        %v4056 = vsel %vm3845, %v3828, 0
        %4058 = vmatpush.xpose.msra.mxu0 0.0
        %4059 = vmatpush.xpose.msra.mxu0 0.0
        %4060 = vmatpush.xpose.msra.mxu0 0.0
        %4061 = vmatpush.xpose.msra.mxu0 0.0
        %4062 = vmatpush.xpose.msra.mxu0 0.0
        %4063 = vmatpush.xpose.msra.mxu0 0.0
        %4064 = vmatpush.xpose.msra.mxu0 0.0
        %4065 = vmatpush.xpose.msra.mxu0 0.0
        %4066 = vmatpush.xpose.msra.mxu0 0.0
        %4067 = vmatpush.xpose.msra.mxu0 0.0
        %4068 = vmatpush.xpose.msra.mxu0 0.0
        %4069 = vmatpush.xpose.msra.mxu0 0.0
        %4070 = vmatpush.xpose.msra.mxu0 0.0
        %4071 = vmatpush.xpose.msra.mxu0 0.0
        %4072 = vmatpush.xpose.msra.mxu0 %v4056
        %4073 = vmatpush.xpose.msra.mxu0 %v4053
        %4074 = vmatmul.f32.gmra.mxu0 %v4050
        %v4075 = vpop.f32.mrf.mxu0
        %v4076 = vadd.f32 0.0, %v4075
        %4077 = vdwg.mxu0
        %v4079 = vsel %vm3845, %v1406, 0
        %v4082 = vsel %vm3845, %v3829, 0
        %v4085 = vsel %vm3845, %v3830, 0
        %4087 = vmatpush.xpose.msra.mxu0 0.0
        %4088 = vmatpush.xpose.msra.mxu0 0.0
        %4089 = vmatpush.xpose.msra.mxu0 0.0
        %4090 = vmatpush.xpose.msra.mxu0 0.0
        %4091 = vmatpush.xpose.msra.mxu0 0.0
        %4092 = vmatpush.xpose.msra.mxu0 0.0
        %4093 = vmatpush.xpose.msra.mxu0 0.0
        %4094 = vmatpush.xpose.msra.mxu0 0.0
        %4095 = vmatpush.xpose.msra.mxu0 0.0
        %4096 = vmatpush.xpose.msra.mxu0 0.0
        %4097 = vmatpush.xpose.msra.mxu0 0.0
        %4098 = vmatpush.xpose.msra.mxu0 0.0
        %4099 = vmatpush.xpose.msra.mxu0 0.0
        %4100 = vmatpush.xpose.msra.mxu0 0.0
        %4101 = vmatpush.xpose.msra.mxu0 %v4085
        %4102 = vmatpush.xpose.msra.mxu0 %v4082
        %4103 = vmatmul.f32.gmra.mxu0 %v4079
        %v4104 = vpop.f32.mrf.mxu0
        %v4105 = vadd.f32 0.0, %v4104
        %4106 = vdwg.mxu0
        %v4108 = vsel %vm3845, %v1408, 0
        %v4111 = vsel %vm3845, %v3831, 0
        %v4114 = vsel %vm3845, %v3832, 0
        %4116 = vmatpush.xpose.msra.mxu0 0.0
        %4117 = vmatpush.xpose.msra.mxu0 0.0
        %4118 = vmatpush.xpose.msra.mxu0 0.0
        %4119 = vmatpush.xpose.msra.mxu0 0.0
        %4120 = vmatpush.xpose.msra.mxu0 0.0
        %4121 = vmatpush.xpose.msra.mxu0 0.0
        %4122 = vmatpush.xpose.msra.mxu0 0.0
        %4123 = vmatpush.xpose.msra.mxu0 0.0
        %4124 = vmatpush.xpose.msra.mxu0 0.0
        %4125 = vmatpush.xpose.msra.mxu0 0.0
        %4126 = vmatpush.xpose.msra.mxu0 0.0
        %4127 = vmatpush.xpose.msra.mxu0 0.0
        %4128 = vmatpush.xpose.msra.mxu0 0.0
        %4129 = vmatpush.xpose.msra.mxu0 0.0
        %4130 = vmatpush.xpose.msra.mxu0 %v4114
        %4131 = vmatpush.xpose.msra.mxu0 %v4111
        %4132 = vmatmul.f32.gmra.mxu0 %v4108
        %v4133 = vpop.f32.mrf.mxu0
        %v4134 = vadd.f32 0.0, %v4133
        %4135 = vdwg.mxu0
        %v4137 = vsel %vm3845, %v1410, 0
        %v4140 = vsel %vm3845, %v3833, 0
        %v4143 = vsel %vm3845, %v3834, 0
        %4145 = vmatpush.xpose.msra.mxu0 0.0
        %4146 = vmatpush.xpose.msra.mxu0 0.0
        %4147 = vmatpush.xpose.msra.mxu0 0.0
        %4148 = vmatpush.xpose.msra.mxu0 0.0
        %4149 = vmatpush.xpose.msra.mxu0 0.0
        %4150 = vmatpush.xpose.msra.mxu0 0.0
        %4151 = vmatpush.xpose.msra.mxu0 0.0
        %4152 = vmatpush.xpose.msra.mxu0 0.0
        %4153 = vmatpush.xpose.msra.mxu0 0.0
        %4154 = vmatpush.xpose.msra.mxu0 0.0
        %4155 = vmatpush.xpose.msra.mxu0 0.0
        %4156 = vmatpush.xpose.msra.mxu0 0.0
        %4157 = vmatpush.xpose.msra.mxu0 0.0
        %4158 = vmatpush.xpose.msra.mxu0 0.0
        %4159 = vmatpush.xpose.msra.mxu0 %v4143
        %4160 = vmatpush.xpose.msra.mxu0 %v4140
        %4161 = vmatmul.f32.gmra.mxu0 %v4137
        %v4162 = vpop.f32.mrf.mxu0
        %v4163 = vadd.f32 0.0, %v4162
        %4164 = vdwg.mxu0
        %v4166 = vsel %vm3845, %v1412, 0
        %v4169 = vsel %vm3845, %v3835, 0
        %v4172 = vsel %vm3845, %v3836, 0
        %4174 = vmatpush.xpose.msra.mxu0 0.0
        %4175 = vmatpush.xpose.msra.mxu0 0.0
        %4176 = vmatpush.xpose.msra.mxu0 0.0
        %4177 = vmatpush.xpose.msra.mxu0 0.0
        %4178 = vmatpush.xpose.msra.mxu0 0.0
        %4179 = vmatpush.xpose.msra.mxu0 0.0
        %4180 = vmatpush.xpose.msra.mxu0 0.0
        %4181 = vmatpush.xpose.msra.mxu0 0.0
        %4182 = vmatpush.xpose.msra.mxu0 0.0
        %4183 = vmatpush.xpose.msra.mxu0 0.0
        %4184 = vmatpush.xpose.msra.mxu0 0.0
        %4185 = vmatpush.xpose.msra.mxu0 0.0
        %4186 = vmatpush.xpose.msra.mxu0 0.0
        %4187 = vmatpush.xpose.msra.mxu0 0.0
        %4188 = vmatpush.xpose.msra.mxu0 %v4172
        %4189 = vmatpush.xpose.msra.mxu0 %v4169
        %4190 = vmatmul.f32.gmra.mxu0 %v4166
        %v4191 = vpop.f32.mrf.mxu0
        %v4192 = vadd.f32 0.0, %v4191
        %4193 = vdwg.mxu0
        %v4195 = vsel %vm3845, %v1414, 0
        %v4198 = vsel %vm3845, %v3837, 0
        %v4201 = vsel %vm3845, %v3838, 0
        %4203 = vmatpush.xpose.msra.mxu0 0.0
        %4204 = vmatpush.xpose.msra.mxu0 0.0
        %4205 = vmatpush.xpose.msra.mxu0 0.0
        %4206 = vmatpush.xpose.msra.mxu0 0.0
        %4207 = vmatpush.xpose.msra.mxu0 0.0
        %4208 = vmatpush.xpose.msra.mxu0 0.0
        %4209 = vmatpush.xpose.msra.mxu0 0.0
        %4210 = vmatpush.xpose.msra.mxu0 0.0
        %4211 = vmatpush.xpose.msra.mxu0 0.0
        %4212 = vmatpush.xpose.msra.mxu0 0.0
        %4213 = vmatpush.xpose.msra.mxu0 0.0
        %4214 = vmatpush.xpose.msra.mxu0 0.0
        %4215 = vmatpush.xpose.msra.mxu0 0.0
        %4216 = vmatpush.xpose.msra.mxu0 0.0
        %4217 = vmatpush.xpose.msra.mxu0 %v4201
        %4218 = vmatpush.xpose.msra.mxu0 %v4198
        %4219 = vmatmul.f32.gmra.mxu0 %v4195
        %v4220 = vpop.f32.mrf.mxu0
        %v4221 = vadd.f32 0.0, %v4220
        %4222 = vdwg.mxu0
        %v4224 = vsel %vm3845, %v1416, 0
        %v4227 = vsel %vm3845, %v3839, 0
        %v4230 = vsel %vm3845, %v3840, 0
        %4232 = vmatpush.xpose.msra.mxu0 0.0
        %4233 = vmatpush.xpose.msra.mxu0 0.0
        %4234 = vmatpush.xpose.msra.mxu0 0.0
        %4235 = vmatpush.xpose.msra.mxu0 0.0
        %4236 = vmatpush.xpose.msra.mxu0 0.0
        %4237 = vmatpush.xpose.msra.mxu0 0.0
        %4238 = vmatpush.xpose.msra.mxu0 0.0
        %4239 = vmatpush.xpose.msra.mxu0 0.0
        %4240 = vmatpush.xpose.msra.mxu0 0.0
        %4241 = vmatpush.xpose.msra.mxu0 0.0
        %4242 = vmatpush.xpose.msra.mxu0 0.0
        %4243 = vmatpush.xpose.msra.mxu0 0.0
        %4244 = vmatpush.xpose.msra.mxu0 0.0
        %4245 = vmatpush.xpose.msra.mxu0 0.0
        %4246 = vmatpush.xpose.msra.mxu0 %v4230
        %4247 = vmatpush.xpose.msra.mxu0 %v4227
        %4248 = vmatmul.f32.gmra.mxu0 %v4224
        %v4249 = vpop.f32.mrf.mxu0
        %v4250 = vadd.f32 0.0, %v4249
        %4251 = vdwg.mxu0
        %v4253 = vsel %vm3845, %v1418, 0
        %v4256 = vsel %vm3845, %v3841, 0
        %v4259 = vsel %vm3845, %v3842, 0
        %4261 = vmatpush.xpose.msra.mxu0 0.0
        %4262 = vmatpush.xpose.msra.mxu0 0.0
        %4263 = vmatpush.xpose.msra.mxu0 0.0
        %4264 = vmatpush.xpose.msra.mxu0 0.0
        %4265 = vmatpush.xpose.msra.mxu0 0.0
        %4266 = vmatpush.xpose.msra.mxu0 0.0
        %4267 = vmatpush.xpose.msra.mxu0 0.0
        %4268 = vmatpush.xpose.msra.mxu0 0.0
        %4269 = vmatpush.xpose.msra.mxu0 0.0
        %4270 = vmatpush.xpose.msra.mxu0 0.0
        %4271 = vmatpush.xpose.msra.mxu0 0.0
        %4272 = vmatpush.xpose.msra.mxu0 0.0
        %4273 = vmatpush.xpose.msra.mxu0 0.0
        %4274 = vmatpush.xpose.msra.mxu0 0.0
        %4275 = vmatpush.xpose.msra.mxu0 %v4259
        %4276 = vmatpush.xpose.msra.mxu0 %v4256
        %4277 = vmatmul.f32.gmra.mxu0 %v4253
        %v4278 = vpop.f32.mrf.mxu0
        %v4279 = vadd.f32 0.0, %v4278
        %4280 = vdwg.mxu0
        %v4282 = vsel %vm3845, %v1420, 0
        %v4285 = vsel %vm3845, %v3843, 0
        %v4288 = vsel %vm3845, %v3844, 0
        %4290 = vmatpush.xpose.msra.mxu0 0.0
        %4291 = vmatpush.xpose.msra.mxu0 0.0
        %4292 = vmatpush.xpose.msra.mxu0 0.0
        %4293 = vmatpush.xpose.msra.mxu0 0.0
        %4294 = vmatpush.xpose.msra.mxu0 0.0
        %4295 = vmatpush.xpose.msra.mxu0 0.0
        %4296 = vmatpush.xpose.msra.mxu0 0.0
        %4297 = vmatpush.xpose.msra.mxu0 0.0
        %4298 = vmatpush.xpose.msra.mxu0 0.0
        %4299 = vmatpush.xpose.msra.mxu0 0.0
        %4300 = vmatpush.xpose.msra.mxu0 0.0
        %4301 = vmatpush.xpose.msra.mxu0 0.0
        %4302 = vmatpush.xpose.msra.mxu0 0.0
        %4303 = vmatpush.xpose.msra.mxu0 0.0
        %4304 = vmatpush.xpose.msra.mxu0 %v4288
        %4305 = vmatpush.xpose.msra.mxu0 %v4285
        %4306 = vmatmul.f32.gmra.mxu0 %v4282
        %v4307 = vpop.f32.mrf.mxu0
        %v4308 = vadd.f32 0.0, %v4307
        %4309 = vdwg.mxu0
        %v4311 = vsel %vm3845, %v958, 0
        %v4314 = vsel %vm3845, %v2656, 0
        %v4317 = vsel %vm3845, %v2657, 0
        %4319 = vmatpush.xpose.msra.mxu0 0.0
        %4320 = vmatpush.xpose.msra.mxu0 0.0
        %4321 = vmatpush.xpose.msra.mxu0 0.0
        %4322 = vmatpush.xpose.msra.mxu0 0.0
        %4323 = vmatpush.xpose.msra.mxu0 0.0
        %4324 = vmatpush.xpose.msra.mxu0 0.0
        %4325 = vmatpush.xpose.msra.mxu0 0.0
        %4326 = vmatpush.xpose.msra.mxu0 0.0
        %4327 = vmatpush.xpose.msra.mxu0 0.0
        %4328 = vmatpush.xpose.msra.mxu0 0.0
        %4329 = vmatpush.xpose.msra.mxu0 0.0
        %4330 = vmatpush.xpose.msra.mxu0 0.0
        %4331 = vmatpush.xpose.msra.mxu0 0.0
        %4332 = vmatpush.xpose.msra.mxu0 0.0
        %4333 = vmatpush.xpose.msra.mxu0 %v4317
        %4334 = vmatpush.xpose.msra.mxu0 %v4314
        %4335 = vmatmul.f32.gmra.mxu0 %v4311
        %v4336 = vpop.f32.mrf.mxu0
        %v4337 = vadd.f32 %v3873, %v4336
        %4338 = vdwg.mxu0
        %v4340 = vsel %vm3845, %v960, 0
        %v4343 = vsel %vm3845, %v2658, 0
        %v4346 = vsel %vm3845, %v2659, 0
        %4348 = vmatpush.xpose.msra.mxu0 0.0
        %4349 = vmatpush.xpose.msra.mxu0 0.0
        %4350 = vmatpush.xpose.msra.mxu0 0.0
        %4351 = vmatpush.xpose.msra.mxu0 0.0
        %4352 = vmatpush.xpose.msra.mxu0 0.0
        %4353 = vmatpush.xpose.msra.mxu0 0.0
        %4354 = vmatpush.xpose.msra.mxu0 0.0
        %4355 = vmatpush.xpose.msra.mxu0 0.0
        %4356 = vmatpush.xpose.msra.mxu0 0.0
        %4357 = vmatpush.xpose.msra.mxu0 0.0
        %4358 = vmatpush.xpose.msra.mxu0 0.0
        %4359 = vmatpush.xpose.msra.mxu0 0.0
        %4360 = vmatpush.xpose.msra.mxu0 0.0
        %4361 = vmatpush.xpose.msra.mxu0 0.0
        %4362 = vmatpush.xpose.msra.mxu0 %v4346
        %4363 = vmatpush.xpose.msra.mxu0 %v4343
        %4364 = vmatmul.f32.gmra.mxu0 %v4340
        %v4365 = vpop.f32.mrf.mxu0
        %v4366 = vadd.f32 %v3902, %v4365
        %4367 = vdwg.mxu0
        %v4369 = vsel %vm3845, %v962, 0
        %v4372 = vsel %vm3845, %v2660, 0
        %v4375 = vsel %vm3845, %v2661, 0
        %4377 = vmatpush.xpose.msra.mxu0 0.0
        %4378 = vmatpush.xpose.msra.mxu0 0.0
        %4379 = vmatpush.xpose.msra.mxu0 0.0
        %4380 = vmatpush.xpose.msra.mxu0 0.0
        %4381 = vmatpush.xpose.msra.mxu0 0.0
        %4382 = vmatpush.xpose.msra.mxu0 0.0
        %4383 = vmatpush.xpose.msra.mxu0 0.0
        %4384 = vmatpush.xpose.msra.mxu0 0.0
        %4385 = vmatpush.xpose.msra.mxu0 0.0
        %4386 = vmatpush.xpose.msra.mxu0 0.0
        %4387 = vmatpush.xpose.msra.mxu0 0.0
        %4388 = vmatpush.xpose.msra.mxu0 0.0
        %4389 = vmatpush.xpose.msra.mxu0 0.0
        %4390 = vmatpush.xpose.msra.mxu0 0.0
        %4391 = vmatpush.xpose.msra.mxu0 %v4375
        %4392 = vmatpush.xpose.msra.mxu0 %v4372
        %4393 = vmatmul.f32.gmra.mxu0 %v4369
        %v4394 = vpop.f32.mrf.mxu0
        %v4395 = vadd.f32 %v3931, %v4394
        %4396 = vdwg.mxu0
        %v4398 = vsel %vm3845, %v964, 0
        %v4401 = vsel %vm3845, %v2662, 0
        %v4404 = vsel %vm3845, %v2663, 0
        %4406 = vmatpush.xpose.msra.mxu0 0.0
        %4407 = vmatpush.xpose.msra.mxu0 0.0
        %4408 = vmatpush.xpose.msra.mxu0 0.0
        %4409 = vmatpush.xpose.msra.mxu0 0.0
        %4410 = vmatpush.xpose.msra.mxu0 0.0
        %4411 = vmatpush.xpose.msra.mxu0 0.0
        %4412 = vmatpush.xpose.msra.mxu0 0.0
        %4413 = vmatpush.xpose.msra.mxu0 0.0
        %4414 = vmatpush.xpose.msra.mxu0 0.0
        %4415 = vmatpush.xpose.msra.mxu0 0.0
        %4416 = vmatpush.xpose.msra.mxu0 0.0
        %4417 = vmatpush.xpose.msra.mxu0 0.0
        %4418 = vmatpush.xpose.msra.mxu0 0.0
        %4419 = vmatpush.xpose.msra.mxu0 0.0
        %4420 = vmatpush.xpose.msra.mxu0 %v4404
        %4421 = vmatpush.xpose.msra.mxu0 %v4401
        %4422 = vmatmul.f32.gmra.mxu0 %v4398
        %v4423 = vpop.f32.mrf.mxu0
        %v4424 = vadd.f32 %v3960, %v4423
        %4425 = vdwg.mxu0
        %v4427 = vsel %vm3845, %v966, 0
        %v4430 = vsel %vm3845, %v2664, 0
        %v4433 = vsel %vm3845, %v2665, 0
        %4435 = vmatpush.xpose.msra.mxu0 0.0
        %4436 = vmatpush.xpose.msra.mxu0 0.0
        %4437 = vmatpush.xpose.msra.mxu0 0.0
        %4438 = vmatpush.xpose.msra.mxu0 0.0
        %4439 = vmatpush.xpose.msra.mxu0 0.0
        %4440 = vmatpush.xpose.msra.mxu0 0.0
        %4441 = vmatpush.xpose.msra.mxu0 0.0
        %4442 = vmatpush.xpose.msra.mxu0 0.0
        %4443 = vmatpush.xpose.msra.mxu0 0.0
        %4444 = vmatpush.xpose.msra.mxu0 0.0
        %4445 = vmatpush.xpose.msra.mxu0 0.0
        %4446 = vmatpush.xpose.msra.mxu0 0.0
        %4447 = vmatpush.xpose.msra.mxu0 0.0
        %4448 = vmatpush.xpose.msra.mxu0 0.0
        %4449 = vmatpush.xpose.msra.mxu0 %v4433
        %4450 = vmatpush.xpose.msra.mxu0 %v4430
        %4451 = vmatmul.f32.gmra.mxu0 %v4427
        %v4452 = vpop.f32.mrf.mxu0
        %v4453 = vadd.f32 %v3989, %v4452
        %4454 = vdwg.mxu0
        %v4456 = vsel %vm3845, %v968, 0
        %v4459 = vsel %vm3845, %v2666, 0
        %v4462 = vsel %vm3845, %v2667, 0
        %4464 = vmatpush.xpose.msra.mxu0 0.0
        %4465 = vmatpush.xpose.msra.mxu0 0.0
        %4466 = vmatpush.xpose.msra.mxu0 0.0
        %4467 = vmatpush.xpose.msra.mxu0 0.0
        %4468 = vmatpush.xpose.msra.mxu0 0.0
        %4469 = vmatpush.xpose.msra.mxu0 0.0
        %4470 = vmatpush.xpose.msra.mxu0 0.0
        %4471 = vmatpush.xpose.msra.mxu0 0.0
        %4472 = vmatpush.xpose.msra.mxu0 0.0
        %4473 = vmatpush.xpose.msra.mxu0 0.0
        %4474 = vmatpush.xpose.msra.mxu0 0.0
        %4475 = vmatpush.xpose.msra.mxu0 0.0
        %4476 = vmatpush.xpose.msra.mxu0 0.0
        %4477 = vmatpush.xpose.msra.mxu0 0.0
        %4478 = vmatpush.xpose.msra.mxu0 %v4462
        %4479 = vmatpush.xpose.msra.mxu0 %v4459
        %4480 = vmatmul.f32.gmra.mxu0 %v4456
        %v4481 = vpop.f32.mrf.mxu0
        %v4482 = vadd.f32 %v4018, %v4481
        %4483 = vdwg.mxu0
        %v4485 = vsel %vm3845, %v970, 0
        %v4488 = vsel %vm3845, %v2668, 0
        %v4491 = vsel %vm3845, %v2669, 0
        %4493 = vmatpush.xpose.msra.mxu0 0.0
        %4494 = vmatpush.xpose.msra.mxu0 0.0
        %4495 = vmatpush.xpose.msra.mxu0 0.0
        %4496 = vmatpush.xpose.msra.mxu0 0.0
        %4497 = vmatpush.xpose.msra.mxu0 0.0
        %4498 = vmatpush.xpose.msra.mxu0 0.0
        %4499 = vmatpush.xpose.msra.mxu0 0.0
        %4500 = vmatpush.xpose.msra.mxu0 0.0
        %4501 = vmatpush.xpose.msra.mxu0 0.0
        %4502 = vmatpush.xpose.msra.mxu0 0.0
        %4503 = vmatpush.xpose.msra.mxu0 0.0
        %4504 = vmatpush.xpose.msra.mxu0 0.0
        %4505 = vmatpush.xpose.msra.mxu0 0.0
        %4506 = vmatpush.xpose.msra.mxu0 0.0
        %4507 = vmatpush.xpose.msra.mxu0 %v4491
        %4508 = vmatpush.xpose.msra.mxu0 %v4488
        %4509 = vmatmul.f32.gmra.mxu0 %v4485
        %v4510 = vpop.f32.mrf.mxu0
        %v4511 = vadd.f32 %v4047, %v4510
        %4512 = vdwg.mxu0
        %v4514 = vsel %vm3845, %v972, 0
        %v4517 = vsel %vm3845, %v2670, 0
        %v4520 = vsel %vm3845, %v2671, 0
        %4522 = vmatpush.xpose.msra.mxu0 0.0
        %4523 = vmatpush.xpose.msra.mxu0 0.0
        %4524 = vmatpush.xpose.msra.mxu0 0.0
        %4525 = vmatpush.xpose.msra.mxu0 0.0
        %4526 = vmatpush.xpose.msra.mxu0 0.0
        %4527 = vmatpush.xpose.msra.mxu0 0.0
        %4528 = vmatpush.xpose.msra.mxu0 0.0
        %4529 = vmatpush.xpose.msra.mxu0 0.0
        %4530 = vmatpush.xpose.msra.mxu0 0.0
        %4531 = vmatpush.xpose.msra.mxu0 0.0
        %4532 = vmatpush.xpose.msra.mxu0 0.0
        %4533 = vmatpush.xpose.msra.mxu0 0.0
        %4534 = vmatpush.xpose.msra.mxu0 0.0
        %4535 = vmatpush.xpose.msra.mxu0 0.0
        %4536 = vmatpush.xpose.msra.mxu0 %v4520
        %4537 = vmatpush.xpose.msra.mxu0 %v4517
        %4538 = vmatmul.f32.gmra.mxu0 %v4514
        %v4539 = vpop.f32.mrf.mxu0
        %v4540 = vadd.f32 %v4076, %v4539
        %4541 = vdwg.mxu0
        %v4543 = vsel %vm3845, %v1294, 0
        %v4546 = vsel %vm3845, %v2672, 0
        %v4549 = vsel %vm3845, %v2673, 0
        %4551 = vmatpush.xpose.msra.mxu0 0.0
        %4552 = vmatpush.xpose.msra.mxu0 0.0
        %4553 = vmatpush.xpose.msra.mxu0 0.0
        %4554 = vmatpush.xpose.msra.mxu0 0.0
        %4555 = vmatpush.xpose.msra.mxu0 0.0
        %4556 = vmatpush.xpose.msra.mxu0 0.0
        %4557 = vmatpush.xpose.msra.mxu0 0.0
        %4558 = vmatpush.xpose.msra.mxu0 0.0
        %4559 = vmatpush.xpose.msra.mxu0 0.0
        %4560 = vmatpush.xpose.msra.mxu0 0.0
        %4561 = vmatpush.xpose.msra.mxu0 0.0
        %4562 = vmatpush.xpose.msra.mxu0 0.0
        %4563 = vmatpush.xpose.msra.mxu0 0.0
        %4564 = vmatpush.xpose.msra.mxu0 0.0
        %4565 = vmatpush.xpose.msra.mxu0 %v4549
        %4566 = vmatpush.xpose.msra.mxu0 %v4546
        %4567 = vmatmul.f32.gmra.mxu0 %v4543
        %v4568 = vpop.f32.mrf.mxu0
        %v4569 = vadd.f32 %v4105, %v4568
        %4570 = vdwg.mxu0
        %v4572 = vsel %vm3845, %v1296, 0
        %v4575 = vsel %vm3845, %v2674, 0
        %v4578 = vsel %vm3845, %v2675, 0
        %4580 = vmatpush.xpose.msra.mxu0 0.0
        %4581 = vmatpush.xpose.msra.mxu0 0.0
        %4582 = vmatpush.xpose.msra.mxu0 0.0
        %4583 = vmatpush.xpose.msra.mxu0 0.0
        %4584 = vmatpush.xpose.msra.mxu0 0.0
        %4585 = vmatpush.xpose.msra.mxu0 0.0
        %4586 = vmatpush.xpose.msra.mxu0 0.0
        %4587 = vmatpush.xpose.msra.mxu0 0.0
        %4588 = vmatpush.xpose.msra.mxu0 0.0
        %4589 = vmatpush.xpose.msra.mxu0 0.0
        %4590 = vmatpush.xpose.msra.mxu0 0.0
        %4591 = vmatpush.xpose.msra.mxu0 0.0
        %4592 = vmatpush.xpose.msra.mxu0 0.0
        %4593 = vmatpush.xpose.msra.mxu0 0.0
        %4594 = vmatpush.xpose.msra.mxu0 %v4578
        %4595 = vmatpush.xpose.msra.mxu0 %v4575
        %4596 = vmatmul.f32.gmra.mxu0 %v4572
        %v4597 = vpop.f32.mrf.mxu0
        %v4598 = vadd.f32 %v4134, %v4597
        %4599 = vdwg.mxu0
        %v4601 = vsel %vm3845, %v1298, 0
        %v4604 = vsel %vm3845, %v2676, 0
        %v4607 = vsel %vm3845, %v2677, 0
        %4609 = vmatpush.xpose.msra.mxu0 0.0
        %4610 = vmatpush.xpose.msra.mxu0 0.0
        %4611 = vmatpush.xpose.msra.mxu0 0.0
        %4612 = vmatpush.xpose.msra.mxu0 0.0
        %4613 = vmatpush.xpose.msra.mxu0 0.0
        %4614 = vmatpush.xpose.msra.mxu0 0.0
        %4615 = vmatpush.xpose.msra.mxu0 0.0
        %4616 = vmatpush.xpose.msra.mxu0 0.0
        %4617 = vmatpush.xpose.msra.mxu0 0.0
        %4618 = vmatpush.xpose.msra.mxu0 0.0
        %4619 = vmatpush.xpose.msra.mxu0 0.0
        %4620 = vmatpush.xpose.msra.mxu0 0.0
        %4621 = vmatpush.xpose.msra.mxu0 0.0
        %4622 = vmatpush.xpose.msra.mxu0 0.0
        %4623 = vmatpush.xpose.msra.mxu0 %v4607
        %4624 = vmatpush.xpose.msra.mxu0 %v4604
        %4625 = vmatmul.f32.gmra.mxu0 %v4601
        %v4626 = vpop.f32.mrf.mxu0
        %v4627 = vadd.f32 %v4163, %v4626
        %4628 = vdwg.mxu0
        %v4630 = vsel %vm3845, %v1300, 0
        %v4633 = vsel %vm3845, %v2678, 0
        %v4636 = vsel %vm3845, %v2679, 0
        %4638 = vmatpush.xpose.msra.mxu0 0.0
        %4639 = vmatpush.xpose.msra.mxu0 0.0
        %4640 = vmatpush.xpose.msra.mxu0 0.0
        %4641 = vmatpush.xpose.msra.mxu0 0.0
        %4642 = vmatpush.xpose.msra.mxu0 0.0
        %4643 = vmatpush.xpose.msra.mxu0 0.0
        %4644 = vmatpush.xpose.msra.mxu0 0.0
        %4645 = vmatpush.xpose.msra.mxu0 0.0
        %4646 = vmatpush.xpose.msra.mxu0 0.0
        %4647 = vmatpush.xpose.msra.mxu0 0.0
        %4648 = vmatpush.xpose.msra.mxu0 0.0
        %4649 = vmatpush.xpose.msra.mxu0 0.0
        %4650 = vmatpush.xpose.msra.mxu0 0.0
        %4651 = vmatpush.xpose.msra.mxu0 0.0
        %4652 = vmatpush.xpose.msra.mxu0 %v4636
        %4653 = vmatpush.xpose.msra.mxu0 %v4633
        %4654 = vmatmul.f32.gmra.mxu0 %v4630
        %v4655 = vpop.f32.mrf.mxu0
        %v4656 = vadd.f32 %v4192, %v4655
        %4657 = vdwg.mxu0
        %v4659 = vsel %vm3845, %v1302, 0
        %v4662 = vsel %vm3845, %v2680, 0
        %v4665 = vsel %vm3845, %v2681, 0
        %4667 = vmatpush.xpose.msra.mxu0 0.0
        %4668 = vmatpush.xpose.msra.mxu0 0.0
        %4669 = vmatpush.xpose.msra.mxu0 0.0
        %4670 = vmatpush.xpose.msra.mxu0 0.0
        %4671 = vmatpush.xpose.msra.mxu0 0.0
        %4672 = vmatpush.xpose.msra.mxu0 0.0
        %4673 = vmatpush.xpose.msra.mxu0 0.0
        %4674 = vmatpush.xpose.msra.mxu0 0.0
        %4675 = vmatpush.xpose.msra.mxu0 0.0
        %4676 = vmatpush.xpose.msra.mxu0 0.0
        %4677 = vmatpush.xpose.msra.mxu0 0.0
        %4678 = vmatpush.xpose.msra.mxu0 0.0
        %4679 = vmatpush.xpose.msra.mxu0 0.0
        %4680 = vmatpush.xpose.msra.mxu0 0.0
        %4681 = vmatpush.xpose.msra.mxu0 %v4665
        %4682 = vmatpush.xpose.msra.mxu0 %v4662
        %4683 = vmatmul.f32.gmra.mxu0 %v4659
        %v4684 = vpop.f32.mrf.mxu0
        %v4685 = vadd.f32 %v4221, %v4684
        %4686 = vdwg.mxu0
        %v4688 = vsel %vm3845, %v1304, 0
        %v4691 = vsel %vm3845, %v2682, 0
        %v4694 = vsel %vm3845, %v2683, 0
        %4696 = vmatpush.xpose.msra.mxu0 0.0
        %4697 = vmatpush.xpose.msra.mxu0 0.0
        %4698 = vmatpush.xpose.msra.mxu0 0.0
        %4699 = vmatpush.xpose.msra.mxu0 0.0
        %4700 = vmatpush.xpose.msra.mxu0 0.0
        %4701 = vmatpush.xpose.msra.mxu0 0.0
        %4702 = vmatpush.xpose.msra.mxu0 0.0
        %4703 = vmatpush.xpose.msra.mxu0 0.0
        %4704 = vmatpush.xpose.msra.mxu0 0.0
        %4705 = vmatpush.xpose.msra.mxu0 0.0
        %4706 = vmatpush.xpose.msra.mxu0 0.0
        %4707 = vmatpush.xpose.msra.mxu0 0.0
        %4708 = vmatpush.xpose.msra.mxu0 0.0
        %4709 = vmatpush.xpose.msra.mxu0 0.0
        %4710 = vmatpush.xpose.msra.mxu0 %v4694
        %4711 = vmatpush.xpose.msra.mxu0 %v4691
        %4712 = vmatmul.f32.gmra.mxu0 %v4688
        %v4713 = vpop.f32.mrf.mxu0
        %v4714 = vadd.f32 %v4250, %v4713
        %4715 = vdwg.mxu0
        %v4717 = vsel %vm3845, %v1306, 0
        %v4720 = vsel %vm3845, %v2684, 0
        %v4723 = vsel %vm3845, %v2685, 0
        %4725 = vmatpush.xpose.msra.mxu0 0.0
        %4726 = vmatpush.xpose.msra.mxu0 0.0
        %4727 = vmatpush.xpose.msra.mxu0 0.0
        %4728 = vmatpush.xpose.msra.mxu0 0.0
        %4729 = vmatpush.xpose.msra.mxu0 0.0
        %4730 = vmatpush.xpose.msra.mxu0 0.0
        %4731 = vmatpush.xpose.msra.mxu0 0.0
        %4732 = vmatpush.xpose.msra.mxu0 0.0
        %4733 = vmatpush.xpose.msra.mxu0 0.0
        %4734 = vmatpush.xpose.msra.mxu0 0.0
        %4735 = vmatpush.xpose.msra.mxu0 0.0
        %4736 = vmatpush.xpose.msra.mxu0 0.0
        %4737 = vmatpush.xpose.msra.mxu0 0.0
        %4738 = vmatpush.xpose.msra.mxu0 0.0
        %4739 = vmatpush.xpose.msra.mxu0 %v4723
        %4740 = vmatpush.xpose.msra.mxu0 %v4720
        %4741 = vmatmul.f32.gmra.mxu0 %v4717
        %v4742 = vpop.f32.mrf.mxu0
        %v4743 = vadd.f32 %v4279, %v4742
        %4744 = vdwg.mxu0
        %v4746 = vsel %vm3845, %v1308, 0
        %v4749 = vsel %vm3845, %v2686, 0
        %v4752 = vsel %vm3845, %v2687, 0
        %4754 = vmatpush.xpose.msra.mxu0 0.0
        %4755 = vmatpush.xpose.msra.mxu0 0.0
        %4756 = vmatpush.xpose.msra.mxu0 0.0
        %4757 = vmatpush.xpose.msra.mxu0 0.0
        %4758 = vmatpush.xpose.msra.mxu0 0.0
        %4759 = vmatpush.xpose.msra.mxu0 0.0
        %4760 = vmatpush.xpose.msra.mxu0 0.0
        %4761 = vmatpush.xpose.msra.mxu0 0.0
        %4762 = vmatpush.xpose.msra.mxu0 0.0
        %4763 = vmatpush.xpose.msra.mxu0 0.0
        %4764 = vmatpush.xpose.msra.mxu0 0.0
        %4765 = vmatpush.xpose.msra.mxu0 0.0
        %4766 = vmatpush.xpose.msra.mxu0 0.0
        %4767 = vmatpush.xpose.msra.mxu0 0.0
        %4768 = vmatpush.xpose.msra.mxu0 %v4752
        %4769 = vmatpush.xpose.msra.mxu0 %v4749
        %4770 = vmatmul.f32.gmra.mxu0 %v4746
        %v4771 = vpop.f32.mrf.mxu0
        %v4772 = vadd.f32 %v4308, %v4771
        %4773 = vdwg.mxu0
        %v4774 = vperm.slane %v584, 0
        %v4775 = vlaneseq
        %v4776 = vshrl.u32 %v4775, 7
        %4778 = vset.pattern.permute.xlu0 %v4776
        %4779 = vperm.xlu0 %4778, %v4774
        %v4780 = vpop.permute.xlu0 %4779
        %v4781 = vlaneseq
        %v4782 = vshrl.u32 %v4781, 7
        %v4783 = vadd.s32 %v4782, 8
        %4784 = vset.pattern.permute.xlu0 %v4783
        %4785 = vperm.xlu0 %4784, %v4774
        %v4786 = vpop.permute.xlu0 %4785
        %v4787 = vperm.slane %v584, 1
        %v4788 = vlaneseq
        %v4789 = vshrl.u32 %v4788, 7
        %4791 = vset.pattern.permute.xlu0 %v4789
        %4792 = vperm.xlu0 %4791, %v4787
        %v4793 = vpop.permute.xlu0 %4792
        %v4794 = vlaneseq
        %v4795 = vshrl.u32 %v4794, 7
        %v4796 = vadd.s32 %v4795, 8
        %4797 = vset.pattern.permute.xlu0 %v4796
        %4798 = vperm.xlu0 %4797, %v4787
        %v4799 = vpop.permute.xlu0 %4798
        %v4800 = vperm.slane %v584, 2
        %v4801 = vlaneseq
        %v4802 = vshrl.u32 %v4801, 7
        %4804 = vset.pattern.permute.xlu0 %v4802
        %4805 = vperm.xlu0 %4804, %v4800
        %v4806 = vpop.permute.xlu0 %4805
        %v4807 = vlaneseq
        %v4808 = vshrl.u32 %v4807, 7
        %v4809 = vadd.s32 %v4808, 8
        %4810 = vset.pattern.permute.xlu0 %v4809
        %4811 = vperm.xlu0 %4810, %v4800
        %v4812 = vpop.permute.xlu0 %4811
        %v4813 = vperm.slane %v584, 3
        %v4814 = vlaneseq
        %v4815 = vshrl.u32 %v4814, 7
        %4817 = vset.pattern.permute.xlu0 %v4815
        %4818 = vperm.xlu0 %4817, %v4813
        %v4819 = vpop.permute.xlu0 %4818
        %v4820 = vlaneseq
        %v4821 = vshrl.u32 %v4820, 7
        %v4822 = vadd.s32 %v4821, 8
        %4823 = vset.pattern.permute.xlu0 %v4822
        %4824 = vperm.xlu0 %4823, %v4813
        %v4825 = vpop.permute.xlu0 %4824
        %v4826 = vperm.slane %v584, 4
        %v4827 = vlaneseq
        %v4828 = vshrl.u32 %v4827, 7
        %4830 = vset.pattern.permute.xlu0 %v4828
        %4831 = vperm.xlu0 %4830, %v4826
        %v4832 = vpop.permute.xlu0 %4831
        %v4833 = vlaneseq
        %v4834 = vshrl.u32 %v4833, 7
        %v4835 = vadd.s32 %v4834, 8
        %4836 = vset.pattern.permute.xlu0 %v4835
        %4837 = vperm.xlu0 %4836, %v4826
        %v4838 = vpop.permute.xlu0 %4837
        %v4839 = vperm.slane %v584, 5
        %v4840 = vlaneseq
        %v4841 = vshrl.u32 %v4840, 7
        %4843 = vset.pattern.permute.xlu0 %v4841
        %4844 = vperm.xlu0 %4843, %v4839
        %v4845 = vpop.permute.xlu0 %4844
        %v4846 = vlaneseq
        %v4847 = vshrl.u32 %v4846, 7
        %v4848 = vadd.s32 %v4847, 8
        %4849 = vset.pattern.permute.xlu0 %v4848
        %4850 = vperm.xlu0 %4849, %v4839
        %v4851 = vpop.permute.xlu0 %4850
        %v4852 = vperm.slane %v584, 6
        %v4853 = vlaneseq
        %v4854 = vshrl.u32 %v4853, 7
        %4856 = vset.pattern.permute.xlu0 %v4854
        %4857 = vperm.xlu0 %4856, %v4852
        %v4858 = vpop.permute.xlu0 %4857
        %v4859 = vlaneseq
        %v4860 = vshrl.u32 %v4859, 7
        %v4861 = vadd.s32 %v4860, 8
        %4862 = vset.pattern.permute.xlu0 %v4861
        %4863 = vperm.xlu0 %4862, %v4852
        %v4864 = vpop.permute.xlu0 %4863
        %v4865 = vperm.slane %v584, 7
        %v4866 = vlaneseq
        %v4867 = vshrl.u32 %v4866, 7
        %4869 = vset.pattern.permute.xlu0 %v4867
        %4870 = vperm.xlu0 %4869, %v4865
        %v4871 = vpop.permute.xlu0 %4870
        %v4872 = vlaneseq
        %v4873 = vshrl.u32 %v4872, 7
        %v4874 = vadd.s32 %v4873, 8
        %4875 = vset.pattern.permute.xlu0 %v4874
        %4876 = vperm.xlu0 %4875, %v4865
        %v4877 = vpop.permute.xlu0 %4876
        %v4878 = vperm.slane %v590, 0
        %v4879 = vlaneseq
        %v4880 = vshrl.u32 %v4879, 7
        %4882 = vset.pattern.permute.xlu0 %v4880
        %4883 = vperm.xlu0 %4882, %v4878
        %v4884 = vpop.permute.xlu0 %4883
        %v4885 = vlaneseq
        %v4886 = vshrl.u32 %v4885, 7
        %v4887 = vadd.s32 %v4886, 8
        %4888 = vset.pattern.permute.xlu0 %v4887
        %4889 = vperm.xlu0 %4888, %v4878
        %v4890 = vpop.permute.xlu0 %4889
        %v4891 = vperm.slane %v590, 1
        %v4892 = vlaneseq
        %v4893 = vshrl.u32 %v4892, 7
        %4895 = vset.pattern.permute.xlu0 %v4893
        %4896 = vperm.xlu0 %4895, %v4891
        %v4897 = vpop.permute.xlu0 %4896
        %v4898 = vlaneseq
        %v4899 = vshrl.u32 %v4898, 7
        %v4900 = vadd.s32 %v4899, 8
        %4901 = vset.pattern.permute.xlu0 %v4900
        %4902 = vperm.xlu0 %4901, %v4891
        %v4903 = vpop.permute.xlu0 %4902
        %v4904 = vperm.slane %v590, 2
        %v4905 = vlaneseq
        %v4906 = vshrl.u32 %v4905, 7
        %4908 = vset.pattern.permute.xlu0 %v4906
        %4909 = vperm.xlu0 %4908, %v4904
        %v4910 = vpop.permute.xlu0 %4909
        %v4911 = vlaneseq
        %v4912 = vshrl.u32 %v4911, 7
        %v4913 = vadd.s32 %v4912, 8
        %4914 = vset.pattern.permute.xlu0 %v4913
        %4915 = vperm.xlu0 %4914, %v4904
        %v4916 = vpop.permute.xlu0 %4915
        %v4917 = vperm.slane %v590, 3
        %v4918 = vlaneseq
        %v4919 = vshrl.u32 %v4918, 7
        %4921 = vset.pattern.permute.xlu0 %v4919
        %4922 = vperm.xlu0 %4921, %v4917
        %v4923 = vpop.permute.xlu0 %4922
        %v4924 = vlaneseq
        %v4925 = vshrl.u32 %v4924, 7
        %v4926 = vadd.s32 %v4925, 8
        %4927 = vset.pattern.permute.xlu0 %v4926
        %4928 = vperm.xlu0 %4927, %v4917
        %v4929 = vpop.permute.xlu0 %4928
        %v4930 = vperm.slane %v590, 4
        %v4931 = vlaneseq
        %v4932 = vshrl.u32 %v4931, 7
        %4934 = vset.pattern.permute.xlu0 %v4932
        %4935 = vperm.xlu0 %4934, %v4930
        %v4936 = vpop.permute.xlu0 %4935
        %v4937 = vlaneseq
        %v4938 = vshrl.u32 %v4937, 7
        %v4939 = vadd.s32 %v4938, 8
        %4940 = vset.pattern.permute.xlu0 %v4939
        %4941 = vperm.xlu0 %4940, %v4930
        %v4942 = vpop.permute.xlu0 %4941
        %v4943 = vperm.slane %v590, 5
        %v4944 = vlaneseq
        %v4945 = vshrl.u32 %v4944, 7
        %4947 = vset.pattern.permute.xlu0 %v4945
        %4948 = vperm.xlu0 %4947, %v4943
        %v4949 = vpop.permute.xlu0 %4948
        %v4950 = vlaneseq
        %v4951 = vshrl.u32 %v4950, 7
        %v4952 = vadd.s32 %v4951, 8
        %4953 = vset.pattern.permute.xlu0 %v4952
        %4954 = vperm.xlu0 %4953, %v4943
        %v4955 = vpop.permute.xlu0 %4954
        %v4956 = vperm.slane %v590, 6
        %v4957 = vlaneseq
        %v4958 = vshrl.u32 %v4957, 7
        %4960 = vset.pattern.permute.xlu0 %v4958
        %4961 = vperm.xlu0 %4960, %v4956
        %v4962 = vpop.permute.xlu0 %4961
        %v4963 = vlaneseq
        %v4964 = vshrl.u32 %v4963, 7
        %v4965 = vadd.s32 %v4964, 8
        %4966 = vset.pattern.permute.xlu0 %v4965
        %4967 = vperm.xlu0 %4966, %v4956
        %v4968 = vpop.permute.xlu0 %4967
        %v4969 = vperm.slane %v590, 7
        %v4970 = vlaneseq
        %v4971 = vshrl.u32 %v4970, 7
        %4973 = vset.pattern.permute.xlu0 %v4971
        %4974 = vperm.xlu0 %4973, %v4969
        %v4975 = vpop.permute.xlu0 %4974
        %v4976 = vlaneseq
        %v4977 = vshrl.u32 %v4976, 7
        %v4978 = vadd.s32 %v4977, 8
        %4979 = vset.pattern.permute.xlu0 %v4978
        %4980 = vperm.xlu0 %4979, %v4969
        %v4981 = vpop.permute.xlu0 %4980
        %v4984 = vrot.slane %v587, 1
        %v4985 = vrot.slane %v587, 2
        %v4986 = vrot.slane %v587, 3
        %v4987 = vrot.slane %v587, 4
        %v4988 = vrot.slane %v587, 5
        %v4989 = vrot.slane %v587, 6
        %v4990 = vrot.slane %v587, 7
        %v4991 = vrot.slane %v593, 1
        %v4992 = vrot.slane %v593, 2
        %v4993 = vrot.slane %v593, 3
        %v4994 = vrot.slane %v593, 4
        %v4995 = vrot.slane %v593, 5
        %v4996 = vrot.slane %v593, 6
        %v4997 = vrot.slane %v593, 7
        %v4998 = vperm.slane %v587, 0
        %v4999 = vperm.slane %v4984, 0
        %v5000 = vperm.slane %v4985, 0
        %v5001 = vperm.slane %v4986, 0
        %v5002 = vperm.slane %v4987, 0
        %v5003 = vperm.slane %v4988, 0
        %v5004 = vperm.slane %v4989, 0
        %v5005 = vperm.slane %v4990, 0
        %v5006 = vperm.slane %v593, 0
        %v5007 = vperm.slane %v4991, 0
        %v5008 = vperm.slane %v4992, 0
        %v5009 = vperm.slane %v4993, 0
        %v5010 = vperm.slane %v4994, 0
        %v5011 = vperm.slane %v4995, 0
        %v5012 = vperm.slane %v4996, 0
        %v5013 = vperm.slane %v4997, 0
        %v5030 = vsub.f32 %v4780, %v4998
        %v5031 = vsub.f32 %v4786, %v4998
        %v5032 = vsub.f32 %v4793, %v4999
        %v5033 = vsub.f32 %v4799, %v4999
        %v5034 = vsub.f32 %v4806, %v5000
        %v5035 = vsub.f32 %v4812, %v5000
        %v5036 = vsub.f32 %v4819, %v5001
        %v5037 = vsub.f32 %v4825, %v5001
        %v5038 = vsub.f32 %v4832, %v5002
        %v5039 = vsub.f32 %v4838, %v5002
        %v5040 = vsub.f32 %v4845, %v5003
        %v5041 = vsub.f32 %v4851, %v5003
        %v5042 = vsub.f32 %v4858, %v5004
        %v5043 = vsub.f32 %v4864, %v5004
        %v5044 = vsub.f32 %v4871, %v5005
        %v5045 = vsub.f32 %v4877, %v5005
        %v5046 = vsub.f32 %v4884, %v5006
        %v5047 = vsub.f32 %v4890, %v5006
        %v5048 = vsub.f32 %v4897, %v5007
        %v5049 = vsub.f32 %v4903, %v5007
        %v5050 = vsub.f32 %v4910, %v5008
        %v5051 = vsub.f32 %v4916, %v5008
        %v5052 = vsub.f32 %v4923, %v5009
        %v5053 = vsub.f32 %v4929, %v5009
        %v5054 = vsub.f32 %v4936, %v5010
        %v5055 = vsub.f32 %v4942, %v5010
        %v5056 = vsub.f32 %v4949, %v5011
        %v5057 = vsub.f32 %v4955, %v5011
        %v5058 = vsub.f32 %v4962, %v5012
        %v5059 = vsub.f32 %v4968, %v5012
        %v5060 = vsub.f32 %v4975, %v5013
        %v5061 = vsub.f32 %v4981, %v5013
        %v5062 = vtanh.pop %v5030
        %v5063 = vtanh.pop %v5031
        %v5064 = vtanh.pop %v5032
        %v5065 = vtanh.pop %v5033
        %v5066 = vtanh.pop %v5034
        %v5067 = vtanh.pop %v5035
        %v5068 = vtanh.pop %v5036
        %v5069 = vtanh.pop %v5037
        %v5070 = vtanh.pop %v5038
        %v5071 = vtanh.pop %v5039
        %v5072 = vtanh.pop %v5040
        %v5073 = vtanh.pop %v5041
        %v5074 = vtanh.pop %v5042
        %v5075 = vtanh.pop %v5043
        %v5076 = vtanh.pop %v5044
        %v5077 = vtanh.pop %v5045
        %v5078 = vtanh.pop %v5046
        %v5079 = vtanh.pop %v5047
        %v5080 = vtanh.pop %v5048
        %v5081 = vtanh.pop %v5049
        %v5082 = vtanh.pop %v5050
        %v5083 = vtanh.pop %v5051
        %v5084 = vtanh.pop %v5052
        %v5085 = vtanh.pop %v5053
        %v5086 = vtanh.pop %v5054
        %v5087 = vtanh.pop %v5055
        %v5088 = vtanh.pop %v5056
        %v5089 = vtanh.pop %v5057
        %v5090 = vtanh.pop %v5058
        %v5091 = vtanh.pop %v5059
        %v5092 = vtanh.pop %v5060
        %v5093 = vtanh.pop %v5061
        %s5094 = scalar_lea.vmem %s6, 16
        %v5095 = vld [vmem:[%s5094] sm:$0xff]
        %v5096 = vld [vmem:[%s7 + $0x2] sm:$0x1]
        %v5097 = vperm.slane %v5096, 0
        %v5098 = vlaneseq
        %v5099 = vshrl.u32 %v5098, 7
        %5101 = vset.pattern.permute.xlu0 %v5099
        %5102 = vperm.xlu0 %5101, %v5097
        %v5103 = vpop.permute.xlu0 %5102
        %v5104 = vperm.slane %v5103, 0
        %v5105 = vperm.slane %v5103, 1
        %v5106 = vperm.slane %v5103, 2
        %v5107 = vperm.slane %v5103, 3
        %v5108 = vperm.slane %v5103, 4
        %v5109 = vperm.slane %v5103, 5
        %v5110 = vperm.slane %v5103, 6
        %v5111 = vperm.slane %v5103, 7
        %v5113 = vrot.slane %v5095, 1
        %v5114 = vrot.slane %v5095, 2
        %v5115 = vrot.slane %v5095, 3
        %v5116 = vrot.slane %v5095, 4
        %v5117 = vrot.slane %v5095, 5
        %v5118 = vrot.slane %v5095, 6
        %v5119 = vrot.slane %v5095, 7
        %v5120 = vperm.slane %v5095, 0
        %v5121 = vperm.slane %v5113, 0
        %v5122 = vperm.slane %v5114, 0
        %v5123 = vperm.slane %v5115, 0
        %v5124 = vperm.slane %v5116, 0
        %v5125 = vperm.slane %v5117, 0
        %v5126 = vperm.slane %v5118, 0
        %v5127 = vperm.slane %v5119, 0
        %5128 = vset.pattern.permute.xlu0 0
        %5129 = vperm.xlu0 %5128, %v5120
        %v5130 = vpop.permute.xlu0 %5129
        %5132 = vset.pattern.permute.xlu0 0
        %5133 = vperm.xlu0 %5132, %v5121
        %v5134 = vpop.permute.xlu0 %5133
        %5136 = vset.pattern.permute.xlu0 0
        %5137 = vperm.xlu0 %5136, %v5122
        %v5138 = vpop.permute.xlu0 %5137
        %5140 = vset.pattern.permute.xlu0 0
        %5141 = vperm.xlu0 %5140, %v5123
        %v5142 = vpop.permute.xlu0 %5141
        %5144 = vset.pattern.permute.xlu0 0
        %5145 = vperm.xlu0 %5144, %v5124
        %v5146 = vpop.permute.xlu0 %5145
        %5148 = vset.pattern.permute.xlu0 0
        %5149 = vperm.xlu0 %5148, %v5125
        %v5150 = vpop.permute.xlu0 %5149
        %5152 = vset.pattern.permute.xlu0 0
        %5153 = vperm.xlu0 %5152, %v5126
        %v5154 = vpop.permute.xlu0 %5153
        %5156 = vset.pattern.permute.xlu0 0
        %5157 = vperm.xlu0 %5156, %v5127
        %v5158 = vpop.permute.xlu0 %5157
        %v5160 = vmul.f32 %v5130, %v5062
        %v5161 = vmul.f32 %v5130, %v5063
        %v5162 = vmul.f32 %v5134, %v5062
        %v5163 = vmul.f32 %v5134, %v5063
        %v5164 = vmul.f32 %v5138, %v5062
        %v5165 = vmul.f32 %v5138, %v5063
        %v5166 = vmul.f32 %v5142, %v5062
        %v5167 = vmul.f32 %v5142, %v5063
        %v5168 = vmul.f32 %v5146, %v5062
        %v5169 = vmul.f32 %v5146, %v5063
        %v5170 = vmul.f32 %v5150, %v5062
        %v5171 = vmul.f32 %v5150, %v5063
        %v5172 = vmul.f32 %v5154, %v5062
        %v5173 = vmul.f32 %v5154, %v5063
        %v5174 = vmul.f32 %v5158, %v5062
        %v5175 = vmul.f32 %v5158, %v5063
        %v5176 = vmul.f32 %v5130, %v5078
        %v5177 = vmul.f32 %v5130, %v5079
        %v5178 = vmul.f32 %v5134, %v5078
        %v5179 = vmul.f32 %v5134, %v5079
        %v5180 = vmul.f32 %v5138, %v5078
        %v5181 = vmul.f32 %v5138, %v5079
        %v5182 = vmul.f32 %v5142, %v5078
        %v5183 = vmul.f32 %v5142, %v5079
        %v5184 = vmul.f32 %v5146, %v5078
        %v5185 = vmul.f32 %v5146, %v5079
        %v5186 = vmul.f32 %v5150, %v5078
        %v5187 = vmul.f32 %v5150, %v5079
        %v5188 = vmul.f32 %v5154, %v5078
        %v5189 = vmul.f32 %v5154, %v5079
        %v5190 = vmul.f32 %v5158, %v5078
        %v5191 = vmul.f32 %v5158, %v5079
        %v5192 = vadd.f32 %v5104, %v5160
        %v5193 = vadd.f32 %v5104, %v5161
        %v5194 = vadd.f32 %v5105, %v5162
        %v5195 = vadd.f32 %v5105, %v5163
        %v5196 = vadd.f32 %v5106, %v5164
        %v5197 = vadd.f32 %v5106, %v5165
        %v5198 = vadd.f32 %v5107, %v5166
        %v5199 = vadd.f32 %v5107, %v5167
        %v5200 = vadd.f32 %v5108, %v5168
        %v5201 = vadd.f32 %v5108, %v5169
        %v5202 = vadd.f32 %v5109, %v5170
        %v5203 = vadd.f32 %v5109, %v5171
        %v5204 = vadd.f32 %v5110, %v5172
        %v5205 = vadd.f32 %v5110, %v5173
        %v5206 = vadd.f32 %v5111, %v5174
        %v5207 = vadd.f32 %v5111, %v5175
        %v5208 = vadd.f32 %v5104, %v5176
        %v5209 = vadd.f32 %v5104, %v5177
        %v5210 = vadd.f32 %v5105, %v5178
        %v5211 = vadd.f32 %v5105, %v5179
        %v5212 = vadd.f32 %v5106, %v5180
        %v5213 = vadd.f32 %v5106, %v5181
        %v5214 = vadd.f32 %v5107, %v5182
        %v5215 = vadd.f32 %v5107, %v5183
        %v5216 = vadd.f32 %v5108, %v5184
        %v5217 = vadd.f32 %v5108, %v5185
        %v5218 = vadd.f32 %v5109, %v5186
        %v5219 = vadd.f32 %v5109, %v5187
        %v5220 = vadd.f32 %v5110, %v5188
        %v5221 = vadd.f32 %v5110, %v5189
        %v5222 = vadd.f32 %v5111, %v5190
        %v5223 = vadd.f32 %v5111, %v5191
        %5224 = vset.pattern.permute.xlu0 1
        %5225 = vperm.xlu0 %5224, %v5120
        %v5226 = vpop.permute.xlu0 %5225
        %5228 = vset.pattern.permute.xlu0 1
        %5229 = vperm.xlu0 %5228, %v5121
        %v5230 = vpop.permute.xlu0 %5229
        %5232 = vset.pattern.permute.xlu0 1
        %5233 = vperm.xlu0 %5232, %v5122
        %v5234 = vpop.permute.xlu0 %5233
        %5236 = vset.pattern.permute.xlu0 1
        %5237 = vperm.xlu0 %5236, %v5123
        %v5238 = vpop.permute.xlu0 %5237
        %5240 = vset.pattern.permute.xlu0 1
        %5241 = vperm.xlu0 %5240, %v5124
        %v5242 = vpop.permute.xlu0 %5241
        %5244 = vset.pattern.permute.xlu0 1
        %5245 = vperm.xlu0 %5244, %v5125
        %v5246 = vpop.permute.xlu0 %5245
        %5248 = vset.pattern.permute.xlu0 1
        %5249 = vperm.xlu0 %5248, %v5126
        %v5250 = vpop.permute.xlu0 %5249
        %5252 = vset.pattern.permute.xlu0 1
        %5253 = vperm.xlu0 %5252, %v5127
        %v5254 = vpop.permute.xlu0 %5253
        %v5256 = vmul.f32 %v5226, %v5064
        %v5257 = vmul.f32 %v5226, %v5065
        %v5258 = vmul.f32 %v5230, %v5064
        %v5259 = vmul.f32 %v5230, %v5065
        %v5260 = vmul.f32 %v5234, %v5064
        %v5261 = vmul.f32 %v5234, %v5065
        %v5262 = vmul.f32 %v5238, %v5064
        %v5263 = vmul.f32 %v5238, %v5065
        %v5264 = vmul.f32 %v5242, %v5064
        %v5265 = vmul.f32 %v5242, %v5065
        %v5266 = vmul.f32 %v5246, %v5064
        %v5267 = vmul.f32 %v5246, %v5065
        %v5268 = vmul.f32 %v5250, %v5064
        %v5269 = vmul.f32 %v5250, %v5065
        %v5270 = vmul.f32 %v5254, %v5064
        %v5271 = vmul.f32 %v5254, %v5065
        %v5272 = vmul.f32 %v5226, %v5080
        %v5273 = vmul.f32 %v5226, %v5081
        %v5274 = vmul.f32 %v5230, %v5080
        %v5275 = vmul.f32 %v5230, %v5081
        %v5276 = vmul.f32 %v5234, %v5080
        %v5277 = vmul.f32 %v5234, %v5081
        %v5278 = vmul.f32 %v5238, %v5080
        %v5279 = vmul.f32 %v5238, %v5081
        %v5280 = vmul.f32 %v5242, %v5080
        %v5281 = vmul.f32 %v5242, %v5081
        %v5282 = vmul.f32 %v5246, %v5080
        %v5283 = vmul.f32 %v5246, %v5081
        %v5284 = vmul.f32 %v5250, %v5080
        %v5285 = vmul.f32 %v5250, %v5081
        %v5286 = vmul.f32 %v5254, %v5080
        %v5287 = vmul.f32 %v5254, %v5081
        %v5288 = vadd.f32 %v5192, %v5256
        %v5289 = vadd.f32 %v5193, %v5257
        %v5290 = vadd.f32 %v5194, %v5258
        %v5291 = vadd.f32 %v5195, %v5259
        %v5292 = vadd.f32 %v5196, %v5260
        %v5293 = vadd.f32 %v5197, %v5261
        %v5294 = vadd.f32 %v5198, %v5262
        %v5295 = vadd.f32 %v5199, %v5263
        %v5296 = vadd.f32 %v5200, %v5264
        %v5297 = vadd.f32 %v5201, %v5265
        %v5298 = vadd.f32 %v5202, %v5266
        %v5299 = vadd.f32 %v5203, %v5267
        %v5300 = vadd.f32 %v5204, %v5268
        %v5301 = vadd.f32 %v5205, %v5269
        %v5302 = vadd.f32 %v5206, %v5270
        %v5303 = vadd.f32 %v5207, %v5271
        %v5304 = vadd.f32 %v5208, %v5272
        %v5305 = vadd.f32 %v5209, %v5273
        %v5306 = vadd.f32 %v5210, %v5274
        %v5307 = vadd.f32 %v5211, %v5275
        %v5308 = vadd.f32 %v5212, %v5276
        %v5309 = vadd.f32 %v5213, %v5277
        %v5310 = vadd.f32 %v5214, %v5278
        %v5311 = vadd.f32 %v5215, %v5279
        %v5312 = vadd.f32 %v5216, %v5280
        %v5313 = vadd.f32 %v5217, %v5281
        %v5314 = vadd.f32 %v5218, %v5282
        %v5315 = vadd.f32 %v5219, %v5283
        %v5316 = vadd.f32 %v5220, %v5284
        %v5317 = vadd.f32 %v5221, %v5285
        %v5318 = vadd.f32 %v5222, %v5286
        %v5319 = vadd.f32 %v5223, %v5287
        %5320 = vset.pattern.permute.xlu0 2
        %5321 = vperm.xlu0 %5320, %v5120
        %v5322 = vpop.permute.xlu0 %5321
        %5324 = vset.pattern.permute.xlu0 2
        %5325 = vperm.xlu0 %5324, %v5121
        %v5326 = vpop.permute.xlu0 %5325
        %5328 = vset.pattern.permute.xlu0 2
        %5329 = vperm.xlu0 %5328, %v5122
        %v5330 = vpop.permute.xlu0 %5329
        %5332 = vset.pattern.permute.xlu0 2
        %5333 = vperm.xlu0 %5332, %v5123
        %v5334 = vpop.permute.xlu0 %5333
        %5336 = vset.pattern.permute.xlu0 2
        %5337 = vperm.xlu0 %5336, %v5124
        %v5338 = vpop.permute.xlu0 %5337
        %5340 = vset.pattern.permute.xlu0 2
        %5341 = vperm.xlu0 %5340, %v5125
        %v5342 = vpop.permute.xlu0 %5341
        %5344 = vset.pattern.permute.xlu0 2
        %5345 = vperm.xlu0 %5344, %v5126
        %v5346 = vpop.permute.xlu0 %5345
        %5348 = vset.pattern.permute.xlu0 2
        %5349 = vperm.xlu0 %5348, %v5127
        %v5350 = vpop.permute.xlu0 %5349
        %v5352 = vmul.f32 %v5322, %v5066
        %v5353 = vmul.f32 %v5322, %v5067
        %v5354 = vmul.f32 %v5326, %v5066
        %v5355 = vmul.f32 %v5326, %v5067
        %v5356 = vmul.f32 %v5330, %v5066
        %v5357 = vmul.f32 %v5330, %v5067
        %v5358 = vmul.f32 %v5334, %v5066
        %v5359 = vmul.f32 %v5334, %v5067
        %v5360 = vmul.f32 %v5338, %v5066
        %v5361 = vmul.f32 %v5338, %v5067
        %v5362 = vmul.f32 %v5342, %v5066
        %v5363 = vmul.f32 %v5342, %v5067
        %v5364 = vmul.f32 %v5346, %v5066
        %v5365 = vmul.f32 %v5346, %v5067
        %v5366 = vmul.f32 %v5350, %v5066
        %v5367 = vmul.f32 %v5350, %v5067
        %v5368 = vmul.f32 %v5322, %v5082
        %v5369 = vmul.f32 %v5322, %v5083
        %v5370 = vmul.f32 %v5326, %v5082
        %v5371 = vmul.f32 %v5326, %v5083
        %v5372 = vmul.f32 %v5330, %v5082
        %v5373 = vmul.f32 %v5330, %v5083
        %v5374 = vmul.f32 %v5334, %v5082
        %v5375 = vmul.f32 %v5334, %v5083
        %v5376 = vmul.f32 %v5338, %v5082
        %v5377 = vmul.f32 %v5338, %v5083
        %v5378 = vmul.f32 %v5342, %v5082
        %v5379 = vmul.f32 %v5342, %v5083
        %v5380 = vmul.f32 %v5346, %v5082
        %v5381 = vmul.f32 %v5346, %v5083
        %v5382 = vmul.f32 %v5350, %v5082
        %v5383 = vmul.f32 %v5350, %v5083
        %v5384 = vadd.f32 %v5288, %v5352
        %v5385 = vadd.f32 %v5289, %v5353
        %v5386 = vadd.f32 %v5290, %v5354
        %v5387 = vadd.f32 %v5291, %v5355
        %v5388 = vadd.f32 %v5292, %v5356
        %v5389 = vadd.f32 %v5293, %v5357
        %v5390 = vadd.f32 %v5294, %v5358
        %v5391 = vadd.f32 %v5295, %v5359
        %v5392 = vadd.f32 %v5296, %v5360
        %v5393 = vadd.f32 %v5297, %v5361
        %v5394 = vadd.f32 %v5298, %v5362
        %v5395 = vadd.f32 %v5299, %v5363
        %v5396 = vadd.f32 %v5300, %v5364
        %v5397 = vadd.f32 %v5301, %v5365
        %v5398 = vadd.f32 %v5302, %v5366
        %v5399 = vadd.f32 %v5303, %v5367
        %v5400 = vadd.f32 %v5304, %v5368
        %v5401 = vadd.f32 %v5305, %v5369
        %v5402 = vadd.f32 %v5306, %v5370
        %v5403 = vadd.f32 %v5307, %v5371
        %v5404 = vadd.f32 %v5308, %v5372
        %v5405 = vadd.f32 %v5309, %v5373
        %v5406 = vadd.f32 %v5310, %v5374
        %v5407 = vadd.f32 %v5311, %v5375
        %v5408 = vadd.f32 %v5312, %v5376
        %v5409 = vadd.f32 %v5313, %v5377
        %v5410 = vadd.f32 %v5314, %v5378
        %v5411 = vadd.f32 %v5315, %v5379
        %v5412 = vadd.f32 %v5316, %v5380
        %v5413 = vadd.f32 %v5317, %v5381
        %v5414 = vadd.f32 %v5318, %v5382
        %v5415 = vadd.f32 %v5319, %v5383
        %5416 = vset.pattern.permute.xlu0 3
        %5417 = vperm.xlu0 %5416, %v5120
        %v5418 = vpop.permute.xlu0 %5417
        %5420 = vset.pattern.permute.xlu0 3
        %5421 = vperm.xlu0 %5420, %v5121
        %v5422 = vpop.permute.xlu0 %5421
        %5424 = vset.pattern.permute.xlu0 3
        %5425 = vperm.xlu0 %5424, %v5122
        %v5426 = vpop.permute.xlu0 %5425
        %5428 = vset.pattern.permute.xlu0 3
        %5429 = vperm.xlu0 %5428, %v5123
        %v5430 = vpop.permute.xlu0 %5429
        %5432 = vset.pattern.permute.xlu0 3
        %5433 = vperm.xlu0 %5432, %v5124
        %v5434 = vpop.permute.xlu0 %5433
        %5436 = vset.pattern.permute.xlu0 3
        %5437 = vperm.xlu0 %5436, %v5125
        %v5438 = vpop.permute.xlu0 %5437
        %5440 = vset.pattern.permute.xlu0 3
        %5441 = vperm.xlu0 %5440, %v5126
        %v5442 = vpop.permute.xlu0 %5441
        %5444 = vset.pattern.permute.xlu0 3
        %5445 = vperm.xlu0 %5444, %v5127
        %v5446 = vpop.permute.xlu0 %5445
        %v5448 = vmul.f32 %v5418, %v5068
        %v5449 = vmul.f32 %v5418, %v5069
        %v5450 = vmul.f32 %v5422, %v5068
        %v5451 = vmul.f32 %v5422, %v5069
        %v5452 = vmul.f32 %v5426, %v5068
        %v5453 = vmul.f32 %v5426, %v5069
        %v5454 = vmul.f32 %v5430, %v5068
        %v5455 = vmul.f32 %v5430, %v5069
        %v5456 = vmul.f32 %v5434, %v5068
        %v5457 = vmul.f32 %v5434, %v5069
        %v5458 = vmul.f32 %v5438, %v5068
        %v5459 = vmul.f32 %v5438, %v5069
        %v5460 = vmul.f32 %v5442, %v5068
        %v5461 = vmul.f32 %v5442, %v5069
        %v5462 = vmul.f32 %v5446, %v5068
        %v5463 = vmul.f32 %v5446, %v5069
        %v5464 = vmul.f32 %v5418, %v5084
        %v5465 = vmul.f32 %v5418, %v5085
        %v5466 = vmul.f32 %v5422, %v5084
        %v5467 = vmul.f32 %v5422, %v5085
        %v5468 = vmul.f32 %v5426, %v5084
        %v5469 = vmul.f32 %v5426, %v5085
        %v5470 = vmul.f32 %v5430, %v5084
        %v5471 = vmul.f32 %v5430, %v5085
        %v5472 = vmul.f32 %v5434, %v5084
        %v5473 = vmul.f32 %v5434, %v5085
        %v5474 = vmul.f32 %v5438, %v5084
        %v5475 = vmul.f32 %v5438, %v5085
        %v5476 = vmul.f32 %v5442, %v5084
        %v5477 = vmul.f32 %v5442, %v5085
        %v5478 = vmul.f32 %v5446, %v5084
        %v5479 = vmul.f32 %v5446, %v5085
        %v5480 = vadd.f32 %v5384, %v5448
        %v5481 = vadd.f32 %v5385, %v5449
        %v5482 = vadd.f32 %v5386, %v5450
        %v5483 = vadd.f32 %v5387, %v5451
        %v5484 = vadd.f32 %v5388, %v5452
        %v5485 = vadd.f32 %v5389, %v5453
        %v5486 = vadd.f32 %v5390, %v5454
        %v5487 = vadd.f32 %v5391, %v5455
        %v5488 = vadd.f32 %v5392, %v5456
        %v5489 = vadd.f32 %v5393, %v5457
        %v5490 = vadd.f32 %v5394, %v5458
        %v5491 = vadd.f32 %v5395, %v5459
        %v5492 = vadd.f32 %v5396, %v5460
        %v5493 = vadd.f32 %v5397, %v5461
        %v5494 = vadd.f32 %v5398, %v5462
        %v5495 = vadd.f32 %v5399, %v5463
        %v5496 = vadd.f32 %v5400, %v5464
        %v5497 = vadd.f32 %v5401, %v5465
        %v5498 = vadd.f32 %v5402, %v5466
        %v5499 = vadd.f32 %v5403, %v5467
        %v5500 = vadd.f32 %v5404, %v5468
        %v5501 = vadd.f32 %v5405, %v5469
        %v5502 = vadd.f32 %v5406, %v5470
        %v5503 = vadd.f32 %v5407, %v5471
        %v5504 = vadd.f32 %v5408, %v5472
        %v5505 = vadd.f32 %v5409, %v5473
        %v5506 = vadd.f32 %v5410, %v5474
        %v5507 = vadd.f32 %v5411, %v5475
        %v5508 = vadd.f32 %v5412, %v5476
        %v5509 = vadd.f32 %v5413, %v5477
        %v5510 = vadd.f32 %v5414, %v5478
        %v5511 = vadd.f32 %v5415, %v5479
        %5512 = vset.pattern.permute.xlu0 4
        %5513 = vperm.xlu0 %5512, %v5120
        %v5514 = vpop.permute.xlu0 %5513
        %5516 = vset.pattern.permute.xlu0 4
        %5517 = vperm.xlu0 %5516, %v5121
        %v5518 = vpop.permute.xlu0 %5517
        %5520 = vset.pattern.permute.xlu0 4
        %5521 = vperm.xlu0 %5520, %v5122
        %v5522 = vpop.permute.xlu0 %5521
        %5524 = vset.pattern.permute.xlu0 4
        %5525 = vperm.xlu0 %5524, %v5123
        %v5526 = vpop.permute.xlu0 %5525
        %5528 = vset.pattern.permute.xlu0 4
        %5529 = vperm.xlu0 %5528, %v5124
        %v5530 = vpop.permute.xlu0 %5529
        %5532 = vset.pattern.permute.xlu0 4
        %5533 = vperm.xlu0 %5532, %v5125
        %v5534 = vpop.permute.xlu0 %5533
        %5536 = vset.pattern.permute.xlu0 4
        %5537 = vperm.xlu0 %5536, %v5126
        %v5538 = vpop.permute.xlu0 %5537
        %5540 = vset.pattern.permute.xlu0 4
        %5541 = vperm.xlu0 %5540, %v5127
        %v5542 = vpop.permute.xlu0 %5541
        %v5544 = vmul.f32 %v5514, %v5070
        %v5545 = vmul.f32 %v5514, %v5071
        %v5546 = vmul.f32 %v5518, %v5070
        %v5547 = vmul.f32 %v5518, %v5071
        %v5548 = vmul.f32 %v5522, %v5070
        %v5549 = vmul.f32 %v5522, %v5071
        %v5550 = vmul.f32 %v5526, %v5070
        %v5551 = vmul.f32 %v5526, %v5071
        %v5552 = vmul.f32 %v5530, %v5070
        %v5553 = vmul.f32 %v5530, %v5071
        %v5554 = vmul.f32 %v5534, %v5070
        %v5555 = vmul.f32 %v5534, %v5071
        %v5556 = vmul.f32 %v5538, %v5070
        %v5557 = vmul.f32 %v5538, %v5071
        %v5558 = vmul.f32 %v5542, %v5070
        %v5559 = vmul.f32 %v5542, %v5071
        %v5560 = vmul.f32 %v5514, %v5086
        %v5561 = vmul.f32 %v5514, %v5087
        %v5562 = vmul.f32 %v5518, %v5086
        %v5563 = vmul.f32 %v5518, %v5087
        %v5564 = vmul.f32 %v5522, %v5086
        %v5565 = vmul.f32 %v5522, %v5087
        %v5566 = vmul.f32 %v5526, %v5086
        %v5567 = vmul.f32 %v5526, %v5087
        %v5568 = vmul.f32 %v5530, %v5086
        %v5569 = vmul.f32 %v5530, %v5087
        %v5570 = vmul.f32 %v5534, %v5086
        %v5571 = vmul.f32 %v5534, %v5087
        %v5572 = vmul.f32 %v5538, %v5086
        %v5573 = vmul.f32 %v5538, %v5087
        %v5574 = vmul.f32 %v5542, %v5086
        %v5575 = vmul.f32 %v5542, %v5087
        %v5576 = vadd.f32 %v5480, %v5544
        %v5577 = vadd.f32 %v5481, %v5545
        %v5578 = vadd.f32 %v5482, %v5546
        %v5579 = vadd.f32 %v5483, %v5547
        %v5580 = vadd.f32 %v5484, %v5548
        %v5581 = vadd.f32 %v5485, %v5549
        %v5582 = vadd.f32 %v5486, %v5550
        %v5583 = vadd.f32 %v5487, %v5551
        %v5584 = vadd.f32 %v5488, %v5552
        %v5585 = vadd.f32 %v5489, %v5553
        %v5586 = vadd.f32 %v5490, %v5554
        %v5587 = vadd.f32 %v5491, %v5555
        %v5588 = vadd.f32 %v5492, %v5556
        %v5589 = vadd.f32 %v5493, %v5557
        %v5590 = vadd.f32 %v5494, %v5558
        %v5591 = vadd.f32 %v5495, %v5559
        %v5592 = vadd.f32 %v5496, %v5560
        %v5593 = vadd.f32 %v5497, %v5561
        %v5594 = vadd.f32 %v5498, %v5562
        %v5595 = vadd.f32 %v5499, %v5563
        %v5596 = vadd.f32 %v5500, %v5564
        %v5597 = vadd.f32 %v5501, %v5565
        %v5598 = vadd.f32 %v5502, %v5566
        %v5599 = vadd.f32 %v5503, %v5567
        %v5600 = vadd.f32 %v5504, %v5568
        %v5601 = vadd.f32 %v5505, %v5569
        %v5602 = vadd.f32 %v5506, %v5570
        %v5603 = vadd.f32 %v5507, %v5571
        %v5604 = vadd.f32 %v5508, %v5572
        %v5605 = vadd.f32 %v5509, %v5573
        %v5606 = vadd.f32 %v5510, %v5574
        %v5607 = vadd.f32 %v5511, %v5575
        %5608 = vset.pattern.permute.xlu0 5
        %5609 = vperm.xlu0 %5608, %v5120
        %v5610 = vpop.permute.xlu0 %5609
        %5612 = vset.pattern.permute.xlu0 5
        %5613 = vperm.xlu0 %5612, %v5121
        %v5614 = vpop.permute.xlu0 %5613
        %5616 = vset.pattern.permute.xlu0 5
        %5617 = vperm.xlu0 %5616, %v5122
        %v5618 = vpop.permute.xlu0 %5617
        %5620 = vset.pattern.permute.xlu0 5
        %5621 = vperm.xlu0 %5620, %v5123
        %v5622 = vpop.permute.xlu0 %5621
        %5624 = vset.pattern.permute.xlu0 5
        %5625 = vperm.xlu0 %5624, %v5124
        %v5626 = vpop.permute.xlu0 %5625
        %5628 = vset.pattern.permute.xlu0 5
        %5629 = vperm.xlu0 %5628, %v5125
        %v5630 = vpop.permute.xlu0 %5629
        %5632 = vset.pattern.permute.xlu0 5
        %5633 = vperm.xlu0 %5632, %v5126
        %v5634 = vpop.permute.xlu0 %5633
        %5636 = vset.pattern.permute.xlu0 5
        %5637 = vperm.xlu0 %5636, %v5127
        %v5638 = vpop.permute.xlu0 %5637
        %v5640 = vmul.f32 %v5610, %v5072
        %v5641 = vmul.f32 %v5610, %v5073
        %v5642 = vmul.f32 %v5614, %v5072
        %v5643 = vmul.f32 %v5614, %v5073
        %v5644 = vmul.f32 %v5618, %v5072
        %v5645 = vmul.f32 %v5618, %v5073
        %v5646 = vmul.f32 %v5622, %v5072
        %v5647 = vmul.f32 %v5622, %v5073
        %v5648 = vmul.f32 %v5626, %v5072
        %v5649 = vmul.f32 %v5626, %v5073
        %v5650 = vmul.f32 %v5630, %v5072
        %v5651 = vmul.f32 %v5630, %v5073
        %v5652 = vmul.f32 %v5634, %v5072
        %v5653 = vmul.f32 %v5634, %v5073
        %v5654 = vmul.f32 %v5638, %v5072
        %v5655 = vmul.f32 %v5638, %v5073
        %v5656 = vmul.f32 %v5610, %v5088
        %v5657 = vmul.f32 %v5610, %v5089
        %v5658 = vmul.f32 %v5614, %v5088
        %v5659 = vmul.f32 %v5614, %v5089
        %v5660 = vmul.f32 %v5618, %v5088
        %v5661 = vmul.f32 %v5618, %v5089
        %v5662 = vmul.f32 %v5622, %v5088
        %v5663 = vmul.f32 %v5622, %v5089
        %v5664 = vmul.f32 %v5626, %v5088
        %v5665 = vmul.f32 %v5626, %v5089
        %v5666 = vmul.f32 %v5630, %v5088
        %v5667 = vmul.f32 %v5630, %v5089
        %v5668 = vmul.f32 %v5634, %v5088
        %v5669 = vmul.f32 %v5634, %v5089
        %v5670 = vmul.f32 %v5638, %v5088
        %v5671 = vmul.f32 %v5638, %v5089
        %v5672 = vadd.f32 %v5576, %v5640
        %v5673 = vadd.f32 %v5577, %v5641
        %v5674 = vadd.f32 %v5578, %v5642
        %v5675 = vadd.f32 %v5579, %v5643
        %v5676 = vadd.f32 %v5580, %v5644
        %v5677 = vadd.f32 %v5581, %v5645
        %v5678 = vadd.f32 %v5582, %v5646
        %v5679 = vadd.f32 %v5583, %v5647
        %v5680 = vadd.f32 %v5584, %v5648
        %v5681 = vadd.f32 %v5585, %v5649
        %v5682 = vadd.f32 %v5586, %v5650
        %v5683 = vadd.f32 %v5587, %v5651
        %v5684 = vadd.f32 %v5588, %v5652
        %v5685 = vadd.f32 %v5589, %v5653
        %v5686 = vadd.f32 %v5590, %v5654
        %v5687 = vadd.f32 %v5591, %v5655
        %v5688 = vadd.f32 %v5592, %v5656
        %v5689 = vadd.f32 %v5593, %v5657
        %v5690 = vadd.f32 %v5594, %v5658
        %v5691 = vadd.f32 %v5595, %v5659
        %v5692 = vadd.f32 %v5596, %v5660
        %v5693 = vadd.f32 %v5597, %v5661
        %v5694 = vadd.f32 %v5598, %v5662
        %v5695 = vadd.f32 %v5599, %v5663
        %v5696 = vadd.f32 %v5600, %v5664
        %v5697 = vadd.f32 %v5601, %v5665
        %v5698 = vadd.f32 %v5602, %v5666
        %v5699 = vadd.f32 %v5603, %v5667
        %v5700 = vadd.f32 %v5604, %v5668
        %v5701 = vadd.f32 %v5605, %v5669
        %v5702 = vadd.f32 %v5606, %v5670
        %v5703 = vadd.f32 %v5607, %v5671
        %5704 = vset.pattern.permute.xlu0 6
        %5705 = vperm.xlu0 %5704, %v5120
        %v5706 = vpop.permute.xlu0 %5705
        %5708 = vset.pattern.permute.xlu0 6
        %5709 = vperm.xlu0 %5708, %v5121
        %v5710 = vpop.permute.xlu0 %5709
        %5712 = vset.pattern.permute.xlu0 6
        %5713 = vperm.xlu0 %5712, %v5122
        %v5714 = vpop.permute.xlu0 %5713
        %5716 = vset.pattern.permute.xlu0 6
        %5717 = vperm.xlu0 %5716, %v5123
        %v5718 = vpop.permute.xlu0 %5717
        %5720 = vset.pattern.permute.xlu0 6
        %5721 = vperm.xlu0 %5720, %v5124
        %v5722 = vpop.permute.xlu0 %5721
        %5724 = vset.pattern.permute.xlu0 6
        %5725 = vperm.xlu0 %5724, %v5125
        %v5726 = vpop.permute.xlu0 %5725
        %5728 = vset.pattern.permute.xlu0 6
        %5729 = vperm.xlu0 %5728, %v5126
        %v5730 = vpop.permute.xlu0 %5729
        %5732 = vset.pattern.permute.xlu0 6
        %5733 = vperm.xlu0 %5732, %v5127
        %v5734 = vpop.permute.xlu0 %5733
        %v5736 = vmul.f32 %v5706, %v5074
        %v5737 = vmul.f32 %v5706, %v5075
        %v5738 = vmul.f32 %v5710, %v5074
        %v5739 = vmul.f32 %v5710, %v5075
        %v5740 = vmul.f32 %v5714, %v5074
        %v5741 = vmul.f32 %v5714, %v5075
        %v5742 = vmul.f32 %v5718, %v5074
        %v5743 = vmul.f32 %v5718, %v5075
        %v5744 = vmul.f32 %v5722, %v5074
        %v5745 = vmul.f32 %v5722, %v5075
        %v5746 = vmul.f32 %v5726, %v5074
        %v5747 = vmul.f32 %v5726, %v5075
        %v5748 = vmul.f32 %v5730, %v5074
        %v5749 = vmul.f32 %v5730, %v5075
        %v5750 = vmul.f32 %v5734, %v5074
        %v5751 = vmul.f32 %v5734, %v5075
        %v5752 = vmul.f32 %v5706, %v5090
        %v5753 = vmul.f32 %v5706, %v5091
        %v5754 = vmul.f32 %v5710, %v5090
        %v5755 = vmul.f32 %v5710, %v5091
        %v5756 = vmul.f32 %v5714, %v5090
        %v5757 = vmul.f32 %v5714, %v5091
        %v5758 = vmul.f32 %v5718, %v5090
        %v5759 = vmul.f32 %v5718, %v5091
        %v5760 = vmul.f32 %v5722, %v5090
        %v5761 = vmul.f32 %v5722, %v5091
        %v5762 = vmul.f32 %v5726, %v5090
        %v5763 = vmul.f32 %v5726, %v5091
        %v5764 = vmul.f32 %v5730, %v5090
        %v5765 = vmul.f32 %v5730, %v5091
        %v5766 = vmul.f32 %v5734, %v5090
        %v5767 = vmul.f32 %v5734, %v5091
        %v5768 = vadd.f32 %v5672, %v5736
        %v5769 = vadd.f32 %v5673, %v5737
        %v5770 = vadd.f32 %v5674, %v5738
        %v5771 = vadd.f32 %v5675, %v5739
        %v5772 = vadd.f32 %v5676, %v5740
        %v5773 = vadd.f32 %v5677, %v5741
        %v5774 = vadd.f32 %v5678, %v5742
        %v5775 = vadd.f32 %v5679, %v5743
        %v5776 = vadd.f32 %v5680, %v5744
        %v5777 = vadd.f32 %v5681, %v5745
        %v5778 = vadd.f32 %v5682, %v5746
        %v5779 = vadd.f32 %v5683, %v5747
        %v5780 = vadd.f32 %v5684, %v5748
        %v5781 = vadd.f32 %v5685, %v5749
        %v5782 = vadd.f32 %v5686, %v5750
        %v5783 = vadd.f32 %v5687, %v5751
        %v5784 = vadd.f32 %v5688, %v5752
        %v5785 = vadd.f32 %v5689, %v5753
        %v5786 = vadd.f32 %v5690, %v5754
        %v5787 = vadd.f32 %v5691, %v5755
        %v5788 = vadd.f32 %v5692, %v5756
        %v5789 = vadd.f32 %v5693, %v5757
        %v5790 = vadd.f32 %v5694, %v5758
        %v5791 = vadd.f32 %v5695, %v5759
        %v5792 = vadd.f32 %v5696, %v5760
        %v5793 = vadd.f32 %v5697, %v5761
        %v5794 = vadd.f32 %v5698, %v5762
        %v5795 = vadd.f32 %v5699, %v5763
        %v5796 = vadd.f32 %v5700, %v5764
        %v5797 = vadd.f32 %v5701, %v5765
        %v5798 = vadd.f32 %v5702, %v5766
        %v5799 = vadd.f32 %v5703, %v5767
        %5800 = vset.pattern.permute.xlu0 7
        %5801 = vperm.xlu0 %5800, %v5120
        %v5802 = vpop.permute.xlu0 %5801
        %5804 = vset.pattern.permute.xlu0 7
        %5805 = vperm.xlu0 %5804, %v5121
        %v5806 = vpop.permute.xlu0 %5805
        %5808 = vset.pattern.permute.xlu0 7
        %5809 = vperm.xlu0 %5808, %v5122
        %v5810 = vpop.permute.xlu0 %5809
        %5812 = vset.pattern.permute.xlu0 7
        %5813 = vperm.xlu0 %5812, %v5123
        %v5814 = vpop.permute.xlu0 %5813
        %5816 = vset.pattern.permute.xlu0 7
        %5817 = vperm.xlu0 %5816, %v5124
        %v5818 = vpop.permute.xlu0 %5817
        %5820 = vset.pattern.permute.xlu0 7
        %5821 = vperm.xlu0 %5820, %v5125
        %v5822 = vpop.permute.xlu0 %5821
        %5824 = vset.pattern.permute.xlu0 7
        %5825 = vperm.xlu0 %5824, %v5126
        %v5826 = vpop.permute.xlu0 %5825
        %5828 = vset.pattern.permute.xlu0 7
        %5829 = vperm.xlu0 %5828, %v5127
        %v5830 = vpop.permute.xlu0 %5829
        %v5832 = vmul.f32 %v5802, %v5076
        %v5833 = vmul.f32 %v5802, %v5077
        %v5834 = vmul.f32 %v5806, %v5076
        %v5835 = vmul.f32 %v5806, %v5077
        %v5836 = vmul.f32 %v5810, %v5076
        %v5837 = vmul.f32 %v5810, %v5077
        %v5838 = vmul.f32 %v5814, %v5076
        %v5839 = vmul.f32 %v5814, %v5077
        %v5840 = vmul.f32 %v5818, %v5076
        %v5841 = vmul.f32 %v5818, %v5077
        %v5842 = vmul.f32 %v5822, %v5076
        %v5843 = vmul.f32 %v5822, %v5077
        %v5844 = vmul.f32 %v5826, %v5076
        %v5845 = vmul.f32 %v5826, %v5077
        %v5846 = vmul.f32 %v5830, %v5076
        %v5847 = vmul.f32 %v5830, %v5077
        %v5848 = vmul.f32 %v5802, %v5092
        %v5849 = vmul.f32 %v5802, %v5093
        %v5850 = vmul.f32 %v5806, %v5092
        %v5851 = vmul.f32 %v5806, %v5093
        %v5852 = vmul.f32 %v5810, %v5092
        %v5853 = vmul.f32 %v5810, %v5093
        %v5854 = vmul.f32 %v5814, %v5092
        %v5855 = vmul.f32 %v5814, %v5093
        %v5856 = vmul.f32 %v5818, %v5092
        %v5857 = vmul.f32 %v5818, %v5093
        %v5858 = vmul.f32 %v5822, %v5092
        %v5859 = vmul.f32 %v5822, %v5093
        %v5860 = vmul.f32 %v5826, %v5092
        %v5861 = vmul.f32 %v5826, %v5093
        %v5862 = vmul.f32 %v5830, %v5092
        %v5863 = vmul.f32 %v5830, %v5093
        %v5864 = vadd.f32 %v5768, %v5832
        %v5865 = vadd.f32 %v5769, %v5833
        %v5866 = vadd.f32 %v5770, %v5834
        %v5867 = vadd.f32 %v5771, %v5835
        %v5868 = vadd.f32 %v5772, %v5836
        %v5869 = vadd.f32 %v5773, %v5837
        %v5870 = vadd.f32 %v5774, %v5838
        %v5871 = vadd.f32 %v5775, %v5839
        %v5872 = vadd.f32 %v5776, %v5840
        %v5873 = vadd.f32 %v5777, %v5841
        %v5874 = vadd.f32 %v5778, %v5842
        %v5875 = vadd.f32 %v5779, %v5843
        %v5876 = vadd.f32 %v5780, %v5844
        %v5877 = vadd.f32 %v5781, %v5845
        %v5878 = vadd.f32 %v5782, %v5846
        %v5879 = vadd.f32 %v5783, %v5847
        %v5880 = vadd.f32 %v5784, %v5848
        %v5881 = vadd.f32 %v5785, %v5849
        %v5882 = vadd.f32 %v5786, %v5850
        %v5883 = vadd.f32 %v5787, %v5851
        %v5884 = vadd.f32 %v5788, %v5852
        %v5885 = vadd.f32 %v5789, %v5853
        %v5886 = vadd.f32 %v5790, %v5854
        %v5887 = vadd.f32 %v5791, %v5855
        %v5888 = vadd.f32 %v5792, %v5856
        %v5889 = vadd.f32 %v5793, %v5857
        %v5890 = vadd.f32 %v5794, %v5858
        %v5891 = vadd.f32 %v5795, %v5859
        %v5892 = vadd.f32 %v5796, %v5860
        %v5893 = vadd.f32 %v5797, %v5861
        %v5894 = vadd.f32 %v5798, %v5862
        %v5895 = vadd.f32 %v5799, %v5863
        %s5896 = scalar_lea.vmem %s1, 32
        %v5897 = vld [vmem:[%s5896] sm:$0xff]
        %v5898 = vld [vmem:[%s5896 + $0x8] sm:$0xff]
        %v5899 = vadd.f32 %v5864, %v5897
        %v5900 = vadd.f32 %v5865, %v5898
        %v5901 = vadd.f32 %v5866, %v5897
        %v5902 = vadd.f32 %v5867, %v5898
        %v5903 = vadd.f32 %v5868, %v5897
        %v5904 = vadd.f32 %v5869, %v5898
        %v5905 = vadd.f32 %v5870, %v5897
        %v5906 = vadd.f32 %v5871, %v5898
        %v5907 = vadd.f32 %v5872, %v5897
        %v5908 = vadd.f32 %v5873, %v5898
        %v5909 = vadd.f32 %v5874, %v5897
        %v5910 = vadd.f32 %v5875, %v5898
        %v5911 = vadd.f32 %v5876, %v5897
        %v5912 = vadd.f32 %v5877, %v5898
        %v5913 = vadd.f32 %v5878, %v5897
        %v5914 = vadd.f32 %v5879, %v5898
        %v5915 = vadd.f32 %v5880, %v5897
        %v5916 = vadd.f32 %v5881, %v5898
        %v5917 = vadd.f32 %v5882, %v5897
        %v5918 = vadd.f32 %v5883, %v5898
        %v5919 = vadd.f32 %v5884, %v5897
        %v5920 = vadd.f32 %v5885, %v5898
        %v5921 = vadd.f32 %v5886, %v5897
        %v5922 = vadd.f32 %v5887, %v5898
        %v5923 = vadd.f32 %v5888, %v5897
        %v5924 = vadd.f32 %v5889, %v5898
        %v5925 = vadd.f32 %v5890, %v5897
        %v5926 = vadd.f32 %v5891, %v5898
        %v5927 = vadd.f32 %v5892, %v5897
        %v5928 = vadd.f32 %v5893, %v5898
        %v5929 = vadd.f32 %v5894, %v5897
        %v5930 = vadd.f32 %v5895, %v5898
        %v5932 = vsel %vm3845, %v1182, 0
        %v5935 = vsel %vm3845, %v5899, 0
        %v5938 = vsel %vm3845, %v5900, 0
        %5940 = vmatpush.xpose.msra.mxu0 0.0
        %5941 = vmatpush.xpose.msra.mxu0 0.0
        %5942 = vmatpush.xpose.msra.mxu0 0.0
        %5943 = vmatpush.xpose.msra.mxu0 0.0
        %5944 = vmatpush.xpose.msra.mxu0 0.0
        %5945 = vmatpush.xpose.msra.mxu0 0.0
        %5946 = vmatpush.xpose.msra.mxu0 0.0
        %5947 = vmatpush.xpose.msra.mxu0 0.0
        %5948 = vmatpush.xpose.msra.mxu0 0.0
        %5949 = vmatpush.xpose.msra.mxu0 0.0
        %5950 = vmatpush.xpose.msra.mxu0 0.0
        %5951 = vmatpush.xpose.msra.mxu0 0.0
        %5952 = vmatpush.xpose.msra.mxu0 0.0
        %5953 = vmatpush.xpose.msra.mxu0 0.0
        %5954 = vmatpush.xpose.msra.mxu0 %v5938
        %5955 = vmatpush.xpose.msra.mxu0 %v5935
        %5956 = vmatmul.f32.gmra.mxu0 %v5932
        %v5957 = vpop.f32.mrf.mxu0
        %v5958 = vadd.f32 0.0, %v5957
        %5959 = vdwg.mxu0
        %v5961 = vsel %vm3845, %v1184, 0
        %v5964 = vsel %vm3845, %v5901, 0
        %v5967 = vsel %vm3845, %v5902, 0
        %5969 = vmatpush.xpose.msra.mxu0 0.0
        %5970 = vmatpush.xpose.msra.mxu0 0.0
        %5971 = vmatpush.xpose.msra.mxu0 0.0
        %5972 = vmatpush.xpose.msra.mxu0 0.0
        %5973 = vmatpush.xpose.msra.mxu0 0.0
        %5974 = vmatpush.xpose.msra.mxu0 0.0
        %5975 = vmatpush.xpose.msra.mxu0 0.0
        %5976 = vmatpush.xpose.msra.mxu0 0.0
        %5977 = vmatpush.xpose.msra.mxu0 0.0
        %5978 = vmatpush.xpose.msra.mxu0 0.0
        %5979 = vmatpush.xpose.msra.mxu0 0.0
        %5980 = vmatpush.xpose.msra.mxu0 0.0
        %5981 = vmatpush.xpose.msra.mxu0 0.0
        %5982 = vmatpush.xpose.msra.mxu0 0.0
        %5983 = vmatpush.xpose.msra.mxu0 %v5967
        %5984 = vmatpush.xpose.msra.mxu0 %v5964
        %5985 = vmatmul.f32.gmra.mxu0 %v5961
        %v5986 = vpop.f32.mrf.mxu0
        %v5987 = vadd.f32 0.0, %v5986
        %5988 = vdwg.mxu0
        %v5990 = vsel %vm3845, %v1186, 0
        %v5993 = vsel %vm3845, %v5903, 0
        %v5996 = vsel %vm3845, %v5904, 0
        %5998 = vmatpush.xpose.msra.mxu0 0.0
        %5999 = vmatpush.xpose.msra.mxu0 0.0
        %6000 = vmatpush.xpose.msra.mxu0 0.0
        %6001 = vmatpush.xpose.msra.mxu0 0.0
        %6002 = vmatpush.xpose.msra.mxu0 0.0
        %6003 = vmatpush.xpose.msra.mxu0 0.0
        %6004 = vmatpush.xpose.msra.mxu0 0.0
        %6005 = vmatpush.xpose.msra.mxu0 0.0
        %6006 = vmatpush.xpose.msra.mxu0 0.0
        %6007 = vmatpush.xpose.msra.mxu0 0.0
        %6008 = vmatpush.xpose.msra.mxu0 0.0
        %6009 = vmatpush.xpose.msra.mxu0 0.0
        %6010 = vmatpush.xpose.msra.mxu0 0.0
        %6011 = vmatpush.xpose.msra.mxu0 0.0
        %6012 = vmatpush.xpose.msra.mxu0 %v5996
        %6013 = vmatpush.xpose.msra.mxu0 %v5993
        %6014 = vmatmul.f32.gmra.mxu0 %v5990
        %v6015 = vpop.f32.mrf.mxu0
        %v6016 = vadd.f32 0.0, %v6015
        %6017 = vdwg.mxu0
        %v6019 = vsel %vm3845, %v1188, 0
        %v6022 = vsel %vm3845, %v5905, 0
        %v6025 = vsel %vm3845, %v5906, 0
        %6027 = vmatpush.xpose.msra.mxu0 0.0
        %6028 = vmatpush.xpose.msra.mxu0 0.0
        %6029 = vmatpush.xpose.msra.mxu0 0.0
        %6030 = vmatpush.xpose.msra.mxu0 0.0
        %6031 = vmatpush.xpose.msra.mxu0 0.0
        %6032 = vmatpush.xpose.msra.mxu0 0.0
        %6033 = vmatpush.xpose.msra.mxu0 0.0
        %6034 = vmatpush.xpose.msra.mxu0 0.0
        %6035 = vmatpush.xpose.msra.mxu0 0.0
        %6036 = vmatpush.xpose.msra.mxu0 0.0
        %6037 = vmatpush.xpose.msra.mxu0 0.0
        %6038 = vmatpush.xpose.msra.mxu0 0.0
        %6039 = vmatpush.xpose.msra.mxu0 0.0
        %6040 = vmatpush.xpose.msra.mxu0 0.0
        %6041 = vmatpush.xpose.msra.mxu0 %v6025
        %6042 = vmatpush.xpose.msra.mxu0 %v6022
        %6043 = vmatmul.f32.gmra.mxu0 %v6019
        %v6044 = vpop.f32.mrf.mxu0
        %v6045 = vadd.f32 0.0, %v6044
        %6046 = vdwg.mxu0
        %v6048 = vsel %vm3845, %v1190, 0
        %v6051 = vsel %vm3845, %v5907, 0
        %v6054 = vsel %vm3845, %v5908, 0
        %6056 = vmatpush.xpose.msra.mxu0 0.0
        %6057 = vmatpush.xpose.msra.mxu0 0.0
        %6058 = vmatpush.xpose.msra.mxu0 0.0
        %6059 = vmatpush.xpose.msra.mxu0 0.0
        %6060 = vmatpush.xpose.msra.mxu0 0.0
        %6061 = vmatpush.xpose.msra.mxu0 0.0
        %6062 = vmatpush.xpose.msra.mxu0 0.0
        %6063 = vmatpush.xpose.msra.mxu0 0.0
        %6064 = vmatpush.xpose.msra.mxu0 0.0
        %6065 = vmatpush.xpose.msra.mxu0 0.0
        %6066 = vmatpush.xpose.msra.mxu0 0.0
        %6067 = vmatpush.xpose.msra.mxu0 0.0
        %6068 = vmatpush.xpose.msra.mxu0 0.0
        %6069 = vmatpush.xpose.msra.mxu0 0.0
        %6070 = vmatpush.xpose.msra.mxu0 %v6054
        %6071 = vmatpush.xpose.msra.mxu0 %v6051
        %6072 = vmatmul.f32.gmra.mxu0 %v6048
        %v6073 = vpop.f32.mrf.mxu0
        %v6074 = vadd.f32 0.0, %v6073
        %6075 = vdwg.mxu0
        %v6077 = vsel %vm3845, %v1192, 0
        %v6080 = vsel %vm3845, %v5909, 0
        %v6083 = vsel %vm3845, %v5910, 0
        %6085 = vmatpush.xpose.msra.mxu0 0.0
        %6086 = vmatpush.xpose.msra.mxu0 0.0
        %6087 = vmatpush.xpose.msra.mxu0 0.0
        %6088 = vmatpush.xpose.msra.mxu0 0.0
        %6089 = vmatpush.xpose.msra.mxu0 0.0
        %6090 = vmatpush.xpose.msra.mxu0 0.0
        %6091 = vmatpush.xpose.msra.mxu0 0.0
        %6092 = vmatpush.xpose.msra.mxu0 0.0
        %6093 = vmatpush.xpose.msra.mxu0 0.0
        %6094 = vmatpush.xpose.msra.mxu0 0.0
        %6095 = vmatpush.xpose.msra.mxu0 0.0
        %6096 = vmatpush.xpose.msra.mxu0 0.0
        %6097 = vmatpush.xpose.msra.mxu0 0.0
        %6098 = vmatpush.xpose.msra.mxu0 0.0
        %6099 = vmatpush.xpose.msra.mxu0 %v6083
        %6100 = vmatpush.xpose.msra.mxu0 %v6080
        %6101 = vmatmul.f32.gmra.mxu0 %v6077
        %v6102 = vpop.f32.mrf.mxu0
        %v6103 = vadd.f32 0.0, %v6102
        %6104 = vdwg.mxu0
        %v6106 = vsel %vm3845, %v1194, 0
        %v6109 = vsel %vm3845, %v5911, 0
        %v6112 = vsel %vm3845, %v5912, 0
        %6114 = vmatpush.xpose.msra.mxu0 0.0
        %6115 = vmatpush.xpose.msra.mxu0 0.0
        %6116 = vmatpush.xpose.msra.mxu0 0.0
        %6117 = vmatpush.xpose.msra.mxu0 0.0
        %6118 = vmatpush.xpose.msra.mxu0 0.0
        %6119 = vmatpush.xpose.msra.mxu0 0.0
        %6120 = vmatpush.xpose.msra.mxu0 0.0
        %6121 = vmatpush.xpose.msra.mxu0 0.0
        %6122 = vmatpush.xpose.msra.mxu0 0.0
        %6123 = vmatpush.xpose.msra.mxu0 0.0
        %6124 = vmatpush.xpose.msra.mxu0 0.0
        %6125 = vmatpush.xpose.msra.mxu0 0.0
        %6126 = vmatpush.xpose.msra.mxu0 0.0
        %6127 = vmatpush.xpose.msra.mxu0 0.0
        %6128 = vmatpush.xpose.msra.mxu0 %v6112
        %6129 = vmatpush.xpose.msra.mxu0 %v6109
        %6130 = vmatmul.f32.gmra.mxu0 %v6106
        %v6131 = vpop.f32.mrf.mxu0
        %v6132 = vadd.f32 0.0, %v6131
        %6133 = vdwg.mxu0
        %v6135 = vsel %vm3845, %v1196, 0
        %v6138 = vsel %vm3845, %v5913, 0
        %v6141 = vsel %vm3845, %v5914, 0
        %6143 = vmatpush.xpose.msra.mxu0 0.0
        %6144 = vmatpush.xpose.msra.mxu0 0.0
        %6145 = vmatpush.xpose.msra.mxu0 0.0
        %6146 = vmatpush.xpose.msra.mxu0 0.0
        %6147 = vmatpush.xpose.msra.mxu0 0.0
        %6148 = vmatpush.xpose.msra.mxu0 0.0
        %6149 = vmatpush.xpose.msra.mxu0 0.0
        %6150 = vmatpush.xpose.msra.mxu0 0.0
        %6151 = vmatpush.xpose.msra.mxu0 0.0
        %6152 = vmatpush.xpose.msra.mxu0 0.0
        %6153 = vmatpush.xpose.msra.mxu0 0.0
        %6154 = vmatpush.xpose.msra.mxu0 0.0
        %6155 = vmatpush.xpose.msra.mxu0 0.0
        %6156 = vmatpush.xpose.msra.mxu0 0.0
        %6157 = vmatpush.xpose.msra.mxu0 %v6141
        %6158 = vmatpush.xpose.msra.mxu0 %v6138
        %6159 = vmatmul.f32.gmra.mxu0 %v6135
        %v6160 = vpop.f32.mrf.mxu0
        %v6161 = vadd.f32 0.0, %v6160
        %6162 = vdwg.mxu0
        %v6164 = vsel %vm3845, %v1518, 0
        %v6167 = vsel %vm3845, %v5915, 0
        %v6170 = vsel %vm3845, %v5916, 0
        %6172 = vmatpush.xpose.msra.mxu0 0.0
        %6173 = vmatpush.xpose.msra.mxu0 0.0
        %6174 = vmatpush.xpose.msra.mxu0 0.0
        %6175 = vmatpush.xpose.msra.mxu0 0.0
        %6176 = vmatpush.xpose.msra.mxu0 0.0
        %6177 = vmatpush.xpose.msra.mxu0 0.0
        %6178 = vmatpush.xpose.msra.mxu0 0.0
        %6179 = vmatpush.xpose.msra.mxu0 0.0
        %6180 = vmatpush.xpose.msra.mxu0 0.0
        %6181 = vmatpush.xpose.msra.mxu0 0.0
        %6182 = vmatpush.xpose.msra.mxu0 0.0
        %6183 = vmatpush.xpose.msra.mxu0 0.0
        %6184 = vmatpush.xpose.msra.mxu0 0.0
        %6185 = vmatpush.xpose.msra.mxu0 0.0
        %6186 = vmatpush.xpose.msra.mxu0 %v6170
        %6187 = vmatpush.xpose.msra.mxu0 %v6167
        %6188 = vmatmul.f32.gmra.mxu0 %v6164
        %v6189 = vpop.f32.mrf.mxu0
        %v6190 = vadd.f32 0.0, %v6189
        %6191 = vdwg.mxu0
        %v6193 = vsel %vm3845, %v1520, 0
        %v6196 = vsel %vm3845, %v5917, 0
        %v6199 = vsel %vm3845, %v5918, 0
        %6201 = vmatpush.xpose.msra.mxu0 0.0
        %6202 = vmatpush.xpose.msra.mxu0 0.0
        %6203 = vmatpush.xpose.msra.mxu0 0.0
        %6204 = vmatpush.xpose.msra.mxu0 0.0
        %6205 = vmatpush.xpose.msra.mxu0 0.0
        %6206 = vmatpush.xpose.msra.mxu0 0.0
        %6207 = vmatpush.xpose.msra.mxu0 0.0
        %6208 = vmatpush.xpose.msra.mxu0 0.0
        %6209 = vmatpush.xpose.msra.mxu0 0.0
        %6210 = vmatpush.xpose.msra.mxu0 0.0
        %6211 = vmatpush.xpose.msra.mxu0 0.0
        %6212 = vmatpush.xpose.msra.mxu0 0.0
        %6213 = vmatpush.xpose.msra.mxu0 0.0
        %6214 = vmatpush.xpose.msra.mxu0 0.0
        %6215 = vmatpush.xpose.msra.mxu0 %v6199
        %6216 = vmatpush.xpose.msra.mxu0 %v6196
        %6217 = vmatmul.f32.gmra.mxu0 %v6193
        %v6218 = vpop.f32.mrf.mxu0
        %v6219 = vadd.f32 0.0, %v6218
        %6220 = vdwg.mxu0
        %v6222 = vsel %vm3845, %v1522, 0
        %v6225 = vsel %vm3845, %v5919, 0
        %v6228 = vsel %vm3845, %v5920, 0
        %6230 = vmatpush.xpose.msra.mxu0 0.0
        %6231 = vmatpush.xpose.msra.mxu0 0.0
        %6232 = vmatpush.xpose.msra.mxu0 0.0
        %6233 = vmatpush.xpose.msra.mxu0 0.0
        %6234 = vmatpush.xpose.msra.mxu0 0.0
        %6235 = vmatpush.xpose.msra.mxu0 0.0
        %6236 = vmatpush.xpose.msra.mxu0 0.0
        %6237 = vmatpush.xpose.msra.mxu0 0.0
        %6238 = vmatpush.xpose.msra.mxu0 0.0
        %6239 = vmatpush.xpose.msra.mxu0 0.0
        %6240 = vmatpush.xpose.msra.mxu0 0.0
        %6241 = vmatpush.xpose.msra.mxu0 0.0
        %6242 = vmatpush.xpose.msra.mxu0 0.0
        %6243 = vmatpush.xpose.msra.mxu0 0.0
        %6244 = vmatpush.xpose.msra.mxu0 %v6228
        %6245 = vmatpush.xpose.msra.mxu0 %v6225
        %6246 = vmatmul.f32.gmra.mxu0 %v6222
        %v6247 = vpop.f32.mrf.mxu0
        %v6248 = vadd.f32 0.0, %v6247
        %6249 = vdwg.mxu0
        %v6251 = vsel %vm3845, %v1524, 0
        %v6254 = vsel %vm3845, %v5921, 0
        %v6257 = vsel %vm3845, %v5922, 0
        %6259 = vmatpush.xpose.msra.mxu0 0.0
        %6260 = vmatpush.xpose.msra.mxu0 0.0
        %6261 = vmatpush.xpose.msra.mxu0 0.0
        %6262 = vmatpush.xpose.msra.mxu0 0.0
        %6263 = vmatpush.xpose.msra.mxu0 0.0
        %6264 = vmatpush.xpose.msra.mxu0 0.0
        %6265 = vmatpush.xpose.msra.mxu0 0.0
        %6266 = vmatpush.xpose.msra.mxu0 0.0
        %6267 = vmatpush.xpose.msra.mxu0 0.0
        %6268 = vmatpush.xpose.msra.mxu0 0.0
        %6269 = vmatpush.xpose.msra.mxu0 0.0
        %6270 = vmatpush.xpose.msra.mxu0 0.0
        %6271 = vmatpush.xpose.msra.mxu0 0.0
        %6272 = vmatpush.xpose.msra.mxu0 0.0
        %6273 = vmatpush.xpose.msra.mxu0 %v6257
        %6274 = vmatpush.xpose.msra.mxu0 %v6254
        %6275 = vmatmul.f32.gmra.mxu0 %v6251
        %v6276 = vpop.f32.mrf.mxu0
        %v6277 = vadd.f32 0.0, %v6276
        %6278 = vdwg.mxu0
        %v6280 = vsel %vm3845, %v1526, 0
        %v6283 = vsel %vm3845, %v5923, 0
        %v6286 = vsel %vm3845, %v5924, 0
        %6288 = vmatpush.xpose.msra.mxu0 0.0
        %6289 = vmatpush.xpose.msra.mxu0 0.0
        %6290 = vmatpush.xpose.msra.mxu0 0.0
        %6291 = vmatpush.xpose.msra.mxu0 0.0
        %6292 = vmatpush.xpose.msra.mxu0 0.0
        %6293 = vmatpush.xpose.msra.mxu0 0.0
        %6294 = vmatpush.xpose.msra.mxu0 0.0
        %6295 = vmatpush.xpose.msra.mxu0 0.0
        %6296 = vmatpush.xpose.msra.mxu0 0.0
        %6297 = vmatpush.xpose.msra.mxu0 0.0
        %6298 = vmatpush.xpose.msra.mxu0 0.0
        %6299 = vmatpush.xpose.msra.mxu0 0.0
        %6300 = vmatpush.xpose.msra.mxu0 0.0
        %6301 = vmatpush.xpose.msra.mxu0 0.0
        %6302 = vmatpush.xpose.msra.mxu0 %v6286
        %6303 = vmatpush.xpose.msra.mxu0 %v6283
        %6304 = vmatmul.f32.gmra.mxu0 %v6280
        %v6305 = vpop.f32.mrf.mxu0
        %v6306 = vadd.f32 0.0, %v6305
        %6307 = vdwg.mxu0
        %v6309 = vsel %vm3845, %v1528, 0
        %v6312 = vsel %vm3845, %v5925, 0
        %v6315 = vsel %vm3845, %v5926, 0
        %6317 = vmatpush.xpose.msra.mxu0 0.0
        %6318 = vmatpush.xpose.msra.mxu0 0.0
        %6319 = vmatpush.xpose.msra.mxu0 0.0
        %6320 = vmatpush.xpose.msra.mxu0 0.0
        %6321 = vmatpush.xpose.msra.mxu0 0.0
        %6322 = vmatpush.xpose.msra.mxu0 0.0
        %6323 = vmatpush.xpose.msra.mxu0 0.0
        %6324 = vmatpush.xpose.msra.mxu0 0.0
        %6325 = vmatpush.xpose.msra.mxu0 0.0
        %6326 = vmatpush.xpose.msra.mxu0 0.0
        %6327 = vmatpush.xpose.msra.mxu0 0.0
        %6328 = vmatpush.xpose.msra.mxu0 0.0
        %6329 = vmatpush.xpose.msra.mxu0 0.0
        %6330 = vmatpush.xpose.msra.mxu0 0.0
        %6331 = vmatpush.xpose.msra.mxu0 %v6315
        %6332 = vmatpush.xpose.msra.mxu0 %v6312
        %6333 = vmatmul.f32.gmra.mxu0 %v6309
        %v6334 = vpop.f32.mrf.mxu0
        %v6335 = vadd.f32 0.0, %v6334
        %6336 = vdwg.mxu0
        %v6338 = vsel %vm3845, %v1530, 0
        %v6341 = vsel %vm3845, %v5927, 0
        %v6344 = vsel %vm3845, %v5928, 0
        %6346 = vmatpush.xpose.msra.mxu0 0.0
        %6347 = vmatpush.xpose.msra.mxu0 0.0
        %6348 = vmatpush.xpose.msra.mxu0 0.0
        %6349 = vmatpush.xpose.msra.mxu0 0.0
        %6350 = vmatpush.xpose.msra.mxu0 0.0
        %6351 = vmatpush.xpose.msra.mxu0 0.0
        %6352 = vmatpush.xpose.msra.mxu0 0.0
        %6353 = vmatpush.xpose.msra.mxu0 0.0
        %6354 = vmatpush.xpose.msra.mxu0 0.0
        %6355 = vmatpush.xpose.msra.mxu0 0.0
        %6356 = vmatpush.xpose.msra.mxu0 0.0
        %6357 = vmatpush.xpose.msra.mxu0 0.0
        %6358 = vmatpush.xpose.msra.mxu0 0.0
        %6359 = vmatpush.xpose.msra.mxu0 0.0
        %6360 = vmatpush.xpose.msra.mxu0 %v6344
        %6361 = vmatpush.xpose.msra.mxu0 %v6341
        %6362 = vmatmul.f32.gmra.mxu0 %v6338
        %v6363 = vpop.f32.mrf.mxu0
        %v6364 = vadd.f32 0.0, %v6363
        %6365 = vdwg.mxu0
        %v6367 = vsel %vm3845, %v1532, 0
        %v6370 = vsel %vm3845, %v5929, 0
        %v6373 = vsel %vm3845, %v5930, 0
        %6375 = vmatpush.xpose.msra.mxu0 0.0
        %6376 = vmatpush.xpose.msra.mxu0 0.0
        %6377 = vmatpush.xpose.msra.mxu0 0.0
        %6378 = vmatpush.xpose.msra.mxu0 0.0
        %6379 = vmatpush.xpose.msra.mxu0 0.0
        %6380 = vmatpush.xpose.msra.mxu0 0.0
        %6381 = vmatpush.xpose.msra.mxu0 0.0
        %6382 = vmatpush.xpose.msra.mxu0 0.0
        %6383 = vmatpush.xpose.msra.mxu0 0.0
        %6384 = vmatpush.xpose.msra.mxu0 0.0
        %6385 = vmatpush.xpose.msra.mxu0 0.0
        %6386 = vmatpush.xpose.msra.mxu0 0.0
        %6387 = vmatpush.xpose.msra.mxu0 0.0
        %6388 = vmatpush.xpose.msra.mxu0 0.0
        %6389 = vmatpush.xpose.msra.mxu0 %v6373
        %6390 = vmatpush.xpose.msra.mxu0 %v6370
        %6391 = vmatmul.f32.gmra.mxu0 %v6367
        %v6392 = vpop.f32.mrf.mxu0
        %v6393 = vadd.f32 0.0, %v6392
        %6394 = vdwg.mxu0
        %v6395 = vadd.f32 %v4337, %v5958
        %v6396 = vadd.f32 %v4366, %v5987
        %v6397 = vadd.f32 %v4395, %v6016
        %v6398 = vadd.f32 %v4424, %v6045
        %v6399 = vadd.f32 %v4453, %v6074
        %v6400 = vadd.f32 %v4482, %v6103
        %v6401 = vadd.f32 %v4511, %v6132
        %v6402 = vadd.f32 %v4540, %v6161
        %v6403 = vadd.f32 %v4569, %v6190
        %v6404 = vadd.f32 %v4598, %v6219
        %v6405 = vadd.f32 %v4627, %v6248
        %v6406 = vadd.f32 %v4656, %v6277
        %v6407 = vadd.f32 %v4685, %v6306
        %v6408 = vadd.f32 %v4714, %v6335
        %v6409 = vadd.f32 %v4743, %v6364
        %v6410 = vadd.f32 %v4772, %v6393
        %v6411 = vrot.slane %v6397, 4
        %v6412 = vsel %vm861, %v6411, %v6395
        %v6413 = vrot.slane %v6395, 4
        %v6414 = vsel %vm861, %v6397, %v6413
        %v6416 = vunpack.c.l.s4 1983009808
        %v6417 = vunpack.c.0.s8 %v6416
        %v6418 = vperm.slane %v6412, %v6417
        %v6420 = vunpack.c.l.s4 1983009808
        %v6421 = vunpack.c.0.s8 %v6420
        %v6422 = vperm.slane %v6414, %v6421
        %v6423 = vrot.slane %v6398, 4
        %v6424 = vsel %vm861, %v6423, %v6396
        %v6425 = vrot.slane %v6396, 4
        %v6426 = vsel %vm861, %v6398, %v6425
        %v6428 = vunpack.c.l.s4 1983009808
        %v6429 = vunpack.c.0.s8 %v6428
        %v6430 = vperm.slane %v6424, %v6429
        %v6432 = vunpack.c.l.s4 1983009808
        %v6433 = vunpack.c.0.s8 %v6432
        %v6434 = vperm.slane %v6426, %v6433
        %v6435 = vrot.slane %v6401, 4
        %v6436 = vsel %vm861, %v6435, %v6399
        %v6437 = vrot.slane %v6399, 4
        %v6438 = vsel %vm861, %v6401, %v6437
        %v6440 = vunpack.c.l.s4 1983009808
        %v6441 = vunpack.c.0.s8 %v6440
        %v6442 = vperm.slane %v6436, %v6441
        %v6444 = vunpack.c.l.s4 1983009808
        %v6445 = vunpack.c.0.s8 %v6444
        %v6446 = vperm.slane %v6438, %v6445
        %v6447 = vrot.slane %v6402, 4
        %v6448 = vsel %vm861, %v6447, %v6400
        %v6449 = vrot.slane %v6400, 4
        %v6450 = vsel %vm861, %v6402, %v6449
        %v6452 = vunpack.c.l.s4 1983009808
        %v6453 = vunpack.c.0.s8 %v6452
        %v6454 = vperm.slane %v6448, %v6453
        %v6456 = vunpack.c.l.s4 1983009808
        %v6457 = vunpack.c.0.s8 %v6456
        %v6458 = vperm.slane %v6450, %v6457
        %v6459 = vrot.slane %v6430, 4
        %v6460 = vsel %vm861, %v6459, %v6418
        %v6461 = vrot.slane %v6418, 4
        %v6462 = vsel %vm861, %v6430, %v6461
        %v6464 = vunpack.c.l.s4 1934713408
        %v6465 = vunpack.c.0.s8 %v6464
        %v6466 = vperm.slane %v6460, %v6465
        %v6468 = vunpack.c.l.s4 1934713408
        %v6469 = vunpack.c.0.s8 %v6468
        %v6470 = vperm.slane %v6462, %v6469
        %v6471 = vrot.slane %v6434, 4
        %v6472 = vsel %vm861, %v6471, %v6422
        %v6473 = vrot.slane %v6422, 4
        %v6474 = vsel %vm861, %v6434, %v6473
        %v6476 = vunpack.c.l.s4 1934713408
        %v6477 = vunpack.c.0.s8 %v6476
        %v6478 = vperm.slane %v6472, %v6477
        %v6480 = vunpack.c.l.s4 1934713408
        %v6481 = vunpack.c.0.s8 %v6480
        %v6482 = vperm.slane %v6474, %v6481
        %v6483 = vrot.slane %v6454, 4
        %v6484 = vsel %vm861, %v6483, %v6442
        %v6485 = vrot.slane %v6442, 4
        %v6486 = vsel %vm861, %v6454, %v6485
        %v6488 = vunpack.c.l.s4 1934713408
        %v6489 = vunpack.c.0.s8 %v6488
        %v6490 = vperm.slane %v6484, %v6489
        %v6492 = vunpack.c.l.s4 1934713408
        %v6493 = vunpack.c.0.s8 %v6492
        %v6494 = vperm.slane %v6486, %v6493
        %v6495 = vrot.slane %v6458, 4
        %v6496 = vsel %vm861, %v6495, %v6446
        %v6497 = vrot.slane %v6446, 4
        %v6498 = vsel %vm861, %v6458, %v6497
        %v6500 = vunpack.c.l.s4 1934713408
        %v6501 = vunpack.c.0.s8 %v6500
        %v6502 = vperm.slane %v6496, %v6501
        %v6504 = vunpack.c.l.s4 1934713408
        %v6505 = vunpack.c.0.s8 %v6504
        %v6506 = vperm.slane %v6498, %v6505
        %v6507 = vrot.slane %v6490, 4
        %v6508 = vsel %vm861, %v6507, %v6466
        %v6509 = vrot.slane %v6466, 4
        %v6510 = vsel %vm861, %v6490, %v6509
        %v6511 = vrot.slane %v6494, 4
        %v6512 = vsel %vm861, %v6511, %v6470
        %v6513 = vrot.slane %v6470, 4
        %v6514 = vsel %vm861, %v6494, %v6513
        %v6515 = vrot.slane %v6502, 4
        %v6516 = vsel %vm861, %v6515, %v6478
        %v6517 = vrot.slane %v6478, 4
        %v6518 = vsel %vm861, %v6502, %v6517
        %v6519 = vrot.slane %v6506, 4
        %v6520 = vsel %vm861, %v6519, %v6482
        %v6521 = vrot.slane %v6482, 4
        %v6522 = vsel %vm861, %v6506, %v6521
        %v6523 = vrot.slane %v6405, 4
        %v6524 = vsel %vm861, %v6523, %v6403
        %v6525 = vrot.slane %v6403, 4
        %v6526 = vsel %vm861, %v6405, %v6525
        %v6528 = vunpack.c.l.s4 1983009808
        %v6529 = vunpack.c.0.s8 %v6528
        %v6530 = vperm.slane %v6524, %v6529
        %v6532 = vunpack.c.l.s4 1983009808
        %v6533 = vunpack.c.0.s8 %v6532
        %v6534 = vperm.slane %v6526, %v6533
        %v6535 = vrot.slane %v6406, 4
        %v6536 = vsel %vm861, %v6535, %v6404
        %v6537 = vrot.slane %v6404, 4
        %v6538 = vsel %vm861, %v6406, %v6537
        %v6540 = vunpack.c.l.s4 1983009808
        %v6541 = vunpack.c.0.s8 %v6540
        %v6542 = vperm.slane %v6536, %v6541
        %v6544 = vunpack.c.l.s4 1983009808
        %v6545 = vunpack.c.0.s8 %v6544
        %v6546 = vperm.slane %v6538, %v6545
        %v6547 = vrot.slane %v6409, 4
        %v6548 = vsel %vm861, %v6547, %v6407
        %v6549 = vrot.slane %v6407, 4
        %v6550 = vsel %vm861, %v6409, %v6549
        %v6552 = vunpack.c.l.s4 1983009808
        %v6553 = vunpack.c.0.s8 %v6552
        %v6554 = vperm.slane %v6548, %v6553
        %v6556 = vunpack.c.l.s4 1983009808
        %v6557 = vunpack.c.0.s8 %v6556
        %v6558 = vperm.slane %v6550, %v6557
        %v6559 = vrot.slane %v6410, 4
        %v6560 = vsel %vm861, %v6559, %v6408
        %v6561 = vrot.slane %v6408, 4
        %v6562 = vsel %vm861, %v6410, %v6561
        %v6564 = vunpack.c.l.s4 1983009808
        %v6565 = vunpack.c.0.s8 %v6564
        %v6566 = vperm.slane %v6560, %v6565
        %v6568 = vunpack.c.l.s4 1983009808
        %v6569 = vunpack.c.0.s8 %v6568
        %v6570 = vperm.slane %v6562, %v6569
        %v6571 = vrot.slane %v6542, 4
        %v6572 = vsel %vm861, %v6571, %v6530
        %v6573 = vrot.slane %v6530, 4
        %v6574 = vsel %vm861, %v6542, %v6573
        %v6576 = vunpack.c.l.s4 1934713408
        %v6577 = vunpack.c.0.s8 %v6576
        %v6578 = vperm.slane %v6572, %v6577
        %v6580 = vunpack.c.l.s4 1934713408
        %v6581 = vunpack.c.0.s8 %v6580
        %v6582 = vperm.slane %v6574, %v6581
        %v6583 = vrot.slane %v6546, 4
        %v6584 = vsel %vm861, %v6583, %v6534
        %v6585 = vrot.slane %v6534, 4
        %v6586 = vsel %vm861, %v6546, %v6585
        %v6588 = vunpack.c.l.s4 1934713408
        %v6589 = vunpack.c.0.s8 %v6588
        %v6590 = vperm.slane %v6584, %v6589
        %v6592 = vunpack.c.l.s4 1934713408
        %v6593 = vunpack.c.0.s8 %v6592
        %v6594 = vperm.slane %v6586, %v6593
        %v6595 = vrot.slane %v6566, 4
        %v6596 = vsel %vm861, %v6595, %v6554
        %v6597 = vrot.slane %v6554, 4
        %v6598 = vsel %vm861, %v6566, %v6597
        %v6600 = vunpack.c.l.s4 1934713408
        %v6601 = vunpack.c.0.s8 %v6600
        %v6602 = vperm.slane %v6596, %v6601
        %v6604 = vunpack.c.l.s4 1934713408
        %v6605 = vunpack.c.0.s8 %v6604
        %v6606 = vperm.slane %v6598, %v6605
        %v6607 = vrot.slane %v6570, 4
        %v6608 = vsel %vm861, %v6607, %v6558
        %v6609 = vrot.slane %v6558, 4
        %v6610 = vsel %vm861, %v6570, %v6609
        %v6612 = vunpack.c.l.s4 1934713408
        %v6613 = vunpack.c.0.s8 %v6612
        %v6614 = vperm.slane %v6608, %v6613
        %v6616 = vunpack.c.l.s4 1934713408
        %v6617 = vunpack.c.0.s8 %v6616
        %v6618 = vperm.slane %v6610, %v6617
        %v6619 = vrot.slane %v6602, 4
        %v6620 = vsel %vm861, %v6619, %v6578
        %v6621 = vrot.slane %v6578, 4
        %v6622 = vsel %vm861, %v6602, %v6621
        %v6623 = vrot.slane %v6606, 4
        %v6624 = vsel %vm861, %v6623, %v6582
        %v6625 = vrot.slane %v6582, 4
        %v6626 = vsel %vm861, %v6606, %v6625
        %v6627 = vrot.slane %v6614, 4
        %v6628 = vsel %vm861, %v6627, %v6590
        %v6629 = vrot.slane %v6590, 4
        %v6630 = vsel %vm861, %v6614, %v6629
        %v6631 = vrot.slane %v6618, 4
        %v6632 = vsel %vm861, %v6631, %v6594
        %v6633 = vrot.slane %v6594, 4
        %v6634 = vsel %vm861, %v6618, %v6633
        %6637 = vrot.lane.b32.xlu0 %v6510, 16
        %v6638 = vpop.permute.xlu0 %6637
        %6639 = vrot.lane.b32.xlu0 %v6622, 16
        %v6640 = vpop.permute.xlu0 %6639
        %6645 = vrot.lane.b32.xlu0 %v6512, 32
        %v6646 = vpop.permute.xlu0 %6645
        %6647 = vrot.lane.b32.xlu0 %v6624, 32
        %v6648 = vpop.permute.xlu0 %6647
        %6653 = vrot.lane.b32.xlu0 %v6514, 48
        %v6654 = vpop.permute.xlu0 %6653
        %6655 = vrot.lane.b32.xlu0 %v6626, 48
        %v6656 = vpop.permute.xlu0 %6655
        %6661 = vrot.lane.b32.xlu0 %v6516, 64
        %v6662 = vpop.permute.xlu0 %6661
        %6663 = vrot.lane.b32.xlu0 %v6628, 64
        %v6664 = vpop.permute.xlu0 %6663
        %6669 = vrot.lane.b32.xlu0 %v6518, 80
        %v6670 = vpop.permute.xlu0 %6669
        %6671 = vrot.lane.b32.xlu0 %v6630, 80
        %v6672 = vpop.permute.xlu0 %6671
        %6677 = vrot.lane.b32.xlu0 %v6520, 96
        %v6678 = vpop.permute.xlu0 %6677
        %6679 = vrot.lane.b32.xlu0 %v6632, 96
        %v6680 = vpop.permute.xlu0 %6679
        %6685 = vrot.lane.b32.xlu0 %v6522, 112
        %v6686 = vpop.permute.xlu0 %6685
        %6687 = vrot.lane.b32.xlu0 %v6634, 112
        %v6688 = vpop.permute.xlu0 %6687
        %v6691 = vsel %vm3845, %v6508, %v6638
        %v6692 = vsel %vm3845, %v6620, %v6640
        %vm6693 = vcmask 261120
        %v6694 = vsel %vm6693, %v6691, %v6646
        %v6695 = vsel %vm6693, %v6692, %v6648
        %vm6696 = vcmask 392192
        %v6697 = vsel %vm6696, %v6694, %v6654
        %v6698 = vsel %vm6696, %v6695, %v6656
        %vm6699 = vcmask 523264
        %v6700 = vsel %vm6699, %v6697, %v6662
        %v6701 = vsel %vm6699, %v6698, %v6664
        %vm6702 = vcmask 654336
        %v6703 = vsel %vm6702, %v6700, %v6670
        %v6704 = vsel %vm6702, %v6701, %v6672
        %vm6705 = vcmask 785408
        %v6706 = vsel %vm6705, %v6703, %v6678
        %v6707 = vsel %vm6705, %v6704, %v6680
        %vm6708 = vcmask 916480
        %v6709 = vsel %vm6708, %v6706, %v6686
        %v6710 = vsel %vm6708, %v6707, %v6688
        %v6711 = vld [vmem:[%s8] sm:$0xf]
        %v6712 = vperm.slane %v6711, 0
        %v6713 = vlaneseq
        %v6714 = vshrl.u32 %v6713, 7
        %6716 = vset.pattern.permute.xlu0 %v6714
        %6717 = vperm.xlu0 %6716, %v6712
        %v6718 = vpop.permute.xlu0 %6717
        %v6719 = vmul.f32 %v6709, %v6718
        %v6720 = vmul.f32 %v6710, %v6718
        %v6721 = vperm.slane %v6711, 1
        %v6722 = vlaneseq
        %v6723 = vshrl.u32 %v6722, 7
        %6725 = vset.pattern.permute.xlu0 %v6723
        %6726 = vperm.xlu0 %6725, %v6721
        %v6727 = vpop.permute.xlu0 %6726
        %v6728 = vadd.f32 %v6719, %v6727
        %v6729 = vadd.f32 %v6720, %v6727
        %v6730 = vperm.slane %v6711, 2
        %v6731 = vlaneseq
        %v6732 = vshrl.u32 %v6731, 7
        %6734 = vset.pattern.permute.xlu0 %v6732
        %6735 = vperm.xlu0 %6734, %v6730
        %v6736 = vpop.permute.xlu0 %6735
        %v6737 = vmul.f32 %v723, %v6736
        %v6738 = vmul.f32 %v727, %v6736
        %v6739 = vperm.slane %v6711, 3
        %v6740 = vlaneseq
        %v6741 = vshrl.u32 %v6740, 7
        %6743 = vset.pattern.permute.xlu0 %v6741
        %6744 = vperm.xlu0 %6743, %v6739
        %v6745 = vpop.permute.xlu0 %6744
        %v6746 = vadd.f32 %v6737, %v6745
        %v6747 = vadd.f32 %v6738, %v6745
        %v6748 = vadd.f32 %v6728, %v6746
        %v6749 = vadd.f32 %v6729, %v6747
        %v6750 = vmax.f32 %v6748, 0.0
        %v6751 = vmax.f32 %v6749, 0.0
        %6752 = vst [vmem:[%s326] sm:$0xff] %v6750
        %6753 = vst [vmem:[%s326 + $0x8] sm:$0xff] %v6751
        %s6754 = sand.u32 %s225, 1
        %s6755 = scalar_lea.sflag [#allocation3], %s6754
        %s6756 = sand.u32 %s225, 1
        %s6757 = smul.addr %s6756, 16
        %s6758 = scalar_lea.vmem [#allocation2], %s6757
        // Predicated region
        $region57: #{tpu_custom_call.1} parent=55 // pred_check
          %p6759 = pneg %p235
        $region58: #{tpu_custom_call.1} parent=55 // pred_check_branch
          %6761 = sbr.rel (%p6759) target = $region60
        $region59: #{tpu_custom_call.1} parent=55 // pred_region
          %s6762 = smul.u32 2, %s23
          %6764 = vsyncadd %s6755, 0
          %s6765 = smul.addr %s6762, 8
          %s6766 = scalar_lea.hbm %s9, %s6765
          %s6767 = sshll.u32 %s6758, 4
          %s6768 = int_to_ptr.vmem [resolvable:$true] %s6767
          %s6769 = sshll.u32 %s6766, 4
          %s6770 = int_to_ptr.hbm [resolvable:$true] %s6769
          %6775 = dma.vmem_to_hbm [thread:$0]  %s6768, 256, %s6770, %s6755, 128, 128, 8
        $region60: #{tpu_custom_call.1} parent=55 // pred_fallthru
          _
      $region56: #{tpu_custom_call.1} parent=5 // pred_fallthru
        _
      %p6776 = scmp.le.s32.totalorder 2, %s18
      // Predicated region
      $region61: #{tpu_custom_call.1} parent=5 // pred_check
        %p6777 = pneg %p6776
      $region62: #{tpu_custom_call.1} parent=5 // pred_check_branch
        %6779 = sbr.rel (%p6777) target = $region64
      $region63: #{tpu_custom_call.1} parent=5 // pred_region
        %s6780 = ssub.s32 %s18, 2
        // Predicated region
        $region65: #{tpu_custom_call.1} parent=63 // pred_check
          %p6781 = pneg %p241
        $region66: #{tpu_custom_call.1} parent=63 // pred_check_branch
          %6783 = sbr.rel (%p6781) target = $region68
        $region67: #{tpu_custom_call.1} parent=63 // pred_region
          %s6784 = sand.u32 %s226, 1
          %s6785 = scalar_lea.sflag [#allocation3], %s6784
          %s6786 = sand.u32 %s226, 1
          %s6787 = smul.addr %s6786, 16
          %s6788 = scalar_lea.vmem [#allocation2], %s6787
          %6790 = dma.done %s6785, 256
        $region68: #{tpu_custom_call.1} parent=63 // pred_fallthru
          _
      $region64: #{tpu_custom_call.1} parent=5 // pred_fallthru
        _
    $region6: #{tpu_custom_call.1} parent=1 // loop_footer
      %s22 = sadd.s32 1, %s18
    $region7: #{tpu_custom_call.1} parent=1 // loop_footer_branch
      %17 = sbr.rel target = $region3
    $region8: #{tpu_custom_call.1} parent=1 // loop_exit
      _
    %6791 = vsyncpa [#allocation3], 1
    %s6792 = scalar_lea.sflag [#allocation3], 1
    %6793 = vsyncpa %s6792, 1

</llo_original>
